<compile_context>
chip_gen: v6e
topology: v6e:2x2x1
jax: 0.10.0
libtpu: 0.0.40
codegen_flags: <defaults>
</compile_context>

<pallas_src>
import jax
import jax.numpy as jnp
from jax.experimental import pallas as pl
from jax.experimental.pallas import tpu as pltpu

LN_EPS = 1e-5          # torch.nn.LayerNorm default
LRELU_SLOPE = 0.2      # nn.LeakyReLU(0.2)
BATCH_TILE = 128       # fills the MXU M dimension on v5e; fine on v6e/v7x


def _layer_norm(h, gamma, beta):
    """LayerNorm with fused statistics (single pass over h for both stats)."""
    n = h.shape[-1]
    s1 = jnp.sum(h, axis=-1, keepdims=True)
    s2 = jnp.sum(h * h, axis=-1, keepdims=True)
    mu = s1 * (1.0 / n)
    var = jnp.maximum(s2 * (1.0 / n) - mu * mu, 0.0)  # guard cancellation
    return (h - mu) * jax.lax.rsqrt(var + LN_EPS) * gamma + beta


def _leaky_relu(h):
    return jnp.where(h > 0, h, LRELU_SLOPE * h)


def _mm_bias(h, w_ref, b_ref):
    # bf16 operands, f32 accumulation on the MXU; bias add in f32.
    return jnp.dot(h.astype(jnp.bfloat16), w_ref[...],
                   preferred_element_type=jnp.float32) + b_ref[...]


def discriminator_kernel(
    x_ref,
    w1_ref, b1_ref, g1_ref, be1_ref,
    w2_ref, b2_ref, g2_ref, be2_ref,
    w3_ref, b3_ref, g3_ref, be3_ref,
    w4_ref, b4_ref, g4_ref, be4_ref,
    w5_ref, b5_ref,
    prob_ref, feat_ref,
):
    h = x_ref[...]

    # ---- feature_extractor ----
    # Linear(in, 512) + LayerNorm(512) + LeakyReLU(0.2) [+ Dropout -> identity]
    h = _leaky_relu(_layer_norm(_mm_bias(h, w1_ref, b1_ref), g1_ref[...], be1_ref[...]))
    # Linear(512, 256) + LayerNorm(256) + LeakyReLU(0.2) [+ Dropout -> identity]
    h = _leaky_relu(_layer_norm(_mm_bias(h, w2_ref, b2_ref), g2_ref[...], be2_ref[...]))
    # Linear(256, 128) + LayerNorm(128) + LeakyReLU(0.2)
    h = _leaky_relu(_layer_norm(_mm_bias(h, w3_ref, b3_ref), g3_ref[...], be3_ref[...]))

    feat_ref[...] = h  # features output (TB, 128)

    # ---- classifier ----
    # Linear(128, 64) + LayerNorm(64) + LeakyReLU(0.2)
    c = _leaky_relu(_layer_norm(_mm_bias(h, w4_ref, b4_ref), g4_ref[...], be4_ref[...]))

    # Linear(64, 1): N=1 / K=64 would underfill the MXU -> do it on the VPU
    # as a broadcast multiply + lane reduction (w5 stored as (1, 64)).
    logit = jnp.sum(c * w5_ref[...], axis=-1, keepdims=True) + b5_ref[...]

    # Numerically robust sigmoid: exp of a non-positive argument (EUP) and an
    # approximate reciprocal (also EUP) -> no inf intermediates, no VPU divide.
    z = jnp.exp(-jnp.abs(logit))
    inv = pl.reciprocal(1.0 + z, approx=True)
    prob_ref[...] = jnp.where(logit >= 0, inv, z * inv)


def discriminator_forward(x, params, *, batch_tile=BATCH_TILE):
    """x: (B, sequence_length * num_features) float32. Returns (prob, features)."""
    B, in_dim = x.shape

    # Pad batch to a multiple of the tile (>= 8 f32 sublanes, fills MXU rows).
    num_tiles = pl.cdiv(B, batch_tile)
    b_pad = num_tiles * batch_tile
    if b_pad != B:
        x = jnp.pad(x, ((0, b_pad - B), (0, 0)))

    # Cast the four big weight matrices to bf16 once (halves weight DMA/VMEM
    # and enables the native bf16 MXU path); everything else stays f32.
    kparams = list(params)
    for idx in (0, 4, 8, 12):  # w1, w2, w3, w4
        kparams[idx] = kparams[idx].astype(jnp.bfloat16)

    x_spec = pl.BlockSpec((batch_tile, in_dim), lambda i: (i, 0))
    # Full-array blocks with a constant index_map -> weights stay VMEM-resident
    # across grid steps (no per-step re-DMA).
    param_specs = [pl.BlockSpec(p.shape, lambda i: (0, 0)) for p in kparams]
    # TODO(synk): prob is a lane-width-1 (TB, 1) store; if this ever becomes a
    # high-throughput scorer, return a lane-dense logit slab instead.
    out_specs = (
        pl.BlockSpec((batch_tile, 1), lambda i: (i, 0)),
        pl.BlockSpec((batch_tile, 128), lambda i: (i, 0)),
    )

    prob, feats = pl.pallas_call(
        discriminator_kernel,
        out_shape=(
            jax.ShapeDtypeStruct((b_pad, 1), jnp.float32),
            jax.ShapeDtypeStruct((b_pad, 128), jnp.float32),
        ),
        grid=(num_tiles,),
        in_specs=[x_spec] + param_specs,
        out_specs=out_specs,
        compiler_params=pltpu.CompilerParams(
            dimension_semantics=("parallel",),  # shard batch tiles across TCs (v7x)
        ),
    )(x, *kparams)

    return prob[:B], feats[:B]


def init_params(key, in_dim):
    """Deterministic parameter init (shapes match the PyTorch module).

    Weights for the 4 hidden layers are stored (in_dim, out_dim); the final
    Linear(64, 1) weight is stored (1, 64) (PyTorch's native (out, in) layout)
    so the kernel can use a VPU multiply + lane reduction.
    """
    dims = [(in_dim, 512), (512, 256), (256, 128), (128, 64), (64, 1)]
    params = []
    for i, (d_in, d_out) in enumerate(dims):
        key, kw, kb = jax.random.split(key, 3)
        bound = 1.0 / jnp.sqrt(d_in)
        if i < 4:
            w = jax.random.uniform(kw, (d_in, d_out), jnp.float32, -bound, bound)
        else:
            w = jax.random.uniform(kw, (1, d_in), jnp.float32, -bound, bound)  # (1, 64)
        b = jax.random.uniform(kb, (1, d_out), jnp.float32, -bound, bound)
        params.append(w)
        params.append(b)
        if i < 4:  # layers 1..4 are followed by LayerNorm
            params.append(jnp.ones((1, d_out), jnp.float32))   # gamma
            params.append(jnp.zeros((1, d_out), jnp.float32))  # beta
    return params


def reference_forward(x, params):
    """Pure-JAX f32 reference for sanity check."""
    (w1, b1, g1, be1, w2, b2, g2, be2, w3, b3, g3, be3,
     w4, b4, g4, be4, w5t, b5) = params

    def ln(h, g, b):
        mu = jnp.mean(h, axis=-1, keepdims=True)
        var = jnp.mean((h - mu) ** 2, axis=-1, keepdims=True)
        return (h - mu) / jnp.sqrt(var + LN_EPS) * g + b

    def lrelu(h):
        return jnp.where(h > 0, h, LRELU_SLOPE * h)

    h = lrelu(ln(x @ w1 + b1, g1, be1))
    h = lrelu(ln(h @ w2 + b2, g2, be2))
    h = lrelu(ln(h @ w3 + b3, g3, be3))
    c = lrelu(ln(h @ w4 + b4, g4, be4))
    logit = c @ w5t.T + b5
    return jax.nn.sigmoid(logit), h


if __name__ == "__main__":
    # Small shapes consistent with the module: batch=2, seq=8, features=4.
    B, SEQ, FEAT = 2, 8, 4
    in_dim = SEQ * FEAT

    key = jax.random.PRNGKey(0)
    key, kx = jax.random.split(key)
    sequence = jax.random.normal(kx, (B, SEQ, FEAT), jnp.float32)
    x = sequence.reshape(B, -1)  # sequence.view(B, -1)

    params = init_params(key, in_dim)

    prob, feats = discriminator_forward(x, params)
    jax.block_until_ready((prob, feats))

    prob_ref, feats_ref = reference_forward(x, params)
    assert prob.shape == (B, 1) and feats.shape == (B, 128)
    # bf16 matmul operands (f32 accumulation) -> compare to the f32 reference
    # with correspondingly looser tolerances.
    assert jnp.allclose(prob, prob_ref, atol=2e-2, rtol=2e-2), (
        float(jnp.max(jnp.abs(prob - prob_ref))))
    assert jnp.allclose(feats, feats_ref, atol=6e-2, rtol=5e-2), (
        float(jnp.max(jnp.abs(feats - feats_ref))))

    print("KERNEL_OK")
</pallas_src>

<mosaic_0001>
module attributes {stable_mosaic.version = 11 : i64} {
  func.func @discriminator_kernel(%arg0: i32, %arg1: memref<128x32xf32, #tpu.memory_space<vmem>>, %arg2: memref<32x512xbf16, #tpu.memory_space<vmem>>, %arg3: memref<1x512xf32, #tpu.memory_space<vmem>>, %arg4: memref<1x512xf32, #tpu.memory_space<vmem>>, %arg5: memref<1x512xf32, #tpu.memory_space<vmem>>, %arg6: memref<512x256xbf16, #tpu.memory_space<vmem>>, %arg7: memref<1x256xf32, #tpu.memory_space<vmem>>, %arg8: memref<1x256xf32, #tpu.memory_space<vmem>>, %arg9: memref<1x256xf32, #tpu.memory_space<vmem>>, %arg10: memref<256x128xbf16, #tpu.memory_space<vmem>>, %arg11: memref<1x128xf32, #tpu.memory_space<vmem>>, %arg12: memref<1x128xf32, #tpu.memory_space<vmem>>, %arg13: memref<1x128xf32, #tpu.memory_space<vmem>>, %arg14: memref<128x64xbf16, #tpu.memory_space<vmem>>, %arg15: memref<1x64xf32, #tpu.memory_space<vmem>>, %arg16: memref<1x64xf32, #tpu.memory_space<vmem>>, %arg17: memref<1x64xf32, #tpu.memory_space<vmem>>, %arg18: memref<1x64xf32, #tpu.memory_space<vmem>>, %arg19: memref<1x1xf32, #tpu.memory_space<vmem>>, %arg20: memref<128x1xf32, #tpu.memory_space<vmem>>, %arg21: memref<128x128xf32, #tpu.memory_space<vmem>>) attributes {dimension_semantics = [#tpu.dimension_semantics<parallel>], iteration_bounds = array<i64: 1>, scalar_prefetch = 0 : i64, scratch_operands = 0 : i64, tpu.core_type = #tpu.core_type<tc>, window_params = [{transform_indices = @transform_0, window_bounds = array<i64: 128, 32>}, {pipeline_mode = #tpu.pipeline_mode<synchronous>, transform_indices = @transform_1, window_bounds = array<i64: 32, 512>}, {pipeline_mode = #tpu.pipeline_mode<synchronous>, transform_indices = @transform_2, window_bounds = array<i64: 1, 512>}, {pipeline_mode = #tpu.pipeline_mode<synchronous>, transform_indices = @transform_3, window_bounds = array<i64: 1, 512>}, {pipeline_mode = #tpu.pipeline_mode<synchronous>, transform_indices = @transform_4, window_bounds = array<i64: 1, 512>}, {pipeline_mode = #tpu.pipeline_mode<synchronous>, transform_indices = @transform_5, window_bounds = array<i64: 512, 256>}, {pipeline_mode = #tpu.pipeline_mode<synchronous>, transform_indices = @transform_6, window_bounds = array<i64: 1, 256>}, {pipeline_mode = #tpu.pipeline_mode<synchronous>, transform_indices = @transform_7, window_bounds = array<i64: 1, 256>}, {pipeline_mode = #tpu.pipeline_mode<synchronous>, transform_indices = @transform_8, window_bounds = array<i64: 1, 256>}, {pipeline_mode = #tpu.pipeline_mode<synchronous>, transform_indices = @transform_9, window_bounds = array<i64: 256, 128>}, {pipeline_mode = #tpu.pipeline_mode<synchronous>, transform_indices = @transform_10, window_bounds = array<i64: 1, 128>}, {pipeline_mode = #tpu.pipeline_mode<synchronous>, transform_indices = @transform_11, window_bounds = array<i64: 1, 128>}, {pipeline_mode = #tpu.pipeline_mode<synchronous>, transform_indices = @transform_12, window_bounds = array<i64: 1, 128>}, {pipeline_mode = #tpu.pipeline_mode<synchronous>, transform_indices = @transform_13, window_bounds = array<i64: 128, 64>}, {pipeline_mode = #tpu.pipeline_mode<synchronous>, transform_indices = @transform_14, window_bounds = array<i64: 1, 64>}, {pipeline_mode = #tpu.pipeline_mode<synchronous>, transform_indices = @transform_15, window_bounds = array<i64: 1, 64>}, {pipeline_mode = #tpu.pipeline_mode<synchronous>, transform_indices = @transform_16, window_bounds = array<i64: 1, 64>}, {pipeline_mode = #tpu.pipeline_mode<synchronous>, transform_indices = @transform_17, window_bounds = array<i64: 1, 64>}, {pipeline_mode = #tpu.pipeline_mode<synchronous>, transform_indices = @transform_18, window_bounds = array<i64: 1, 1>}, {transform_indices = @transform_19, window_bounds = array<i64: 128, 1>}, {transform_indices = @transform_20, window_bounds = array<i64: 128, 128>}]} {
    %c0 = arith.constant 0 : index
    %c0_0 = arith.constant 0 : index
    %0 = vector.load %arg1[%c0, %c0_0] : memref<128x32xf32, #tpu.memory_space<vmem>>, vector<128x32xf32>
    %1 = arith.truncf %0 : vector<128x32xf32> to vector<128x32xbf16>
    %c0_1 = arith.constant 0 : index
    %c0_2 = arith.constant 0 : index
    %2 = vector.load %arg2[%c0_1, %c0_2] : memref<32x512xbf16, #tpu.memory_space<vmem>>, vector<32x512xbf16>
    %cst = arith.constant dense<0.000000e+00> : vector<128x512xf32>
    %3 = tpu.matmul %1, %2, %cst {dimension_numbers = #tpu.dot_dimension_numbers<[1], [0], [0], [1], [0, 0, 1, 1], [], []>} : vector<128x32xbf16>, vector<32x512xbf16>, vector<128x512xf32> -> vector<128x512xf32>
    %c0_3 = arith.constant 0 : index
    %c0_4 = arith.constant 0 : index
    %4 = vector.load %arg3[%c0_3, %c0_4] : memref<1x512xf32, #tpu.memory_space<vmem>>, vector<1x512xf32>
    %5 = vector.broadcast %4 : vector<1x512xf32> to vector<128x512xf32>
    %6 = arith.addf %3, %5 : vector<128x512xf32>
    %c0_5 = arith.constant 0 : index
    %c0_6 = arith.constant 0 : index
    %7 = vector.load %arg4[%c0_5, %c0_6] : memref<1x512xf32, #tpu.memory_space<vmem>>, vector<1x512xf32>
    %c0_7 = arith.constant 0 : index
    %c0_8 = arith.constant 0 : index
    %8 = vector.load %arg5[%c0_7, %c0_8] : memref<1x512xf32, #tpu.memory_space<vmem>>, vector<1x512xf32>
    %cst_9 = arith.constant dense<0.000000e+00> : vector<128xf32>
    %9 = vector.multi_reduction <add>, %6, %cst_9 [1] : vector<128x512xf32> to vector<128xf32>
    %10 = vector.shape_cast %9 : vector<128xf32> to vector<128x1xf32>
    %11 = arith.mulf %6, %6 : vector<128x512xf32>
    %cst_10 = arith.constant dense<0.000000e+00> : vector<128xf32>
    %12 = vector.multi_reduction <add>, %11, %cst_10 [1] : vector<128x512xf32> to vector<128xf32>
    %13 = vector.shape_cast %12 : vector<128xf32> to vector<128x1xf32>
    %cst_11 = arith.constant 0.001953125 : f32
    %14 = vector.broadcast %cst_11 : f32 to vector<128x1xf32>
    %15 = arith.mulf %10, %14 : vector<128x1xf32>
    %cst_12 = arith.constant 0.001953125 : f32
    %16 = vector.broadcast %cst_12 : f32 to vector<128x1xf32>
    %17 = arith.mulf %13, %16 : vector<128x1xf32>
    %18 = arith.mulf %15, %15 : vector<128x1xf32>
    %19 = arith.subf %17, %18 : vector<128x1xf32>
    %cst_13 = arith.constant 0.000000e+00 : f32
    %20 = vector.broadcast %cst_13 : f32 to vector<128x1xf32>
    %21 = arith.maximumf %19, %20 : vector<128x1xf32>
    %22 = vector.broadcast %15 : vector<128x1xf32> to vector<128x512xf32>
    %23 = arith.subf %6, %22 : vector<128x512xf32>
    %cst_14 = arith.constant 9.99999974E-6 : f32
    %24 = vector.broadcast %cst_14 : f32 to vector<128x1xf32>
    %25 = arith.addf %21, %24 : vector<128x1xf32>
    %26 = math.rsqrt %25 : vector<128x1xf32>
    %27 = vector.broadcast %26 : vector<128x1xf32> to vector<128x512xf32>
    %28 = arith.mulf %23, %27 : vector<128x512xf32>
    %29 = vector.broadcast %7 : vector<1x512xf32> to vector<128x512xf32>
    %30 = arith.mulf %28, %29 : vector<128x512xf32>
    %31 = vector.broadcast %8 : vector<1x512xf32> to vector<128x512xf32>
    %32 = arith.addf %30, %31 : vector<128x512xf32>
    %cst_15 = arith.constant 0.000000e+00 : f32
    %33 = vector.broadcast %cst_15 : f32 to vector<128x512xf32>
    %34 = arith.cmpf ogt, %32, %33 : vector<128x512xf32>
    %cst_16 = arith.constant 2.000000e-01 : f32
    %35 = vector.broadcast %cst_16 : f32 to vector<128x512xf32>
    %36 = arith.mulf %35, %32 : vector<128x512xf32>
    %37 = arith.select %34, %32, %36 : vector<128x512xi1>, vector<128x512xf32>
    %38 = arith.truncf %37 : vector<128x512xf32> to vector<128x512xbf16>
    %c0_17 = arith.constant 0 : index
    %c0_18 = arith.constant 0 : index
    %39 = vector.load %arg6[%c0_17, %c0_18] : memref<512x256xbf16, #tpu.memory_space<vmem>>, vector<512x256xbf16>
    %cst_19 = arith.constant dense<0.000000e+00> : vector<128x256xf32>
    %40 = tpu.matmul %38, %39, %cst_19 {dimension_numbers = #tpu.dot_dimension_numbers<[1], [0], [0], [1], [0, 0, 1, 1], [], []>} : vector<128x512xbf16>, vector<512x256xbf16>, vector<128x256xf32> -> vector<128x256xf32>
    %c0_20 = arith.constant 0 : index
    %c0_21 = arith.constant 0 : index
    %41 = vector.load %arg7[%c0_20, %c0_21] : memref<1x256xf32, #tpu.memory_space<vmem>>, vector<1x256xf32>
    %42 = vector.broadcast %41 : vector<1x256xf32> to vector<128x256xf32>
    %43 = arith.addf %40, %42 : vector<128x256xf32>
    %c0_22 = arith.constant 0 : index
    %c0_23 = arith.constant 0 : index
    %44 = vector.load %arg8[%c0_22, %c0_23] : memref<1x256xf32, #tpu.memory_space<vmem>>, vector<1x256xf32>
    %c0_24 = arith.constant 0 : index
    %c0_25 = arith.constant 0 : index
    %45 = vector.load %arg9[%c0_24, %c0_25] : memref<1x256xf32, #tpu.memory_space<vmem>>, vector<1x256xf32>
    %cst_26 = arith.constant dense<0.000000e+00> : vector<128xf32>
    %46 = vector.multi_reduction <add>, %43, %cst_26 [1] : vector<128x256xf32> to vector<128xf32>
    %47 = vector.shape_cast %46 : vector<128xf32> to vector<128x1xf32>
    %48 = arith.mulf %43, %43 : vector<128x256xf32>
    %cst_27 = arith.constant dense<0.000000e+00> : vector<128xf32>
    %49 = vector.multi_reduction <add>, %48, %cst_27 [1] : vector<128x256xf32> to vector<128xf32>
    %50 = vector.shape_cast %49 : vector<128xf32> to vector<128x1xf32>
    %cst_28 = arith.constant 3.906250e-03 : f32
    %51 = vector.broadcast %cst_28 : f32 to vector<128x1xf32>
    %52 = arith.mulf %47, %51 : vector<128x1xf32>
    %cst_29 = arith.constant 3.906250e-03 : f32
    %53 = vector.broadcast %cst_29 : f32 to vector<128x1xf32>
    %54 = arith.mulf %50, %53 : vector<128x1xf32>
    %55 = arith.mulf %52, %52 : vector<128x1xf32>
    %56 = arith.subf %54, %55 : vector<128x1xf32>
    %cst_30 = arith.constant 0.000000e+00 : f32
    %57 = vector.broadcast %cst_30 : f32 to vector<128x1xf32>
    %58 = arith.maximumf %56, %57 : vector<128x1xf32>
    %59 = vector.broadcast %52 : vector<128x1xf32> to vector<128x256xf32>
    %60 = arith.subf %43, %59 : vector<128x256xf32>
    %cst_31 = arith.constant 9.99999974E-6 : f32
    %61 = vector.broadcast %cst_31 : f32 to vector<128x1xf32>
    %62 = arith.addf %58, %61 : vector<128x1xf32>
    %63 = math.rsqrt %62 : vector<128x1xf32>
    %64 = vector.broadcast %63 : vector<128x1xf32> to vector<128x256xf32>
    %65 = arith.mulf %60, %64 : vector<128x256xf32>
    %66 = vector.broadcast %44 : vector<1x256xf32> to vector<128x256xf32>
    %67 = arith.mulf %65, %66 : vector<128x256xf32>
    %68 = vector.broadcast %45 : vector<1x256xf32> to vector<128x256xf32>
    %69 = arith.addf %67, %68 : vector<128x256xf32>
    %cst_32 = arith.constant 0.000000e+00 : f32
    %70 = vector.broadcast %cst_32 : f32 to vector<128x256xf32>
    %71 = arith.cmpf ogt, %69, %70 : vector<128x256xf32>
    %cst_33 = arith.constant 2.000000e-01 : f32
    %72 = vector.broadcast %cst_33 : f32 to vector<128x256xf32>
    %73 = arith.mulf %72, %69 : vector<128x256xf32>
    %74 = arith.select %71, %69, %73 : vector<128x256xi1>, vector<128x256xf32>
    %75 = arith.truncf %74 : vector<128x256xf32> to vector<128x256xbf16>
    %c0_34 = arith.constant 0 : index
    %c0_35 = arith.constant 0 : index
    %76 = vector.load %arg10[%c0_34, %c0_35] : memref<256x128xbf16, #tpu.memory_space<vmem>>, vector<256x128xbf16>
    %cst_36 = arith.constant dense<0.000000e+00> : vector<128x128xf32>
    %77 = tpu.matmul %75, %76, %cst_36 {dimension_numbers = #tpu.dot_dimension_numbers<[1], [0], [0], [1], [0, 0, 1, 1], [], []>} : vector<128x256xbf16>, vector<256x128xbf16>, vector<128x128xf32> -> vector<128x128xf32>
    %c0_37 = arith.constant 0 : index
    %c0_38 = arith.constant 0 : index
    %78 = vector.load %arg11[%c0_37, %c0_38] : memref<1x128xf32, #tpu.memory_space<vmem>>, vector<1x128xf32>
    %79 = vector.broadcast %78 : vector<1x128xf32> to vector<128x128xf32>
    %80 = arith.addf %77, %79 : vector<128x128xf32>
    %c0_39 = arith.constant 0 : index
    %c0_40 = arith.constant 0 : index
    %81 = vector.load %arg12[%c0_39, %c0_40] : memref<1x128xf32, #tpu.memory_space<vmem>>, vector<1x128xf32>
    %c0_41 = arith.constant 0 : index
    %c0_42 = arith.constant 0 : index
    %82 = vector.load %arg13[%c0_41, %c0_42] : memref<1x128xf32, #tpu.memory_space<vmem>>, vector<1x128xf32>
    %cst_43 = arith.constant dense<0.000000e+00> : vector<128xf32>
    %83 = vector.multi_reduction <add>, %80, %cst_43 [1] : vector<128x128xf32> to vector<128xf32>
    %84 = vector.shape_cast %83 : vector<128xf32> to vector<128x1xf32>
    %85 = arith.mulf %80, %80 : vector<128x128xf32>
    %cst_44 = arith.constant dense<0.000000e+00> : vector<128xf32>
    %86 = vector.multi_reduction <add>, %85, %cst_44 [1] : vector<128x128xf32> to vector<128xf32>
    %87 = vector.shape_cast %86 : vector<128xf32> to vector<128x1xf32>
    %cst_45 = arith.constant 7.812500e-03 : f32
    %88 = vector.broadcast %cst_45 : f32 to vector<128x1xf32>
    %89 = arith.mulf %84, %88 : vector<128x1xf32>
    %cst_46 = arith.constant 7.812500e-03 : f32
    %90 = vector.broadcast %cst_46 : f32 to vector<128x1xf32>
    %91 = arith.mulf %87, %90 : vector<128x1xf32>
    %92 = arith.mulf %89, %89 : vector<128x1xf32>
    %93 = arith.subf %91, %92 : vector<128x1xf32>
    %cst_47 = arith.constant 0.000000e+00 : f32
    %94 = vector.broadcast %cst_47 : f32 to vector<128x1xf32>
    %95 = arith.maximumf %93, %94 : vector<128x1xf32>
    %96 = vector.broadcast %89 : vector<128x1xf32> to vector<128x128xf32>
    %97 = arith.subf %80, %96 : vector<128x128xf32>
    %cst_48 = arith.constant 9.99999974E-6 : f32
    %98 = vector.broadcast %cst_48 : f32 to vector<128x1xf32>
    %99 = arith.addf %95, %98 : vector<128x1xf32>
    %100 = math.rsqrt %99 : vector<128x1xf32>
    %101 = vector.broadcast %100 : vector<128x1xf32> to vector<128x128xf32>
    %102 = arith.mulf %97, %101 : vector<128x128xf32>
    %103 = vector.broadcast %81 : vector<1x128xf32> to vector<128x128xf32>
    %104 = arith.mulf %102, %103 : vector<128x128xf32>
    %105 = vector.broadcast %82 : vector<1x128xf32> to vector<128x128xf32>
    %106 = arith.addf %104, %105 : vector<128x128xf32>
    %cst_49 = arith.constant 0.000000e+00 : f32
    %107 = vector.broadcast %cst_49 : f32 to vector<128x128xf32>
    %108 = arith.cmpf ogt, %106, %107 : vector<128x128xf32>
    %cst_50 = arith.constant 2.000000e-01 : f32
    %109 = vector.broadcast %cst_50 : f32 to vector<128x128xf32>
    %110 = arith.mulf %109, %106 : vector<128x128xf32>
    %111 = arith.select %108, %106, %110 : vector<128x128xi1>, vector<128x128xf32>
    %c0_51 = arith.constant 0 : index
    %c0_52 = arith.constant 0 : index
    %112 = vector.load %arg21[%c0_51, %c0_52] : memref<128x128xf32, #tpu.memory_space<vmem>>, vector<128x128xf32>
    tpu.vector_store %arg21[%c0_51, %c0_52], %111 {strides = array<i32>} : memref<128x128xf32, #tpu.memory_space<vmem>>, vector<128x128xf32>,
    %113 = arith.truncf %111 : vector<128x128xf32> to vector<128x128xbf16>
    %c0_53 = arith.constant 0 : index
    %c0_54 = arith.constant 0 : index
    %114 = vector.load %arg14[%c0_53, %c0_54] : memref<128x64xbf16, #tpu.memory_space<vmem>>, vector<128x64xbf16>
    %cst_55 = arith.constant dense<0.000000e+00> : vector<128x64xf32>
    %115 = tpu.matmul %113, %114, %cst_55 {dimension_numbers = #tpu.dot_dimension_numbers<[1], [0], [0], [1], [0, 0, 1, 1], [], []>} : vector<128x128xbf16>, vector<128x64xbf16>, vector<128x64xf32> -> vector<128x64xf32>
    %c0_56 = arith.constant 0 : index
    %c0_57 = arith.constant 0 : index
    %116 = vector.load %arg15[%c0_56, %c0_57] : memref<1x64xf32, #tpu.memory_space<vmem>>, vector<1x64xf32>
    %117 = vector.broadcast %116 : vector<1x64xf32> to vector<128x64xf32>
    %118 = arith.addf %115, %117 : vector<128x64xf32>
    %c0_58 = arith.constant 0 : index
    %c0_59 = arith.constant 0 : index
    %119 = vector.load %arg16[%c0_58, %c0_59] : memref<1x64xf32, #tpu.memory_space<vmem>>, vector<1x64xf32>
    %c0_60 = arith.constant 0 : index
    %c0_61 = arith.constant 0 : index
    %120 = vector.load %arg17[%c0_60, %c0_61] : memref<1x64xf32, #tpu.memory_space<vmem>>, vector<1x64xf32>
    %cst_62 = arith.constant dense<0.000000e+00> : vector<128xf32>
    %121 = vector.multi_reduction <add>, %118, %cst_62 [1] : vector<128x64xf32> to vector<128xf32>
    %122 = vector.shape_cast %121 : vector<128xf32> to vector<128x1xf32>
    %123 = arith.mulf %118, %118 : vector<128x64xf32>
    %cst_63 = arith.constant dense<0.000000e+00> : vector<128xf32>
    %124 = vector.multi_reduction <add>, %123, %cst_63 [1] : vector<128x64xf32> to vector<128xf32>
    %125 = vector.shape_cast %124 : vector<128xf32> to vector<128x1xf32>
    %cst_64 = arith.constant 1.562500e-02 : f32
    %126 = vector.broadcast %cst_64 : f32 to vector<128x1xf32>
    %127 = arith.mulf %122, %126 : vector<128x1xf32>
    %cst_65 = arith.constant 1.562500e-02 : f32
    %128 = vector.broadcast %cst_65 : f32 to vector<128x1xf32>
    %129 = arith.mulf %125, %128 : vector<128x1xf32>
    %130 = arith.mulf %127, %127 : vector<128x1xf32>
    %131 = arith.subf %129, %130 : vector<128x1xf32>
    %cst_66 = arith.constant 0.000000e+00 : f32
    %132 = vector.broadcast %cst_66 : f32 to vector<128x1xf32>
    %133 = arith.maximumf %131, %132 : vector<128x1xf32>
    %134 = vector.broadcast %127 : vector<128x1xf32> to vector<128x64xf32>
    %135 = arith.subf %118, %134 : vector<128x64xf32>
    %cst_67 = arith.constant 9.99999974E-6 : f32
    %136 = vector.broadcast %cst_67 : f32 to vector<128x1xf32>
    %137 = arith.addf %133, %136 : vector<128x1xf32>
    %138 = math.rsqrt %137 : vector<128x1xf32>
    %139 = vector.broadcast %138 : vector<128x1xf32> to vector<128x64xf32>
    %140 = arith.mulf %135, %139 : vector<128x64xf32>
    %141 = vector.broadcast %119 : vector<1x64xf32> to vector<128x64xf32>
    %142 = arith.mulf %140, %141 : vector<128x64xf32>
    %143 = vector.broadcast %120 : vector<1x64xf32> to vector<128x64xf32>
    %144 = arith.addf %142, %143 : vector<128x64xf32>
    %cst_68 = arith.constant 0.000000e+00 : f32
    %145 = vector.broadcast %cst_68 : f32 to vector<128x64xf32>
    %146 = arith.cmpf ogt, %144, %145 : vector<128x64xf32>
    %cst_69 = arith.constant 2.000000e-01 : f32
    %147 = vector.broadcast %cst_69 : f32 to vector<128x64xf32>
    %148 = arith.mulf %147, %144 : vector<128x64xf32>
    %149 = arith.select %146, %144, %148 : vector<128x64xi1>, vector<128x64xf32>
    %c0_70 = arith.constant 0 : index
    %c0_71 = arith.constant 0 : index
    %150 = vector.load %arg18[%c0_70, %c0_71] : memref<1x64xf32, #tpu.memory_space<vmem>>, vector<1x64xf32>
    %151 = vector.broadcast %150 : vector<1x64xf32> to vector<128x64xf32>
    %152 = arith.mulf %149, %151 : vector<128x64xf32>
    %cst_72 = arith.constant dense<0.000000e+00> : vector<128xf32>
    %153 = vector.multi_reduction <add>, %152, %cst_72 [1] : vector<128x64xf32> to vector<128xf32>
    %154 = vector.shape_cast %153 : vector<128xf32> to vector<128x1xf32>
    %c0_73 = arith.constant 0 : index
    %c0_74 = arith.constant 0 : index
    %155 = vector.load %arg19[%c0_73, %c0_74] : memref<1x1xf32, #tpu.memory_space<vmem>>, vector<1x1xf32>
    %156 = vector.broadcast %155 : vector<1x1xf32> to vector<128x1xf32>
    %157 = arith.addf %154, %156 : vector<128x1xf32>
    %158 = math.absf %157 : vector<128x1xf32>
    %cst_75 = arith.constant 0.000000e+00 : f32
    %159 = vector.broadcast %cst_75 : f32 to vector<128x1xf32>
    %160 = arith.subf %159, %158 : vector<128x1xf32>
    %161 = math.exp %160 : vector<128x1xf32>
    %cst_76 = arith.constant 1.000000e+00 : f32
    %162 = vector.broadcast %cst_76 : f32 to vector<128x1xf32>
    %163 = arith.addf %162, %161 : vector<128x1xf32>
    %164 = tpu.reciprocal %163 {approx = true} : vector<128x1xf32> -> vector<128x1xf32>
    %cst_77 = arith.constant 0.000000e+00 : f32
    %165 = vector.broadcast %cst_77 : f32 to vector<128x1xf32>
    %166 = arith.cmpf oge, %157, %165 : vector<128x1xf32>
    %167 = arith.mulf %161, %164 : vector<128x1xf32>
    %168 = arith.select %166, %164, %167 : vector<128x1xi1>, vector<128x1xf32>
    %c0_78 = arith.constant 0 : index
    %c0_79 = arith.constant 0 : index
    %169 = vector.load %arg20[%c0_78, %c0_79] : memref<128x1xf32, #tpu.memory_space<vmem>>, vector<128x1xf32>
    tpu.vector_store %arg20[%c0_78, %c0_79], %168 {strides = array<i32>} : memref<128x1xf32, #tpu.memory_space<vmem>>, vector<128x1xf32>,
    return
  }
  func.func @transform_0(%arg0: i32) -> (i32, i32) {
    %c0_i32 = arith.constant 0 : i32
    %c0_i32_0 = arith.constant 0 : i32
    return %arg0, %c0_i32 : i32, i32
  }
  func.func @transform_1(%arg0: i32) -> (i32, i32) {
    %c0_i32 = arith.constant 0 : i32
    %c0_i32_0 = arith.constant 0 : i32
    %c0_i32_1 = arith.constant 0 : i32
    return %c0_i32, %c0_i32_0 : i32, i32
  }
  func.func @transform_2(%arg0: i32) -> (i32, i32) {
    %c0_i32 = arith.constant 0 : i32
    %c0_i32_0 = arith.constant 0 : i32
    %c0_i32_1 = arith.constant 0 : i32
    return %c0_i32, %c0_i32_0 : i32, i32
  }
  func.func @transform_3(%arg0: i32) -> (i32, i32) {
    %c0_i32 = arith.constant 0 : i32
    %c0_i32_0 = arith.constant 0 : i32
    %c0_i32_1 = arith.constant 0 : i32
    return %c0_i32, %c0_i32_0 : i32, i32
  }
  func.func @transform_4(%arg0: i32) -> (i32, i32) {
    %c0_i32 = arith.constant 0 : i32
    %c0_i32_0 = arith.constant 0 : i32
    %c0_i32_1 = arith.constant 0 : i32
    return %c0_i32, %c0_i32_0 : i32, i32
  }
  func.func @transform_5(%arg0: i32) -> (i32, i32) {
    %c0_i32 = arith.constant 0 : i32
    %c0_i32_0 = arith.constant 0 : i32
    %c0_i32_1 = arith.constant 0 : i32
    return %c0_i32, %c0_i32_0 : i32, i32
  }
  func.func @transform_6(%arg0: i32) -> (i32, i32) {
    %c0_i32 = arith.constant 0 : i32
    %c0_i32_0 = arith.constant 0 : i32
    %c0_i32_1 = arith.constant 0 : i32
    return %c0_i32, %c0_i32_0 : i32, i32
  }
  func.func @transform_7(%arg0: i32) -> (i32, i32) {
    %c0_i32 = arith.constant 0 : i32
    %c0_i32_0 = arith.constant 0 : i32
    %c0_i32_1 = arith.constant 0 : i32
    return %c0_i32, %c0_i32_0 : i32, i32
  }
  func.func @transform_8(%arg0: i32) -> (i32, i32) {
    %c0_i32 = arith.constant 0 : i32
    %c0_i32_0 = arith.constant 0 : i32
    %c0_i32_1 = arith.constant 0 : i32
    return %c0_i32, %c0_i32_0 : i32, i32
  }
  func.func @transform_9(%arg0: i32) -> (i32, i32) {
    %c0_i32 = arith.constant 0 : i32
    %c0_i32_0 = arith.constant 0 : i32
    %c0_i32_1 = arith.constant 0 : i32
    return %c0_i32, %c0_i32_0 : i32, i32
  }
  func.func @transform_10(%arg0: i32) -> (i32, i32) {
    %c0_i32 = arith.constant 0 : i32
    %c0_i32_0 = arith.constant 0 : i32
    %c0_i32_1 = arith.constant 0 : i32
    return %c0_i32, %c0_i32_0 : i32, i32
  }
  func.func @transform_11(%arg0: i32) -> (i32, i32) {
    %c0_i32 = arith.constant 0 : i32
    %c0_i32_0 = arith.constant 0 : i32
    %c0_i32_1 = arith.constant 0 : i32
    return %c0_i32, %c0_i32_0 : i32, i32
  }
  func.func @transform_12(%arg0: i32) -> (i32, i32) {
    %c0_i32 = arith.constant 0 : i32
    %c0_i32_0 = arith.constant 0 : i32
    %c0_i32_1 = arith.constant 0 : i32
    return %c0_i32, %c0_i32_0 : i32, i32
  }
  func.func @transform_13(%arg0: i32) -> (i32, i32) {
    %c0_i32 = arith.constant 0 : i32
    %c0_i32_0 = arith.constant 0 : i32
    %c0_i32_1 = arith.constant 0 : i32
    return %c0_i32, %c0_i32_0 : i32, i32
  }
  func.func @transform_14(%arg0: i32) -> (i32, i32) {
    %c0_i32 = arith.constant 0 : i32
    %c0_i32_0 = arith.constant 0 : i32
    %c0_i32_1 = arith.constant 0 : i32
    return %c0_i32, %c0_i32_0 : i32, i32
  }
  func.func @transform_15(%arg0: i32) -> (i32, i32) {
    %c0_i32 = arith.constant 0 : i32
    %c0_i32_0 = arith.constant 0 : i32
    %c0_i32_1 = arith.constant 0 : i32
    return %c0_i32, %c0_i32_0 : i32, i32
  }
  func.func @transform_16(%arg0: i32) -> (i32, i32) {
    %c0_i32 = arith.constant 0 : i32
    %c0_i32_0 = arith.constant 0 : i32
    %c0_i32_1 = arith.constant 0 : i32
    return %c0_i32, %c0_i32_0 : i32, i32
  }
  func.func @transform_17(%arg0: i32) -> (i32, i32) {
    %c0_i32 = arith.constant 0 : i32
    %c0_i32_0 = arith.constant 0 : i32
    %c0_i32_1 = arith.constant 0 : i32
    return %c0_i32, %c0_i32_0 : i32, i32
  }
  func.func @transform_18(%arg0: i32) -> (i32, i32) {
    %c0_i32 = arith.constant 0 : i32
    %c0_i32_0 = arith.constant 0 : i32
    %c0_i32_1 = arith.constant 0 : i32
    return %c0_i32, %c0_i32_0 : i32, i32
  }
  func.func @transform_19(%arg0: i32) -> (i32, i32) {
    %c0_i32 = arith.constant 0 : i32
    %c0_i32_0 = arith.constant 0 : i32
    return %arg0, %c0_i32 : i32, i32
  }
  func.func @transform_20(%arg0: i32) -> (i32, i32) {
    %c0_i32 = arith.constant 0 : i32
    %c0_i32_0 = arith.constant 0 : i32
    return %arg0, %c0_i32 : i32, i32
  }
}

</mosaic_0001>

<llo_original>
// kernel: tpu_custom_call.1
$region0: #{tpu_custom_call.1}
  #allocation0 [shape = 'u32[]', space=smem, size = 0x4, offset = 0x4, fixed_abs, tag = 'smem constant byte address 0x4 - core index']
  #allocation1 [shape = 'u32[144,128]{1,0:T(1,128)}', space=vmem, size = 0x12000, scoped, tag = 'internal scratch']
  #allocation2 [shape = 'f32[1,1]{1,0:T(1,128)S(1)}', space=vmem, size = 0x200, scoped, tag = 'scoped memory for tpu_custom_call.1']
  %s0 = inlined_call_operand.vmem [shape: f32[128,32], index: 0, kind: input, shape index: {}]
  %s1 = inlined_call_operand.vmem [shape: bf16[32,512], index: 1, kind: input, shape index: {}]
  %s2 = inlined_call_operand.vmem [shape: f32[1,512], index: 2, kind: input, shape index: {}]
  %s3 = inlined_call_operand.vmem [shape: f32[1,512], index: 3, kind: input, shape index: {}]
  %s4 = inlined_call_operand.vmem [shape: f32[1,512], index: 4, kind: input, shape index: {}]
  %s5 = inlined_call_operand.hbm [shape: bf16[512,256], index: 5, kind: input, shape index: {}]
  %s6 = inlined_call_operand.vmem [shape: f32[1,256], index: 6, kind: input, shape index: {}]
  %s7 = inlined_call_operand.vmem [shape: f32[1,256], index: 7, kind: input, shape index: {}]
  %s8 = inlined_call_operand.vmem [shape: f32[1,256], index: 8, kind: input, shape index: {}]
  %s9 = inlined_call_operand.vmem [shape: bf16[256,128], index: 9, kind: input, shape index: {}]
  %s10 = inlined_call_operand.vmem [shape: f32[1,128], index: 10, kind: input, shape index: {}]
  %s11 = inlined_call_operand.vmem [shape: f32[1,128], index: 11, kind: input, shape index: {}]
  %s12 = inlined_call_operand.vmem [shape: f32[1,128], index: 12, kind: input, shape index: {}]
  %s13 = inlined_call_operand.vmem [shape: bf16[128,64], index: 13, kind: input, shape index: {}]
  %s14 = inlined_call_operand.vmem [shape: f32[1,64], index: 14, kind: input, shape index: {}]
  %s15 = inlined_call_operand.vmem [shape: f32[1,64], index: 15, kind: input, shape index: {}]
  %s16 = inlined_call_operand.vmem [shape: f32[1,64], index: 16, kind: input, shape index: {}]
  %s17 = inlined_call_operand.vmem [shape: f32[1,64], index: 17, kind: input, shape index: {}]
  %s18 = inlined_call_operand.<no memory space> [shape: f32[1,1], index: 18, kind: input, shape index: {}]
  %s19 = inlined_call_operand.vmem [shape: f32[128,1], index: 19, kind: output, shape index: {0}]
  %s20 = inlined_call_operand.hbm [shape: f32[128,128], index: 20, kind: output, shape index: {1}]
  %21 = xla_tuple %s19, %s20
  %s22 = sld [smem:[#allocation0]]
  $region98: #{tpu_custom_call.1} parent=0
    _
  %s24 = ssub.s32 1, %s22
  %s25 = scalar_select 0, %s24, %s22
  %v26 = vstv %s18
  %27 = vst [vmem:[#allocation2] sm:$0x1] %v26
  $region1: #{tpu_custom_call.1} parent=0
    #allocation3 [shape = 'u8[262144]{0}', space=vmem, size = 0x40000, scoped, tag = 'input window, operand 5, single buffered']
    #allocation4 [shape = 's32[1]{0}', space=sflag, size = 0x4, scoped, tag = 'scoped memory for tpu_custom_call.1']
    #allocation5 [shape = 's32[1]{0}', space=sflag, size = 0x4, scoped, tag = 'scoped memory for tpu_custom_call.1']
    #allocation6 [shape = 'u8[65536]{0}', space=vmem, size = 0x10000, scoped, tag = 'output window, operand 1, single buffered']
    %28 = vsyncpa [#allocation4], 0
    %29 = vsyncpa [#allocation5], 0
    // Predicated region
    $region2: #{tpu_custom_call.1} parent=1 // pred_check
      _
    $region3: #{tpu_custom_call.1} parent=1 // pred_check_branch
      %31 = sbr.rel (0) target = $region5
    $region4: #{tpu_custom_call.1} parent=1 // pred_region
      _
    $region5: #{tpu_custom_call.1} parent=1 // pred_fallthru
      _
    // Predicated region
    $region6: #{tpu_custom_call.1} parent=1 // pred_check
      _
    $region7: #{tpu_custom_call.1} parent=1 // pred_check_branch
      %33 = sbr.rel (0) target = $region9
    $region8: #{tpu_custom_call.1} parent=1 // pred_region
      _
    $region9: #{tpu_custom_call.1} parent=1 // pred_fallthru
      _
    // Predicated region
    $region10: #{tpu_custom_call.1} parent=1 // pred_check
      _
    $region11: #{tpu_custom_call.1} parent=1 // pred_check_branch
      %35 = sbr.rel (0) target = $region13
    $region12: #{tpu_custom_call.1} parent=1 // pred_region
      _
    $region13: #{tpu_custom_call.1} parent=1 // pred_fallthru
      _
    // Predicated region
    $region14: #{tpu_custom_call.1} parent=1 // pred_check
      _
    $region15: #{tpu_custom_call.1} parent=1 // pred_check_branch
      %37 = sbr.rel (0) target = $region17
    $region16: #{tpu_custom_call.1} parent=1 // pred_region
      _
    $region17: #{tpu_custom_call.1} parent=1 // pred_fallthru
      _
    // Predicated region
    $region18: #{tpu_custom_call.1} parent=1 // pred_check
      _
    $region19: #{tpu_custom_call.1} parent=1 // pred_check_branch
      %39 = sbr.rel (0) target = $region21
    $region20: #{tpu_custom_call.1} parent=1 // pred_region
      _
    $region21: #{tpu_custom_call.1} parent=1 // pred_fallthru
      _
    // Predicated region
    $region22: #{tpu_custom_call.1} parent=1 // pred_check
      _
    $region23: #{tpu_custom_call.1} parent=1 // pred_check_branch
      %41 = sbr.rel (0) target = $region25
    $region24: #{tpu_custom_call.1} parent=1 // pred_region
      %s43 = ssub.s32 8192, 8192
      %44 = vsyncadd [#allocation4], %s43
      %s45 = sshll.u32 [#allocation3], 4
      %s46 = int_to_ptr.vmem [resolvable:$true] %s45
      %51 = dma.hbm_to_vmem [thread:$0]  %s5, 8192, %s46, [#allocation4], 128, 128, 8
    $region25: #{tpu_custom_call.1} parent=1 // pred_fallthru
      _
    // Predicated region
    $region26: #{tpu_custom_call.1} parent=1 // pred_check
      _
    $region27: #{tpu_custom_call.1} parent=1 // pred_check_branch
      %53 = sbr.rel (0) target = $region29
    $region28: #{tpu_custom_call.1} parent=1 // pred_region
      _
    $region29: #{tpu_custom_call.1} parent=1 // pred_fallthru
      _
    // Predicated region
    $region30: #{tpu_custom_call.1} parent=1 // pred_check
      _
    $region31: #{tpu_custom_call.1} parent=1 // pred_check_branch
      %55 = sbr.rel (0) target = $region33
    $region32: #{tpu_custom_call.1} parent=1 // pred_region
      _
    $region33: #{tpu_custom_call.1} parent=1 // pred_fallthru
      _
    // Predicated region
    $region34: #{tpu_custom_call.1} parent=1 // pred_check
      _
    $region35: #{tpu_custom_call.1} parent=1 // pred_check_branch
      %57 = sbr.rel (0) target = $region37
    $region36: #{tpu_custom_call.1} parent=1 // pred_region
      _
    $region37: #{tpu_custom_call.1} parent=1 // pred_fallthru
      _
    // Predicated region
    $region38: #{tpu_custom_call.1} parent=1 // pred_check
      _
    $region39: #{tpu_custom_call.1} parent=1 // pred_check_branch
      %59 = sbr.rel (0) target = $region41
    $region40: #{tpu_custom_call.1} parent=1 // pred_region
      _
    $region41: #{tpu_custom_call.1} parent=1 // pred_fallthru
      _
    // Predicated region
    $region42: #{tpu_custom_call.1} parent=1 // pred_check
      _
    $region43: #{tpu_custom_call.1} parent=1 // pred_check_branch
      %61 = sbr.rel (0) target = $region45
    $region44: #{tpu_custom_call.1} parent=1 // pred_region
      _
    $region45: #{tpu_custom_call.1} parent=1 // pred_fallthru
      _
    // Predicated region
    $region46: #{tpu_custom_call.1} parent=1 // pred_check
      _
    $region47: #{tpu_custom_call.1} parent=1 // pred_check_branch
      %63 = sbr.rel (0) target = $region49
    $region48: #{tpu_custom_call.1} parent=1 // pred_region
      _
    $region49: #{tpu_custom_call.1} parent=1 // pred_fallthru
      _
    // Predicated region
    $region50: #{tpu_custom_call.1} parent=1 // pred_check
      _
    $region51: #{tpu_custom_call.1} parent=1 // pred_check_branch
      %65 = sbr.rel (0) target = $region53
    $region52: #{tpu_custom_call.1} parent=1 // pred_region
      _
    $region53: #{tpu_custom_call.1} parent=1 // pred_fallthru
      _
    // Predicated region
    $region54: #{tpu_custom_call.1} parent=1 // pred_check
      _
    $region55: #{tpu_custom_call.1} parent=1 // pred_check_branch
      %67 = sbr.rel (0) target = $region57
    $region56: #{tpu_custom_call.1} parent=1 // pred_region
      _
    $region57: #{tpu_custom_call.1} parent=1 // pred_fallthru
      _
    // Predicated region
    $region58: #{tpu_custom_call.1} parent=1 // pred_check
      _
    $region59: #{tpu_custom_call.1} parent=1 // pred_check_branch
      %69 = sbr.rel (0) target = $region61
    $region60: #{tpu_custom_call.1} parent=1 // pred_region
      _
    $region61: #{tpu_custom_call.1} parent=1 // pred_fallthru
      _
    // Predicated region
    $region62: #{tpu_custom_call.1} parent=1 // pred_check
      _
    $region63: #{tpu_custom_call.1} parent=1 // pred_check_branch
      %71 = sbr.rel (0) target = $region65
    $region64: #{tpu_custom_call.1} parent=1 // pred_region
      _
    $region65: #{tpu_custom_call.1} parent=1 // pred_fallthru
      _
    // Predicated region
    $region66: #{tpu_custom_call.1} parent=1 // pred_check
      _
    $region67: #{tpu_custom_call.1} parent=1 // pred_check_branch
      %73 = sbr.rel (0) target = $region69
    $region68: #{tpu_custom_call.1} parent=1 // pred_region
      _
    $region69: #{tpu_custom_call.1} parent=1 // pred_fallthru
      _
    // Predicated region
    $region70: #{tpu_custom_call.1} parent=1 // pred_check
      _
    $region71: #{tpu_custom_call.1} parent=1 // pred_check_branch
      %75 = sbr.rel (0) target = $region73
    $region72: #{tpu_custom_call.1} parent=1 // pred_region
      _
    $region73: #{tpu_custom_call.1} parent=1 // pred_fallthru
      _
    // Predicated region
    $region74: #{tpu_custom_call.1} parent=1 // pred_check
      _
    $region75: #{tpu_custom_call.1} parent=1 // pred_check_branch
      %77 = sbr.rel (0) target = $region77
    $region76: #{tpu_custom_call.1} parent=1 // pred_region
      _
    $region77: #{tpu_custom_call.1} parent=1 // pred_fallthru
      _
    // Predicated region
    $region78: #{tpu_custom_call.1} parent=1 // pred_check
      _
    $region79: #{tpu_custom_call.1} parent=1 // pred_check_branch
      %79 = sbr.rel (0) target = $region81
    $region80: #{tpu_custom_call.1} parent=1 // pred_region
      %80 = dma.done [#allocation4], 8192
    $region81: #{tpu_custom_call.1} parent=1 // pred_fallthru
      _
    %v82 = vld [vmem:[%s0] sm:$0xff]
    %v83 = vld [vmem:[%s0 + $0x8] sm:$0xff]
    %v84 = vld [vmem:[%s0 + $0x10] sm:$0xff]
    %v85 = vld [vmem:[%s0 + $0x18] sm:$0xff]
    %v86 = vld [vmem:[%s0 + $0x20] sm:$0xff]
    %v87 = vld [vmem:[%s0 + $0x28] sm:$0xff]
    %v88 = vld [vmem:[%s0 + $0x30] sm:$0xff]
    %v89 = vld [vmem:[%s0 + $0x38] sm:$0xff]
    %v90 = vld [vmem:[%s0 + $0x40] sm:$0xff]
    %v91 = vld [vmem:[%s0 + $0x48] sm:$0xff]
    %v92 = vld [vmem:[%s0 + $0x50] sm:$0xff]
    %v93 = vld [vmem:[%s0 + $0x58] sm:$0xff]
    %v94 = vld [vmem:[%s0 + $0x60] sm:$0xff]
    %v95 = vld [vmem:[%s0 + $0x68] sm:$0xff]
    %v96 = vld [vmem:[%s0 + $0x70] sm:$0xff]
    %v97 = vld [vmem:[%s0 + $0x78] sm:$0xff]
    %v98 = vpack.c.bf16 %v83, %v82
    %v99 = vpack.c.bf16 %v85, %v84
    %v100 = vpack.c.bf16 %v87, %v86
    %v101 = vpack.c.bf16 %v89, %v88
    %v102 = vpack.c.bf16 %v91, %v90
    %v103 = vpack.c.bf16 %v93, %v92
    %v104 = vpack.c.bf16 %v95, %v94
    %v105 = vpack.c.bf16 %v97, %v96
    %v106 = vld [vmem:[%s1] sm:$0xff]
    %v107 = vld [vmem:[%s1 + $0x8] sm:$0xff]
    %v108 = vld [vmem:[%s1 + $0x10] sm:$0xff]
    %v109 = vld [vmem:[%s1 + $0x18] sm:$0xff]
    %v110 = vld [vmem:[%s1 + $0x20] sm:$0xff]
    %v111 = vld [vmem:[%s1 + $0x28] sm:$0xff]
    %v112 = vld [vmem:[%s1 + $0x30] sm:$0xff]
    %v113 = vld [vmem:[%s1 + $0x38] sm:$0xff]
    %v114 = vld [vmem:[%s2] sm:$0xf]
    %v116 = vlaneseq
    %v117 = vshrl.u32 %v116, 7
    %v118 = vsub.s32 0, %v117
    %v119 = vrot.slane %v114, %v118
    %v120 = vlaneseq
    %v121 = vshrl.u32 %v120, 7
    %v122 = vsub.s32 1, %v121
    %v123 = vrot.slane %v114, %v122
    %v124 = vlaneseq
    %v125 = vshrl.u32 %v124, 7
    %v126 = vsub.s32 2, %v125
    %v127 = vrot.slane %v114, %v126
    %v128 = vlaneseq
    %v129 = vshrl.u32 %v128, 7
    %v130 = vsub.s32 3, %v129
    %v131 = vrot.slane %v114, %v130
    %v144 = vunpack.c.l.b16 %v106
    %v145 = vunpack.c.h.b16 %v106
    %v146 = vunpack.c.l.b16 %v107
    %v147 = vunpack.c.h.b16 %v107
    %v148 = vunpack.c.l.b16 %v108
    %v149 = vunpack.c.h.b16 %v108
    %v150 = vunpack.c.l.b16 %v109
    %v151 = vunpack.c.h.b16 %v109
    %v152 = vunpack.c.l.b16 %v110
    %v153 = vunpack.c.h.b16 %v110
    %v154 = vunpack.c.l.b16 %v111
    %v155 = vunpack.c.h.b16 %v111
    %v156 = vunpack.c.l.b16 %v112
    %v157 = vunpack.c.h.b16 %v112
    %v158 = vunpack.c.l.b16 %v113
    %v159 = vunpack.c.h.b16 %v113
    %v160 = vpack.c.b16 %v148, %v144
    %v161 = vpack.c.b16 %v149, %v145
    %v162 = vpack.c.b16 %v150, %v146
    %v163 = vpack.c.b16 %v151, %v147
    %v164 = vpack.c.b16 %v156, %v152
    %v165 = vpack.c.b16 %v157, %v153
    %v166 = vpack.c.b16 %v158, %v154
    %v167 = vpack.c.b16 %v159, %v155
    %vm176 = vcmask 261120
    %v178 = vsel %vm176, %v98, 0
    %v181 = vsel %vm176, %v99, 0
    %v184 = vsel %vm176, %v100, 0
    %v187 = vsel %vm176, %v101, 0
    %v190 = vsel %vm176, %v102, 0
    %v193 = vsel %vm176, %v103, 0
    %v196 = vsel %vm176, %v104, 0
    %v199 = vsel %vm176, %v105, 0
    %201 = vmatprep.subr.bf16.mxu0 0
    %202 = vmatpush1.bf16.msra.mxu0 0
    %203 = vmatprep.subr.bf16.mxu0 0
    %204 = vmatpush1.bf16.msra.mxu0 0
    %205 = vmatprep.subr.bf16.mxu0 0
    %206 = vmatpush1.bf16.msra.mxu0 0
    %207 = vmatprep.subr.bf16.mxu0 0
    %208 = vmatpush1.bf16.msra.mxu0 0
    %209 = vmatprep.subr.bf16.mxu0 0
    %210 = vmatpush1.bf16.msra.mxu0 0
    %211 = vmatprep.subr.bf16.mxu0 0
    %212 = vmatpush1.bf16.msra.mxu0 0
    %213 = vmatprep.subr.bf16.mxu0 %v165
    %214 = vmatpush1.bf16.msra.mxu0 %v164
    %215 = vmatprep.subr.bf16.mxu0 %v161
    %216 = vmatpush1.bf16.msra.mxu0 %v160
    %217 = vmatprep.subr.bf16.mxu0 0
    %218 = vmatpush2.bf16.msra.mxu0 0
    %219 = vmatprep.subr.bf16.mxu0 0
    %220 = vmatpush2.bf16.msra.mxu0 0
    %221 = vmatprep.subr.bf16.mxu0 0
    %222 = vmatpush2.bf16.msra.mxu0 0
    %223 = vmatprep.subr.bf16.mxu0 0
    %224 = vmatpush2.bf16.msra.mxu0 0
    %225 = vmatprep.subr.bf16.mxu0 0
    %226 = vmatpush2.bf16.msra.mxu0 0
    %227 = vmatprep.subr.bf16.mxu0 0
    %228 = vmatpush2.bf16.msra.mxu0 0
    %229 = vmatprep.subr.bf16.mxu0 0
    %230 = vmatpush2.bf16.msra.mxu0 0
    %231 = vmatprep.subr.bf16.mxu0 0
    %232 = vmatpush2.bf16.msra.mxu0 0
    %233 = vmatprep.mubr.bf16.mxu0 0
    %234 = vmatmul.mubr.bf16.gmra.mxu0 %v178
    %v235 = vpop.f32.mrf.mxu0
    %v236 = vadd.f32 %v119, %v235
    %v237 = vpop.f32.mrf.mxu0
    %v238 = vadd.f32 %v123, %v237
    %v239 = vpop.f32.mrf.mxu0
    %v240 = vadd.f32 %v119, %v239
    %v241 = vpop.f32.mrf.mxu0
    %v242 = vadd.f32 %v123, %v241
    %243 = vmatprep.mubr.bf16.mxu0 0
    %244 = vmatmul.mubr.bf16.gmra.mxu0 %v181
    %v245 = vpop.f32.mrf.mxu0
    %v246 = vadd.f32 %v119, %v245
    %v247 = vpop.f32.mrf.mxu0
    %v248 = vadd.f32 %v123, %v247
    %v249 = vpop.f32.mrf.mxu0
    %v250 = vadd.f32 %v119, %v249
    %v251 = vpop.f32.mrf.mxu0
    %v252 = vadd.f32 %v123, %v251
    %253 = vmatprep.mubr.bf16.mxu0 0
    %254 = vmatmul.mubr.bf16.gmra.mxu0 %v184
    %v255 = vpop.f32.mrf.mxu0
    %v256 = vadd.f32 %v119, %v255
    %v257 = vpop.f32.mrf.mxu0
    %v258 = vadd.f32 %v123, %v257
    %v259 = vpop.f32.mrf.mxu0
    %v260 = vadd.f32 %v119, %v259
    %v261 = vpop.f32.mrf.mxu0
    %v262 = vadd.f32 %v123, %v261
    %263 = vmatprep.mubr.bf16.mxu0 0
    %264 = vmatmul.mubr.bf16.gmra.mxu0 %v187
    %v265 = vpop.f32.mrf.mxu0
    %v266 = vadd.f32 %v119, %v265
    %v267 = vpop.f32.mrf.mxu0
    %v268 = vadd.f32 %v123, %v267
    %v269 = vpop.f32.mrf.mxu0
    %v270 = vadd.f32 %v119, %v269
    %v271 = vpop.f32.mrf.mxu0
    %v272 = vadd.f32 %v123, %v271
    %273 = vmatprep.mubr.bf16.mxu0 0
    %274 = vmatmul.mubr.bf16.gmra.mxu0 %v190
    %v275 = vpop.f32.mrf.mxu0
    %v276 = vadd.f32 %v119, %v275
    %v277 = vpop.f32.mrf.mxu0
    %v278 = vadd.f32 %v123, %v277
    %v279 = vpop.f32.mrf.mxu0
    %v280 = vadd.f32 %v119, %v279
    %v281 = vpop.f32.mrf.mxu0
    %v282 = vadd.f32 %v123, %v281
    %283 = vmatprep.mubr.bf16.mxu0 0
    %284 = vmatmul.mubr.bf16.gmra.mxu0 %v193
    %v285 = vpop.f32.mrf.mxu0
    %v286 = vadd.f32 %v119, %v285
    %v287 = vpop.f32.mrf.mxu0
    %v288 = vadd.f32 %v123, %v287
    %v289 = vpop.f32.mrf.mxu0
    %v290 = vadd.f32 %v119, %v289
    %v291 = vpop.f32.mrf.mxu0
    %v292 = vadd.f32 %v123, %v291
    %293 = vmatprep.mubr.bf16.mxu0 0
    %294 = vmatmul.mubr.bf16.gmra.mxu0 %v196
    %v295 = vpop.f32.mrf.mxu0
    %v296 = vadd.f32 %v119, %v295
    %v297 = vpop.f32.mrf.mxu0
    %v298 = vadd.f32 %v123, %v297
    %v299 = vpop.f32.mrf.mxu0
    %v300 = vadd.f32 %v119, %v299
    %v301 = vpop.f32.mrf.mxu0
    %v302 = vadd.f32 %v123, %v301
    %303 = vmatprep.mubr.bf16.mxu0 0
    %304 = vmatmul.mubr.bf16.gmra.mxu0 %v199
    %v305 = vpop.f32.mrf.mxu0
    %v306 = vadd.f32 %v119, %v305
    %v307 = vpop.f32.mrf.mxu0
    %v308 = vadd.f32 %v123, %v307
    %v309 = vpop.f32.mrf.mxu0
    %v310 = vadd.f32 %v119, %v309
    %v311 = vpop.f32.mrf.mxu0
    %v312 = vadd.f32 %v123, %v311
    %313 = vdwg.mxu0
    %314 = vmatprep.subr.bf16.mxu0 0
    %315 = vmatpush1.bf16.msra.mxu0 0
    %316 = vmatprep.subr.bf16.mxu0 0
    %317 = vmatpush1.bf16.msra.mxu0 0
    %318 = vmatprep.subr.bf16.mxu0 0
    %319 = vmatpush1.bf16.msra.mxu0 0
    %320 = vmatprep.subr.bf16.mxu0 0
    %321 = vmatpush1.bf16.msra.mxu0 0
    %322 = vmatprep.subr.bf16.mxu0 0
    %323 = vmatpush1.bf16.msra.mxu0 0
    %324 = vmatprep.subr.bf16.mxu0 0
    %325 = vmatpush1.bf16.msra.mxu0 0
    %326 = vmatprep.subr.bf16.mxu0 %v167
    %327 = vmatpush1.bf16.msra.mxu0 %v166
    %328 = vmatprep.subr.bf16.mxu0 %v163
    %329 = vmatpush1.bf16.msra.mxu0 %v162
    %330 = vmatprep.subr.bf16.mxu0 0
    %331 = vmatpush2.bf16.msra.mxu0 0
    %332 = vmatprep.subr.bf16.mxu0 0
    %333 = vmatpush2.bf16.msra.mxu0 0
    %334 = vmatprep.subr.bf16.mxu0 0
    %335 = vmatpush2.bf16.msra.mxu0 0
    %336 = vmatprep.subr.bf16.mxu0 0
    %337 = vmatpush2.bf16.msra.mxu0 0
    %338 = vmatprep.subr.bf16.mxu0 0
    %339 = vmatpush2.bf16.msra.mxu0 0
    %340 = vmatprep.subr.bf16.mxu0 0
    %341 = vmatpush2.bf16.msra.mxu0 0
    %342 = vmatprep.subr.bf16.mxu0 0
    %343 = vmatpush2.bf16.msra.mxu0 0
    %344 = vmatprep.subr.bf16.mxu0 0
    %345 = vmatpush2.bf16.msra.mxu0 0
    %346 = vmatprep.mubr.bf16.mxu0 0
    %347 = vmatmul.mubr.bf16.gmra.mxu0 %v178
    %v348 = vpop.f32.mrf.mxu0
    %v349 = vadd.f32 %v127, %v348
    %v350 = vpop.f32.mrf.mxu0
    %v351 = vadd.f32 %v131, %v350
    %v352 = vpop.f32.mrf.mxu0
    %v353 = vadd.f32 %v127, %v352
    %v354 = vpop.f32.mrf.mxu0
    %v355 = vadd.f32 %v131, %v354
    %356 = vmatprep.mubr.bf16.mxu0 0
    %357 = vmatmul.mubr.bf16.gmra.mxu0 %v181
    %v358 = vpop.f32.mrf.mxu0
    %v359 = vadd.f32 %v127, %v358
    %v360 = vpop.f32.mrf.mxu0
    %v361 = vadd.f32 %v131, %v360
    %v362 = vpop.f32.mrf.mxu0
    %v363 = vadd.f32 %v127, %v362
    %v364 = vpop.f32.mrf.mxu0
    %v365 = vadd.f32 %v131, %v364
    %366 = vmatprep.mubr.bf16.mxu0 0
    %367 = vmatmul.mubr.bf16.gmra.mxu0 %v184
    %v368 = vpop.f32.mrf.mxu0
    %v369 = vadd.f32 %v127, %v368
    %v370 = vpop.f32.mrf.mxu0
    %v371 = vadd.f32 %v131, %v370
    %v372 = vpop.f32.mrf.mxu0
    %v373 = vadd.f32 %v127, %v372
    %v374 = vpop.f32.mrf.mxu0
    %v375 = vadd.f32 %v131, %v374
    %376 = vmatprep.mubr.bf16.mxu0 0
    %377 = vmatmul.mubr.bf16.gmra.mxu0 %v187
    %v378 = vpop.f32.mrf.mxu0
    %v379 = vadd.f32 %v127, %v378
    %v380 = vpop.f32.mrf.mxu0
    %v381 = vadd.f32 %v131, %v380
    %v382 = vpop.f32.mrf.mxu0
    %v383 = vadd.f32 %v127, %v382
    %v384 = vpop.f32.mrf.mxu0
    %v385 = vadd.f32 %v131, %v384
    %386 = vmatprep.mubr.bf16.mxu0 0
    %387 = vmatmul.mubr.bf16.gmra.mxu0 %v190
    %v388 = vpop.f32.mrf.mxu0
    %v389 = vadd.f32 %v127, %v388
    %v390 = vpop.f32.mrf.mxu0
    %v391 = vadd.f32 %v131, %v390
    %v392 = vpop.f32.mrf.mxu0
    %v393 = vadd.f32 %v127, %v392
    %v394 = vpop.f32.mrf.mxu0
    %v395 = vadd.f32 %v131, %v394
    %396 = vmatprep.mubr.bf16.mxu0 0
    %397 = vmatmul.mubr.bf16.gmra.mxu0 %v193
    %v398 = vpop.f32.mrf.mxu0
    %v399 = vadd.f32 %v127, %v398
    %v400 = vpop.f32.mrf.mxu0
    %v401 = vadd.f32 %v131, %v400
    %v402 = vpop.f32.mrf.mxu0
    %v403 = vadd.f32 %v127, %v402
    %v404 = vpop.f32.mrf.mxu0
    %v405 = vadd.f32 %v131, %v404
    %406 = vmatprep.mubr.bf16.mxu0 0
    %407 = vmatmul.mubr.bf16.gmra.mxu0 %v196
    %v408 = vpop.f32.mrf.mxu0
    %v409 = vadd.f32 %v127, %v408
    %v410 = vpop.f32.mrf.mxu0
    %v411 = vadd.f32 %v131, %v410
    %v412 = vpop.f32.mrf.mxu0
    %v413 = vadd.f32 %v127, %v412
    %v414 = vpop.f32.mrf.mxu0
    %v415 = vadd.f32 %v131, %v414
    %416 = vmatprep.mubr.bf16.mxu0 0
    %417 = vmatmul.mubr.bf16.gmra.mxu0 %v199
    %v418 = vpop.f32.mrf.mxu0
    %v419 = vadd.f32 %v127, %v418
    %v420 = vpop.f32.mrf.mxu0
    %v421 = vadd.f32 %v131, %v420
    %v422 = vpop.f32.mrf.mxu0
    %v423 = vadd.f32 %v127, %v422
    %v424 = vpop.f32.mrf.mxu0
    %v425 = vadd.f32 %v131, %v424
    %426 = vdwg.mxu0
    %v427 = vld [vmem:[%s3] sm:$0xf]
    %v428 = vld [vmem:[%s4] sm:$0xf]
    %v429 = vadd.f32 %v236, %v238
    %v430 = vadd.f32 %v429, %v349
    %v431 = vadd.f32 %v430, %v351
    %432 = vadd.xlane.f32.xlu0 %v431
    %v433 = vpop.xlane.xlu0 %432
    %v434 = vadd.f32 %v240, %v242
    %v435 = vadd.f32 %v434, %v353
    %v436 = vadd.f32 %v435, %v355
    %437 = vadd.xlane.f32.xlu0 %v436
    %v438 = vpop.xlane.xlu0 %437
    %v439 = vadd.f32 %v246, %v248
    %v440 = vadd.f32 %v439, %v359
    %v441 = vadd.f32 %v440, %v361
    %442 = vadd.xlane.f32.xlu0 %v441
    %v443 = vpop.xlane.xlu0 %442
    %v444 = vadd.f32 %v250, %v252
    %v445 = vadd.f32 %v444, %v363
    %v446 = vadd.f32 %v445, %v365
    %447 = vadd.xlane.f32.xlu0 %v446
    %v448 = vpop.xlane.xlu0 %447
    %v449 = vadd.f32 %v256, %v258
    %v450 = vadd.f32 %v449, %v369
    %v451 = vadd.f32 %v450, %v371
    %452 = vadd.xlane.f32.xlu0 %v451
    %v453 = vpop.xlane.xlu0 %452
    %v454 = vadd.f32 %v260, %v262
    %v455 = vadd.f32 %v454, %v373
    %v456 = vadd.f32 %v455, %v375
    %457 = vadd.xlane.f32.xlu0 %v456
    %v458 = vpop.xlane.xlu0 %457
    %v459 = vadd.f32 %v266, %v268
    %v460 = vadd.f32 %v459, %v379
    %v461 = vadd.f32 %v460, %v381
    %462 = vadd.xlane.f32.xlu0 %v461
    %v463 = vpop.xlane.xlu0 %462
    %v464 = vadd.f32 %v270, %v272
    %v465 = vadd.f32 %v464, %v383
    %v466 = vadd.f32 %v465, %v385
    %467 = vadd.xlane.f32.xlu0 %v466
    %v468 = vpop.xlane.xlu0 %467
    %v469 = vadd.f32 %v276, %v278
    %v470 = vadd.f32 %v469, %v389
    %v471 = vadd.f32 %v470, %v391
    %472 = vadd.xlane.f32.xlu0 %v471
    %v473 = vpop.xlane.xlu0 %472
    %v474 = vadd.f32 %v280, %v282
    %v475 = vadd.f32 %v474, %v393
    %v476 = vadd.f32 %v475, %v395
    %477 = vadd.xlane.f32.xlu0 %v476
    %v478 = vpop.xlane.xlu0 %477
    %v479 = vadd.f32 %v286, %v288
    %v480 = vadd.f32 %v479, %v399
    %v481 = vadd.f32 %v480, %v401
    %482 = vadd.xlane.f32.xlu0 %v481
    %v483 = vpop.xlane.xlu0 %482
    %v484 = vadd.f32 %v290, %v292
    %v485 = vadd.f32 %v484, %v403
    %v486 = vadd.f32 %v485, %v405
    %487 = vadd.xlane.f32.xlu0 %v486
    %v488 = vpop.xlane.xlu0 %487
    %v489 = vadd.f32 %v296, %v298
    %v490 = vadd.f32 %v489, %v409
    %v491 = vadd.f32 %v490, %v411
    %492 = vadd.xlane.f32.xlu0 %v491
    %v493 = vpop.xlane.xlu0 %492
    %v494 = vadd.f32 %v300, %v302
    %v495 = vadd.f32 %v494, %v413
    %v496 = vadd.f32 %v495, %v415
    %497 = vadd.xlane.f32.xlu0 %v496
    %v498 = vpop.xlane.xlu0 %497
    %v499 = vadd.f32 %v306, %v308
    %v500 = vadd.f32 %v499, %v419
    %v501 = vadd.f32 %v500, %v421
    %502 = vadd.xlane.f32.xlu0 %v501
    %v503 = vpop.xlane.xlu0 %502
    %v504 = vadd.f32 %v310, %v312
    %v505 = vadd.f32 %v504, %v423
    %v506 = vadd.f32 %v505, %v425
    %507 = vadd.xlane.f32.xlu0 %v506
    %v508 = vpop.xlane.xlu0 %507
    %v509 = vmul.f32 %v236, %v236
    %v510 = vmul.f32 %v238, %v238
    %v511 = vmul.f32 %v349, %v349
    %v512 = vmul.f32 %v351, %v351
    %v513 = vmul.f32 %v240, %v240
    %v514 = vmul.f32 %v242, %v242
    %v515 = vmul.f32 %v353, %v353
    %v516 = vmul.f32 %v355, %v355
    %v517 = vmul.f32 %v246, %v246
    %v518 = vmul.f32 %v248, %v248
    %v519 = vmul.f32 %v359, %v359
    %v520 = vmul.f32 %v361, %v361
    %v521 = vmul.f32 %v250, %v250
    %v522 = vmul.f32 %v252, %v252
    %v523 = vmul.f32 %v363, %v363
    %v524 = vmul.f32 %v365, %v365
    %v525 = vmul.f32 %v256, %v256
    %v526 = vmul.f32 %v258, %v258
    %v527 = vmul.f32 %v369, %v369
    %v528 = vmul.f32 %v371, %v371
    %v529 = vmul.f32 %v260, %v260
    %v530 = vmul.f32 %v262, %v262
    %v531 = vmul.f32 %v373, %v373
    %v532 = vmul.f32 %v375, %v375
    %v533 = vmul.f32 %v266, %v266
    %v534 = vmul.f32 %v268, %v268
    %v535 = vmul.f32 %v379, %v379
    %v536 = vmul.f32 %v381, %v381
    %v537 = vmul.f32 %v270, %v270
    %v538 = vmul.f32 %v272, %v272
    %v539 = vmul.f32 %v383, %v383
    %v540 = vmul.f32 %v385, %v385
    %v541 = vmul.f32 %v276, %v276
    %v542 = vmul.f32 %v278, %v278
    %v543 = vmul.f32 %v389, %v389
    %v544 = vmul.f32 %v391, %v391
    %v545 = vmul.f32 %v280, %v280
    %v546 = vmul.f32 %v282, %v282
    %v547 = vmul.f32 %v393, %v393
    %v548 = vmul.f32 %v395, %v395
    %v549 = vmul.f32 %v286, %v286
    %v550 = vmul.f32 %v288, %v288
    %v551 = vmul.f32 %v399, %v399
    %v552 = vmul.f32 %v401, %v401
    %v553 = vmul.f32 %v290, %v290
    %v554 = vmul.f32 %v292, %v292
    %v555 = vmul.f32 %v403, %v403
    %v556 = vmul.f32 %v405, %v405
    %v557 = vmul.f32 %v296, %v296
    %v558 = vmul.f32 %v298, %v298
    %v559 = vmul.f32 %v409, %v409
    %v560 = vmul.f32 %v411, %v411
    %v561 = vmul.f32 %v300, %v300
    %v562 = vmul.f32 %v302, %v302
    %v563 = vmul.f32 %v413, %v413
    %v564 = vmul.f32 %v415, %v415
    %v565 = vmul.f32 %v306, %v306
    %v566 = vmul.f32 %v308, %v308
    %v567 = vmul.f32 %v419, %v419
    %v568 = vmul.f32 %v421, %v421
    %v569 = vmul.f32 %v310, %v310
    %v570 = vmul.f32 %v312, %v312
    %v571 = vmul.f32 %v423, %v423
    %v572 = vmul.f32 %v425, %v425
    %v573 = vadd.f32 %v509, %v510
    %v574 = vadd.f32 %v573, %v511
    %v575 = vadd.f32 %v574, %v512
    %576 = vadd.xlane.f32.xlu0 %v575
    %v577 = vpop.xlane.xlu0 %576
    %v578 = vadd.f32 %v513, %v514
    %v579 = vadd.f32 %v578, %v515
    %v580 = vadd.f32 %v579, %v516
    %581 = vadd.xlane.f32.xlu0 %v580
    %v582 = vpop.xlane.xlu0 %581
    %v583 = vadd.f32 %v517, %v518
    %v584 = vadd.f32 %v583, %v519
    %v585 = vadd.f32 %v584, %v520
    %586 = vadd.xlane.f32.xlu0 %v585
    %v587 = vpop.xlane.xlu0 %586
    %v588 = vadd.f32 %v521, %v522
    %v589 = vadd.f32 %v588, %v523
    %v590 = vadd.f32 %v589, %v524
    %591 = vadd.xlane.f32.xlu0 %v590
    %v592 = vpop.xlane.xlu0 %591
    %v593 = vadd.f32 %v525, %v526
    %v594 = vadd.f32 %v593, %v527
    %v595 = vadd.f32 %v594, %v528
    %596 = vadd.xlane.f32.xlu0 %v595
    %v597 = vpop.xlane.xlu0 %596
    %v598 = vadd.f32 %v529, %v530
    %v599 = vadd.f32 %v598, %v531
    %v600 = vadd.f32 %v599, %v532
    %601 = vadd.xlane.f32.xlu0 %v600
    %v602 = vpop.xlane.xlu0 %601
    %v603 = vadd.f32 %v533, %v534
    %v604 = vadd.f32 %v603, %v535
    %v605 = vadd.f32 %v604, %v536
    %606 = vadd.xlane.f32.xlu0 %v605
    %v607 = vpop.xlane.xlu0 %606
    %v608 = vadd.f32 %v537, %v538
    %v609 = vadd.f32 %v608, %v539
    %v610 = vadd.f32 %v609, %v540
    %611 = vadd.xlane.f32.xlu0 %v610
    %v612 = vpop.xlane.xlu0 %611
    %v613 = vadd.f32 %v541, %v542
    %v614 = vadd.f32 %v613, %v543
    %v615 = vadd.f32 %v614, %v544
    %616 = vadd.xlane.f32.xlu0 %v615
    %v617 = vpop.xlane.xlu0 %616
    %v618 = vadd.f32 %v545, %v546
    %v619 = vadd.f32 %v618, %v547
    %v620 = vadd.f32 %v619, %v548
    %621 = vadd.xlane.f32.xlu0 %v620
    %v622 = vpop.xlane.xlu0 %621
    %v623 = vadd.f32 %v549, %v550
    %v624 = vadd.f32 %v623, %v551
    %v625 = vadd.f32 %v624, %v552
    %626 = vadd.xlane.f32.xlu0 %v625
    %v627 = vpop.xlane.xlu0 %626
    %v628 = vadd.f32 %v553, %v554
    %v629 = vadd.f32 %v628, %v555
    %v630 = vadd.f32 %v629, %v556
    %631 = vadd.xlane.f32.xlu0 %v630
    %v632 = vpop.xlane.xlu0 %631
    %v633 = vadd.f32 %v557, %v558
    %v634 = vadd.f32 %v633, %v559
    %v635 = vadd.f32 %v634, %v560
    %636 = vadd.xlane.f32.xlu0 %v635
    %v637 = vpop.xlane.xlu0 %636
    %v638 = vadd.f32 %v561, %v562
    %v639 = vadd.f32 %v638, %v563
    %v640 = vadd.f32 %v639, %v564
    %641 = vadd.xlane.f32.xlu0 %v640
    %v642 = vpop.xlane.xlu0 %641
    %v643 = vadd.f32 %v565, %v566
    %v644 = vadd.f32 %v643, %v567
    %v645 = vadd.f32 %v644, %v568
    %646 = vadd.xlane.f32.xlu0 %v645
    %v647 = vpop.xlane.xlu0 %646
    %v648 = vadd.f32 %v569, %v570
    %v649 = vadd.f32 %v648, %v571
    %v650 = vadd.f32 %v649, %v572
    %651 = vadd.xlane.f32.xlu0 %v650
    %v652 = vpop.xlane.xlu0 %651
    %v653 = vmul.f32 %v433, 0.001953125
    %v654 = vmul.f32 %v438, 0.001953125
    %v655 = vmul.f32 %v443, 0.001953125
    %v656 = vmul.f32 %v448, 0.001953125
    %v657 = vmul.f32 %v453, 0.001953125
    %v658 = vmul.f32 %v458, 0.001953125
    %v659 = vmul.f32 %v463, 0.001953125
    %v660 = vmul.f32 %v468, 0.001953125
    %v661 = vmul.f32 %v473, 0.001953125
    %v662 = vmul.f32 %v478, 0.001953125
    %v663 = vmul.f32 %v483, 0.001953125
    %v664 = vmul.f32 %v488, 0.001953125
    %v665 = vmul.f32 %v493, 0.001953125
    %v666 = vmul.f32 %v498, 0.001953125
    %v667 = vmul.f32 %v503, 0.001953125
    %v668 = vmul.f32 %v508, 0.001953125
    %v669 = vmul.f32 %v577, 0.001953125
    %v670 = vmul.f32 %v582, 0.001953125
    %v671 = vmul.f32 %v587, 0.001953125
    %v672 = vmul.f32 %v592, 0.001953125
    %v673 = vmul.f32 %v597, 0.001953125
    %v674 = vmul.f32 %v602, 0.001953125
    %v675 = vmul.f32 %v607, 0.001953125
    %v676 = vmul.f32 %v612, 0.001953125
    %v677 = vmul.f32 %v617, 0.001953125
    %v678 = vmul.f32 %v622, 0.001953125
    %v679 = vmul.f32 %v627, 0.001953125
    %v680 = vmul.f32 %v632, 0.001953125
    %v681 = vmul.f32 %v637, 0.001953125
    %v682 = vmul.f32 %v642, 0.001953125
    %v683 = vmul.f32 %v647, 0.001953125
    %v684 = vmul.f32 %v652, 0.001953125
    %v685 = vmul.f32 %v653, %v653
    %v686 = vmul.f32 %v654, %v654
    %v687 = vmul.f32 %v655, %v655
    %v688 = vmul.f32 %v656, %v656
    %v689 = vmul.f32 %v657, %v657
    %v690 = vmul.f32 %v658, %v658
    %v691 = vmul.f32 %v659, %v659
    %v692 = vmul.f32 %v660, %v660
    %v693 = vmul.f32 %v661, %v661
    %v694 = vmul.f32 %v662, %v662
    %v695 = vmul.f32 %v663, %v663
    %v696 = vmul.f32 %v664, %v664
    %v697 = vmul.f32 %v665, %v665
    %v698 = vmul.f32 %v666, %v666
    %v699 = vmul.f32 %v667, %v667
    %v700 = vmul.f32 %v668, %v668
    %v701 = vsub.f32 %v669, %v685
    %v702 = vsub.f32 %v670, %v686
    %v703 = vsub.f32 %v671, %v687
    %v704 = vsub.f32 %v672, %v688
    %v705 = vsub.f32 %v673, %v689
    %v706 = vsub.f32 %v674, %v690
    %v707 = vsub.f32 %v675, %v691
    %v708 = vsub.f32 %v676, %v692
    %v709 = vsub.f32 %v677, %v693
    %v710 = vsub.f32 %v678, %v694
    %v711 = vsub.f32 %v679, %v695
    %v712 = vsub.f32 %v680, %v696
    %v713 = vsub.f32 %v681, %v697
    %v714 = vsub.f32 %v682, %v698
    %v715 = vsub.f32 %v683, %v699
    %v716 = vsub.f32 %v684, %v700
    %v717 = vmax.f32 %v701, 0.0
    %v718 = vmax.f32 %v702, 0.0
    %v719 = vmax.f32 %v703, 0.0
    %v720 = vmax.f32 %v704, 0.0
    %v721 = vmax.f32 %v705, 0.0
    %v722 = vmax.f32 %v706, 0.0
    %v723 = vmax.f32 %v707, 0.0
    %v724 = vmax.f32 %v708, 0.0
    %v725 = vmax.f32 %v709, 0.0
    %v726 = vmax.f32 %v710, 0.0
    %v727 = vmax.f32 %v711, 0.0
    %v728 = vmax.f32 %v712, 0.0
    %v729 = vmax.f32 %v713, 0.0
    %v730 = vmax.f32 %v714, 0.0
    %v731 = vmax.f32 %v715, 0.0
    %v732 = vmax.f32 %v716, 0.0
    %v733 = vsub.f32 %v236, %v653
    %v734 = vsub.f32 %v238, %v653
    %v735 = vsub.f32 %v349, %v653
    %v736 = vsub.f32 %v351, %v653
    %v737 = vsub.f32 %v240, %v654
    %v738 = vsub.f32 %v242, %v654
    %v739 = vsub.f32 %v353, %v654
    %v740 = vsub.f32 %v355, %v654
    %v741 = vsub.f32 %v246, %v655
    %v742 = vsub.f32 %v248, %v655
    %v743 = vsub.f32 %v359, %v655
    %v744 = vsub.f32 %v361, %v655
    %v745 = vsub.f32 %v250, %v656
    %v746 = vsub.f32 %v252, %v656
    %v747 = vsub.f32 %v363, %v656
    %v748 = vsub.f32 %v365, %v656
    %v749 = vsub.f32 %v256, %v657
    %v750 = vsub.f32 %v258, %v657
    %v751 = vsub.f32 %v369, %v657
    %v752 = vsub.f32 %v371, %v657
    %v753 = vsub.f32 %v260, %v658
    %v754 = vsub.f32 %v262, %v658
    %v755 = vsub.f32 %v373, %v658
    %v756 = vsub.f32 %v375, %v658
    %v757 = vsub.f32 %v266, %v659
    %v758 = vsub.f32 %v268, %v659
    %v759 = vsub.f32 %v379, %v659
    %v760 = vsub.f32 %v381, %v659
    %v761 = vsub.f32 %v270, %v660
    %v762 = vsub.f32 %v272, %v660
    %v763 = vsub.f32 %v383, %v660
    %v764 = vsub.f32 %v385, %v660
    %v765 = vsub.f32 %v276, %v661
    %v766 = vsub.f32 %v278, %v661
    %v767 = vsub.f32 %v389, %v661
    %v768 = vsub.f32 %v391, %v661
    %v769 = vsub.f32 %v280, %v662
    %v770 = vsub.f32 %v282, %v662
    %v771 = vsub.f32 %v393, %v662
    %v772 = vsub.f32 %v395, %v662
    %v773 = vsub.f32 %v286, %v663
    %v774 = vsub.f32 %v288, %v663
    %v775 = vsub.f32 %v399, %v663
    %v776 = vsub.f32 %v401, %v663
    %v777 = vsub.f32 %v290, %v664
    %v778 = vsub.f32 %v292, %v664
    %v779 = vsub.f32 %v403, %v664
    %v780 = vsub.f32 %v405, %v664
    %v781 = vsub.f32 %v296, %v665
    %v782 = vsub.f32 %v298, %v665
    %v783 = vsub.f32 %v409, %v665
    %v784 = vsub.f32 %v411, %v665
    %v785 = vsub.f32 %v300, %v666
    %v786 = vsub.f32 %v302, %v666
    %v787 = vsub.f32 %v413, %v666
    %v788 = vsub.f32 %v415, %v666
    %v789 = vsub.f32 %v306, %v667
    %v790 = vsub.f32 %v308, %v667
    %v791 = vsub.f32 %v419, %v667
    %v792 = vsub.f32 %v421, %v667
    %v793 = vsub.f32 %v310, %v668
    %v794 = vsub.f32 %v312, %v668
    %v795 = vsub.f32 %v423, %v668
    %v796 = vsub.f32 %v425, %v668
    %v797 = vadd.f32 %v717, 1e-05
    %v798 = vadd.f32 %v718, 1e-05
    %v799 = vadd.f32 %v719, 1e-05
    %v800 = vadd.f32 %v720, 1e-05
    %v801 = vadd.f32 %v721, 1e-05
    %v802 = vadd.f32 %v722, 1e-05
    %v803 = vadd.f32 %v723, 1e-05
    %v804 = vadd.f32 %v724, 1e-05
    %v805 = vadd.f32 %v725, 1e-05
    %v806 = vadd.f32 %v726, 1e-05
    %v807 = vadd.f32 %v727, 1e-05
    %v808 = vadd.f32 %v728, 1e-05
    %v809 = vadd.f32 %v729, 1e-05
    %v810 = vadd.f32 %v730, 1e-05
    %v811 = vadd.f32 %v731, 1e-05
    %v812 = vadd.f32 %v732, 1e-05
    %v813 = vrsqrt.pop %v797
    %v814 = vrsqrt.pop %v798
    %v815 = vrsqrt.pop %v799
    %v816 = vrsqrt.pop %v800
    %v817 = vrsqrt.pop %v801
    %v818 = vrsqrt.pop %v802
    %v819 = vrsqrt.pop %v803
    %v820 = vrsqrt.pop %v804
    %v821 = vrsqrt.pop %v805
    %v822 = vrsqrt.pop %v806
    %v823 = vrsqrt.pop %v807
    %v824 = vrsqrt.pop %v808
    %v825 = vrsqrt.pop %v809
    %v826 = vrsqrt.pop %v810
    %v827 = vrsqrt.pop %v811
    %v828 = vrsqrt.pop %v812
    %v829 = vmul.f32 %v733, %v813
    %v830 = vmul.f32 %v734, %v813
    %v831 = vmul.f32 %v735, %v813
    %v832 = vmul.f32 %v736, %v813
    %v833 = vmul.f32 %v737, %v814
    %v834 = vmul.f32 %v738, %v814
    %v835 = vmul.f32 %v739, %v814
    %v836 = vmul.f32 %v740, %v814
    %v837 = vmul.f32 %v741, %v815
    %v838 = vmul.f32 %v742, %v815
    %v839 = vmul.f32 %v743, %v815
    %v840 = vmul.f32 %v744, %v815
    %v841 = vmul.f32 %v745, %v816
    %v842 = vmul.f32 %v746, %v816
    %v843 = vmul.f32 %v747, %v816
    %v844 = vmul.f32 %v748, %v816
    %v845 = vmul.f32 %v749, %v817
    %v846 = vmul.f32 %v750, %v817
    %v847 = vmul.f32 %v751, %v817
    %v848 = vmul.f32 %v752, %v817
    %v849 = vmul.f32 %v753, %v818
    %v850 = vmul.f32 %v754, %v818
    %v851 = vmul.f32 %v755, %v818
    %v852 = vmul.f32 %v756, %v818
    %v853 = vmul.f32 %v757, %v819
    %v854 = vmul.f32 %v758, %v819
    %v855 = vmul.f32 %v759, %v819
    %v856 = vmul.f32 %v760, %v819
    %v857 = vmul.f32 %v761, %v820
    %v858 = vmul.f32 %v762, %v820
    %v859 = vmul.f32 %v763, %v820
    %v860 = vmul.f32 %v764, %v820
    %v861 = vmul.f32 %v765, %v821
    %v862 = vmul.f32 %v766, %v821
    %v863 = vmul.f32 %v767, %v821
    %v864 = vmul.f32 %v768, %v821
    %v865 = vmul.f32 %v769, %v822
    %v866 = vmul.f32 %v770, %v822
    %v867 = vmul.f32 %v771, %v822
    %v868 = vmul.f32 %v772, %v822
    %v869 = vmul.f32 %v773, %v823
    %v870 = vmul.f32 %v774, %v823
    %v871 = vmul.f32 %v775, %v823
    %v872 = vmul.f32 %v776, %v823
    %v873 = vmul.f32 %v777, %v824
    %v874 = vmul.f32 %v778, %v824
    %v875 = vmul.f32 %v779, %v824
    %v876 = vmul.f32 %v780, %v824
    %v877 = vmul.f32 %v781, %v825
    %v878 = vmul.f32 %v782, %v825
    %v879 = vmul.f32 %v783, %v825
    %v880 = vmul.f32 %v784, %v825
    %v881 = vmul.f32 %v785, %v826
    %v882 = vmul.f32 %v786, %v826
    %v883 = vmul.f32 %v787, %v826
    %v884 = vmul.f32 %v788, %v826
    %v885 = vmul.f32 %v789, %v827
    %v886 = vmul.f32 %v790, %v827
    %v887 = vmul.f32 %v791, %v827
    %v888 = vmul.f32 %v792, %v827
    %v889 = vmul.f32 %v793, %v828
    %v890 = vmul.f32 %v794, %v828
    %v891 = vmul.f32 %v795, %v828
    %v892 = vmul.f32 %v796, %v828
    %v894 = vlaneseq
    %v895 = vshrl.u32 %v894, 7
    %v896 = vsub.s32 0, %v895
    %v897 = vrot.slane %v427, %v896
    %v898 = vlaneseq
    %v899 = vshrl.u32 %v898, 7
    %v900 = vsub.s32 1, %v899
    %v901 = vrot.slane %v427, %v900
    %v902 = vlaneseq
    %v903 = vshrl.u32 %v902, 7
    %v904 = vsub.s32 2, %v903
    %v905 = vrot.slane %v427, %v904
    %v906 = vlaneseq
    %v907 = vshrl.u32 %v906, 7
    %v908 = vsub.s32 3, %v907
    %v909 = vrot.slane %v427, %v908
    %v914 = vmul.f32 %v829, %v897
    %v915 = vmul.f32 %v830, %v901
    %v916 = vmul.f32 %v831, %v905
    %v917 = vmul.f32 %v832, %v909
    %v918 = vmul.f32 %v833, %v897
    %v919 = vmul.f32 %v834, %v901
    %v920 = vmul.f32 %v835, %v905
    %v921 = vmul.f32 %v836, %v909
    %v922 = vmul.f32 %v837, %v897
    %v923 = vmul.f32 %v838, %v901
    %v924 = vmul.f32 %v839, %v905
    %v925 = vmul.f32 %v840, %v909
    %v926 = vmul.f32 %v841, %v897
    %v927 = vmul.f32 %v842, %v901
    %v928 = vmul.f32 %v843, %v905
    %v929 = vmul.f32 %v844, %v909
    %v930 = vmul.f32 %v845, %v897
    %v931 = vmul.f32 %v846, %v901
    %v932 = vmul.f32 %v847, %v905
    %v933 = vmul.f32 %v848, %v909
    %v934 = vmul.f32 %v849, %v897
    %v935 = vmul.f32 %v850, %v901
    %v936 = vmul.f32 %v851, %v905
    %v937 = vmul.f32 %v852, %v909
    %v938 = vmul.f32 %v853, %v897
    %v939 = vmul.f32 %v854, %v901
    %v940 = vmul.f32 %v855, %v905
    %v941 = vmul.f32 %v856, %v909
    %v942 = vmul.f32 %v857, %v897
    %v943 = vmul.f32 %v858, %v901
    %v944 = vmul.f32 %v859, %v905
    %v945 = vmul.f32 %v860, %v909
    %v946 = vmul.f32 %v861, %v897
    %v947 = vmul.f32 %v862, %v901
    %v948 = vmul.f32 %v863, %v905
    %v949 = vmul.f32 %v864, %v909
    %v950 = vmul.f32 %v865, %v897
    %v951 = vmul.f32 %v866, %v901
    %v952 = vmul.f32 %v867, %v905
    %v953 = vmul.f32 %v868, %v909
    %v954 = vmul.f32 %v869, %v897
    %v955 = vmul.f32 %v870, %v901
    %v956 = vmul.f32 %v871, %v905
    %v957 = vmul.f32 %v872, %v909
    %v958 = vmul.f32 %v873, %v897
    %v959 = vmul.f32 %v874, %v901
    %v960 = vmul.f32 %v875, %v905
    %v961 = vmul.f32 %v876, %v909
    %v962 = vmul.f32 %v877, %v897
    %v963 = vmul.f32 %v878, %v901
    %v964 = vmul.f32 %v879, %v905
    %v965 = vmul.f32 %v880, %v909
    %v966 = vmul.f32 %v881, %v897
    %v967 = vmul.f32 %v882, %v901
    %v968 = vmul.f32 %v883, %v905
    %v969 = vmul.f32 %v884, %v909
    %v970 = vmul.f32 %v885, %v897
    %v971 = vmul.f32 %v886, %v901
    %v972 = vmul.f32 %v887, %v905
    %v973 = vmul.f32 %v888, %v909
    %v974 = vmul.f32 %v889, %v897
    %v975 = vmul.f32 %v890, %v901
    %v976 = vmul.f32 %v891, %v905
    %v977 = vmul.f32 %v892, %v909
    %v979 = vlaneseq
    %v980 = vshrl.u32 %v979, 7
    %v981 = vsub.s32 0, %v980
    %v982 = vrot.slane %v428, %v981
    %v983 = vlaneseq
    %v984 = vshrl.u32 %v983, 7
    %v985 = vsub.s32 1, %v984
    %v986 = vrot.slane %v428, %v985
    %v987 = vlaneseq
    %v988 = vshrl.u32 %v987, 7
    %v989 = vsub.s32 2, %v988
    %v990 = vrot.slane %v428, %v989
    %v991 = vlaneseq
    %v992 = vshrl.u32 %v991, 7
    %v993 = vsub.s32 3, %v992
    %v994 = vrot.slane %v428, %v993
    %v999 = vadd.f32 %v914, %v982
    %v1000 = vadd.f32 %v915, %v986
    %v1001 = vadd.f32 %v916, %v990
    %v1002 = vadd.f32 %v917, %v994
    %v1003 = vadd.f32 %v918, %v982
    %v1004 = vadd.f32 %v919, %v986
    %v1005 = vadd.f32 %v920, %v990
    %v1006 = vadd.f32 %v921, %v994
    %v1007 = vadd.f32 %v922, %v982
    %v1008 = vadd.f32 %v923, %v986
    %v1009 = vadd.f32 %v924, %v990
    %v1010 = vadd.f32 %v925, %v994
    %v1011 = vadd.f32 %v926, %v982
    %v1012 = vadd.f32 %v927, %v986
    %v1013 = vadd.f32 %v928, %v990
    %v1014 = vadd.f32 %v929, %v994
    %v1015 = vadd.f32 %v930, %v982
    %v1016 = vadd.f32 %v931, %v986
    %v1017 = vadd.f32 %v932, %v990
    %v1018 = vadd.f32 %v933, %v994
    %v1019 = vadd.f32 %v934, %v982
    %v1020 = vadd.f32 %v935, %v986
    %v1021 = vadd.f32 %v936, %v990
    %v1022 = vadd.f32 %v937, %v994
    %v1023 = vadd.f32 %v938, %v982
    %v1024 = vadd.f32 %v939, %v986
    %v1025 = vadd.f32 %v940, %v990
    %v1026 = vadd.f32 %v941, %v994
    %v1027 = vadd.f32 %v942, %v982
    %v1028 = vadd.f32 %v943, %v986
    %v1029 = vadd.f32 %v944, %v990
    %v1030 = vadd.f32 %v945, %v994
    %v1031 = vadd.f32 %v946, %v982
    %v1032 = vadd.f32 %v947, %v986
    %v1033 = vadd.f32 %v948, %v990
    %v1034 = vadd.f32 %v949, %v994
    %v1035 = vadd.f32 %v950, %v982
    %v1036 = vadd.f32 %v951, %v986
    %v1037 = vadd.f32 %v952, %v990
    %v1038 = vadd.f32 %v953, %v994
    %v1039 = vadd.f32 %v954, %v982
    %v1040 = vadd.f32 %v955, %v986
    %v1041 = vadd.f32 %v956, %v990
    %v1042 = vadd.f32 %v957, %v994
    %v1043 = vadd.f32 %v958, %v982
    %v1044 = vadd.f32 %v959, %v986
    %v1045 = vadd.f32 %v960, %v990
    %v1046 = vadd.f32 %v961, %v994
    %v1047 = vadd.f32 %v962, %v982
    %v1048 = vadd.f32 %v963, %v986
    %v1049 = vadd.f32 %v964, %v990
    %v1050 = vadd.f32 %v965, %v994
    %v1051 = vadd.f32 %v966, %v982
    %v1052 = vadd.f32 %v967, %v986
    %v1053 = vadd.f32 %v968, %v990
    %v1054 = vadd.f32 %v969, %v994
    %v1055 = vadd.f32 %v970, %v982
    %v1056 = vadd.f32 %v971, %v986
    %v1057 = vadd.f32 %v972, %v990
    %v1058 = vadd.f32 %v973, %v994
    %v1059 = vadd.f32 %v974, %v982
    %v1060 = vadd.f32 %v975, %v986
    %v1061 = vadd.f32 %v976, %v990
    %v1062 = vadd.f32 %v977, %v994
    %vm1063 = vcmp.gt.f32.partialorder %v999, 0.0
    %vm1064 = vcmp.gt.f32.partialorder %v1000, 0.0
    %vm1065 = vcmp.gt.f32.partialorder %v1001, 0.0
    %vm1066 = vcmp.gt.f32.partialorder %v1002, 0.0
    %vm1067 = vcmp.gt.f32.partialorder %v1003, 0.0
    %vm1068 = vcmp.gt.f32.partialorder %v1004, 0.0
    %vm1069 = vcmp.gt.f32.partialorder %v1005, 0.0
    %vm1070 = vcmp.gt.f32.partialorder %v1006, 0.0
    %vm1071 = vcmp.gt.f32.partialorder %v1007, 0.0
    %vm1072 = vcmp.gt.f32.partialorder %v1008, 0.0
    %vm1073 = vcmp.gt.f32.partialorder %v1009, 0.0
    %vm1074 = vcmp.gt.f32.partialorder %v1010, 0.0
    %vm1075 = vcmp.gt.f32.partialorder %v1011, 0.0
    %vm1076 = vcmp.gt.f32.partialorder %v1012, 0.0
    %vm1077 = vcmp.gt.f32.partialorder %v1013, 0.0
    %vm1078 = vcmp.gt.f32.partialorder %v1014, 0.0
    %vm1079 = vcmp.gt.f32.partialorder %v1015, 0.0
    %vm1080 = vcmp.gt.f32.partialorder %v1016, 0.0
    %vm1081 = vcmp.gt.f32.partialorder %v1017, 0.0
    %vm1082 = vcmp.gt.f32.partialorder %v1018, 0.0
    %vm1083 = vcmp.gt.f32.partialorder %v1019, 0.0
    %vm1084 = vcmp.gt.f32.partialorder %v1020, 0.0
    %vm1085 = vcmp.gt.f32.partialorder %v1021, 0.0
    %vm1086 = vcmp.gt.f32.partialorder %v1022, 0.0
    %vm1087 = vcmp.gt.f32.partialorder %v1023, 0.0
    %vm1088 = vcmp.gt.f32.partialorder %v1024, 0.0
    %vm1089 = vcmp.gt.f32.partialorder %v1025, 0.0
    %vm1090 = vcmp.gt.f32.partialorder %v1026, 0.0
    %vm1091 = vcmp.gt.f32.partialorder %v1027, 0.0
    %vm1092 = vcmp.gt.f32.partialorder %v1028, 0.0
    %vm1093 = vcmp.gt.f32.partialorder %v1029, 0.0
    %vm1094 = vcmp.gt.f32.partialorder %v1030, 0.0
    %vm1095 = vcmp.gt.f32.partialorder %v1031, 0.0
    %vm1096 = vcmp.gt.f32.partialorder %v1032, 0.0
    %vm1097 = vcmp.gt.f32.partialorder %v1033, 0.0
    %vm1098 = vcmp.gt.f32.partialorder %v1034, 0.0
    %vm1099 = vcmp.gt.f32.partialorder %v1035, 0.0
    %vm1100 = vcmp.gt.f32.partialorder %v1036, 0.0
    %vm1101 = vcmp.gt.f32.partialorder %v1037, 0.0
    %vm1102 = vcmp.gt.f32.partialorder %v1038, 0.0
    %vm1103 = vcmp.gt.f32.partialorder %v1039, 0.0
    %vm1104 = vcmp.gt.f32.partialorder %v1040, 0.0
    %vm1105 = vcmp.gt.f32.partialorder %v1041, 0.0
    %vm1106 = vcmp.gt.f32.partialorder %v1042, 0.0
    %vm1107 = vcmp.gt.f32.partialorder %v1043, 0.0
    %vm1108 = vcmp.gt.f32.partialorder %v1044, 0.0
    %vm1109 = vcmp.gt.f32.partialorder %v1045, 0.0
    %vm1110 = vcmp.gt.f32.partialorder %v1046, 0.0
    %vm1111 = vcmp.gt.f32.partialorder %v1047, 0.0
    %vm1112 = vcmp.gt.f32.partialorder %v1048, 0.0
    %vm1113 = vcmp.gt.f32.partialorder %v1049, 0.0
    %vm1114 = vcmp.gt.f32.partialorder %v1050, 0.0
    %vm1115 = vcmp.gt.f32.partialorder %v1051, 0.0
    %vm1116 = vcmp.gt.f32.partialorder %v1052, 0.0
    %vm1117 = vcmp.gt.f32.partialorder %v1053, 0.0
    %vm1118 = vcmp.gt.f32.partialorder %v1054, 0.0
    %vm1119 = vcmp.gt.f32.partialorder %v1055, 0.0
    %vm1120 = vcmp.gt.f32.partialorder %v1056, 0.0
    %vm1121 = vcmp.gt.f32.partialorder %v1057, 0.0
    %vm1122 = vcmp.gt.f32.partialorder %v1058, 0.0
    %vm1123 = vcmp.gt.f32.partialorder %v1059, 0.0
    %vm1124 = vcmp.gt.f32.partialorder %v1060, 0.0
    %vm1125 = vcmp.gt.f32.partialorder %v1061, 0.0
    %vm1126 = vcmp.gt.f32.partialorder %v1062, 0.0
    %v1127 = vmul.f32 %v999, 0.2
    %v1128 = vmul.f32 %v1000, 0.2
    %v1129 = vmul.f32 %v1001, 0.2
    %v1130 = vmul.f32 %v1002, 0.2
    %v1131 = vmul.f32 %v1003, 0.2
    %v1132 = vmul.f32 %v1004, 0.2
    %v1133 = vmul.f32 %v1005, 0.2
    %v1134 = vmul.f32 %v1006, 0.2
    %v1135 = vmul.f32 %v1007, 0.2
    %v1136 = vmul.f32 %v1008, 0.2
    %v1137 = vmul.f32 %v1009, 0.2
    %v1138 = vmul.f32 %v1010, 0.2
    %v1139 = vmul.f32 %v1011, 0.2
    %v1140 = vmul.f32 %v1012, 0.2
    %v1141 = vmul.f32 %v1013, 0.2
    %v1142 = vmul.f32 %v1014, 0.2
    %v1143 = vmul.f32 %v1015, 0.2
    %v1144 = vmul.f32 %v1016, 0.2
    %v1145 = vmul.f32 %v1017, 0.2
    %v1146 = vmul.f32 %v1018, 0.2
    %v1147 = vmul.f32 %v1019, 0.2
    %v1148 = vmul.f32 %v1020, 0.2
    %v1149 = vmul.f32 %v1021, 0.2
    %v1150 = vmul.f32 %v1022, 0.2
    %v1151 = vmul.f32 %v1023, 0.2
    %v1152 = vmul.f32 %v1024, 0.2
    %v1153 = vmul.f32 %v1025, 0.2
    %v1154 = vmul.f32 %v1026, 0.2
    %v1155 = vmul.f32 %v1027, 0.2
    %v1156 = vmul.f32 %v1028, 0.2
    %v1157 = vmul.f32 %v1029, 0.2
    %v1158 = vmul.f32 %v1030, 0.2
    %v1159 = vmul.f32 %v1031, 0.2
    %v1160 = vmul.f32 %v1032, 0.2
    %v1161 = vmul.f32 %v1033, 0.2
    %v1162 = vmul.f32 %v1034, 0.2
    %v1163 = vmul.f32 %v1035, 0.2
    %v1164 = vmul.f32 %v1036, 0.2
    %v1165 = vmul.f32 %v1037, 0.2
    %v1166 = vmul.f32 %v1038, 0.2
    %v1167 = vmul.f32 %v1039, 0.2
    %v1168 = vmul.f32 %v1040, 0.2
    %v1169 = vmul.f32 %v1041, 0.2
    %v1170 = vmul.f32 %v1042, 0.2
    %v1171 = vmul.f32 %v1043, 0.2
    %v1172 = vmul.f32 %v1044, 0.2
    %v1173 = vmul.f32 %v1045, 0.2
    %v1174 = vmul.f32 %v1046, 0.2
    %v1175 = vmul.f32 %v1047, 0.2
    %v1176 = vmul.f32 %v1048, 0.2
    %v1177 = vmul.f32 %v1049, 0.2
    %v1178 = vmul.f32 %v1050, 0.2
    %v1179 = vmul.f32 %v1051, 0.2
    %v1180 = vmul.f32 %v1052, 0.2
    %v1181 = vmul.f32 %v1053, 0.2
    %v1182 = vmul.f32 %v1054, 0.2
    %v1183 = vmul.f32 %v1055, 0.2
    %v1184 = vmul.f32 %v1056, 0.2
    %v1185 = vmul.f32 %v1057, 0.2
    %v1186 = vmul.f32 %v1058, 0.2
    %v1187 = vmul.f32 %v1059, 0.2
    %v1188 = vmul.f32 %v1060, 0.2
    %v1189 = vmul.f32 %v1061, 0.2
    %v1190 = vmul.f32 %v1062, 0.2
    %v1191 = vsel %vm1063, %v999, %v1127
    %v1192 = vsel %vm1064, %v1000, %v1128
    %v1193 = vsel %vm1065, %v1001, %v1129
    %v1194 = vsel %vm1066, %v1002, %v1130
    %v1195 = vsel %vm1067, %v1003, %v1131
    %v1196 = vsel %vm1068, %v1004, %v1132
    %v1197 = vsel %vm1069, %v1005, %v1133
    %v1198 = vsel %vm1070, %v1006, %v1134
    %v1199 = vsel %vm1071, %v1007, %v1135
    %v1200 = vsel %vm1072, %v1008, %v1136
    %v1201 = vsel %vm1073, %v1009, %v1137
    %v1202 = vsel %vm1074, %v1010, %v1138
    %v1203 = vsel %vm1075, %v1011, %v1139
    %v1204 = vsel %vm1076, %v1012, %v1140
    %v1205 = vsel %vm1077, %v1013, %v1141
    %v1206 = vsel %vm1078, %v1014, %v1142
    %v1207 = vsel %vm1079, %v1015, %v1143
    %v1208 = vsel %vm1080, %v1016, %v1144
    %v1209 = vsel %vm1081, %v1017, %v1145
    %v1210 = vsel %vm1082, %v1018, %v1146
    %v1211 = vsel %vm1083, %v1019, %v1147
    %v1212 = vsel %vm1084, %v1020, %v1148
    %v1213 = vsel %vm1085, %v1021, %v1149
    %v1214 = vsel %vm1086, %v1022, %v1150
    %v1215 = vsel %vm1087, %v1023, %v1151
    %v1216 = vsel %vm1088, %v1024, %v1152
    %v1217 = vsel %vm1089, %v1025, %v1153
    %v1218 = vsel %vm1090, %v1026, %v1154
    %v1219 = vsel %vm1091, %v1027, %v1155
    %v1220 = vsel %vm1092, %v1028, %v1156
    %v1221 = vsel %vm1093, %v1029, %v1157
    %v1222 = vsel %vm1094, %v1030, %v1158
    %v1223 = vsel %vm1095, %v1031, %v1159
    %v1224 = vsel %vm1096, %v1032, %v1160
    %v1225 = vsel %vm1097, %v1033, %v1161
    %v1226 = vsel %vm1098, %v1034, %v1162
    %v1227 = vsel %vm1099, %v1035, %v1163
    %v1228 = vsel %vm1100, %v1036, %v1164
    %v1229 = vsel %vm1101, %v1037, %v1165
    %v1230 = vsel %vm1102, %v1038, %v1166
    %v1231 = vsel %vm1103, %v1039, %v1167
    %v1232 = vsel %vm1104, %v1040, %v1168
    %v1233 = vsel %vm1105, %v1041, %v1169
    %v1234 = vsel %vm1106, %v1042, %v1170
    %v1235 = vsel %vm1107, %v1043, %v1171
    %v1236 = vsel %vm1108, %v1044, %v1172
    %v1237 = vsel %vm1109, %v1045, %v1173
    %v1238 = vsel %vm1110, %v1046, %v1174
    %v1239 = vsel %vm1111, %v1047, %v1175
    %v1240 = vsel %vm1112, %v1048, %v1176
    %v1241 = vsel %vm1113, %v1049, %v1177
    %v1242 = vsel %vm1114, %v1050, %v1178
    %v1243 = vsel %vm1115, %v1051, %v1179
    %v1244 = vsel %vm1116, %v1052, %v1180
    %v1245 = vsel %vm1117, %v1053, %v1181
    %v1246 = vsel %vm1118, %v1054, %v1182
    %v1247 = vsel %vm1119, %v1055, %v1183
    %v1248 = vsel %vm1120, %v1056, %v1184
    %v1249 = vsel %vm1121, %v1057, %v1185
    %v1250 = vsel %vm1122, %v1058, %v1186
    %v1251 = vsel %vm1123, %v1059, %v1187
    %v1252 = vsel %vm1124, %v1060, %v1188
    %v1253 = vsel %vm1125, %v1061, %v1189
    %v1254 = vsel %vm1126, %v1062, %v1190
    %v1255 = vpack.c.bf16 %v1195, %v1191
    %v1256 = vpack.c.bf16 %v1196, %v1192
    %v1257 = vpack.c.bf16 %v1197, %v1193
    %v1258 = vpack.c.bf16 %v1198, %v1194
    %v1259 = vpack.c.bf16 %v1203, %v1199
    %v1260 = vpack.c.bf16 %v1204, %v1200
    %v1261 = vpack.c.bf16 %v1205, %v1201
    %v1262 = vpack.c.bf16 %v1206, %v1202
    %v1263 = vpack.c.bf16 %v1211, %v1207
    %v1264 = vpack.c.bf16 %v1212, %v1208
    %v1265 = vpack.c.bf16 %v1213, %v1209
    %v1266 = vpack.c.bf16 %v1214, %v1210
    %v1267 = vpack.c.bf16 %v1219, %v1215
    %v1268 = vpack.c.bf16 %v1220, %v1216
    %v1269 = vpack.c.bf16 %v1221, %v1217
    %v1270 = vpack.c.bf16 %v1222, %v1218
    %v1271 = vpack.c.bf16 %v1227, %v1223
    %v1272 = vpack.c.bf16 %v1228, %v1224
    %v1273 = vpack.c.bf16 %v1229, %v1225
    %v1274 = vpack.c.bf16 %v1230, %v1226
    %v1275 = vpack.c.bf16 %v1235, %v1231
    %v1276 = vpack.c.bf16 %v1236, %v1232
    %v1277 = vpack.c.bf16 %v1237, %v1233
    %v1278 = vpack.c.bf16 %v1238, %v1234
    %v1279 = vpack.c.bf16 %v1243, %v1239
    %v1280 = vpack.c.bf16 %v1244, %v1240
    %v1281 = vpack.c.bf16 %v1245, %v1241
    %v1282 = vpack.c.bf16 %v1246, %v1242
    %v1283 = vpack.c.bf16 %v1251, %v1247
    %v1284 = vpack.c.bf16 %v1252, %v1248
    %v1285 = vpack.c.bf16 %v1253, %v1249
    %v1286 = vpack.c.bf16 %v1254, %v1250
    %v1287 = vld [vmem:[#allocation3] sm:$0xff]
    %v1288 = vld [vmem:[#allocation3 + $0x8] sm:$0xff]
    %v1289 = vld [vmem:[#allocation3 + $0x10] sm:$0xff]
    %v1290 = vld [vmem:[#allocation3 + $0x18] sm:$0xff]
    %v1291 = vld [vmem:[#allocation3 + $0x20] sm:$0xff]
    %v1292 = vld [vmem:[#allocation3 + $0x28] sm:$0xff]
    %v1293 = vld [vmem:[#allocation3 + $0x30] sm:$0xff]
    %v1294 = vld [vmem:[#allocation3 + $0x38] sm:$0xff]
    %v1295 = vld [vmem:[#allocation3 + $0x40] sm:$0xff]
    %v1296 = vld [vmem:[#allocation3 + $0x48] sm:$0xff]
    %v1297 = vld [vmem:[#allocation3 + $0x50] sm:$0xff]
    %v1298 = vld [vmem:[#allocation3 + $0x58] sm:$0xff]
    %v1299 = vld [vmem:[#allocation3 + $0x60] sm:$0xff]
    %v1300 = vld [vmem:[#allocation3 + $0x68] sm:$0xff]
    %v1301 = vld [vmem:[#allocation3 + $0x70] sm:$0xff]
    %v1302 = vld [vmem:[#allocation3 + $0x78] sm:$0xff]
    %v1303 = vld [vmem:[#allocation3 + $0x80] sm:$0xff]
    %v1304 = vld [vmem:[#allocation3 + $0x88] sm:$0xff]
    %v1305 = vld [vmem:[#allocation3 + $0x90] sm:$0xff]
    %v1306 = vld [vmem:[#allocation3 + $0x98] sm:$0xff]
    %v1307 = vld [vmem:[#allocation3 + $0xa0] sm:$0xff]
    %v1308 = vld [vmem:[#allocation3 + $0xa8] sm:$0xff]
    %v1309 = vld [vmem:[#allocation3 + $0xb0] sm:$0xff]
    %v1310 = vld [vmem:[#allocation3 + $0xb8] sm:$0xff]
    %v1311 = vld [vmem:[#allocation3 + $0xc0] sm:$0xff]
    %v1312 = vld [vmem:[#allocation3 + $0xc8] sm:$0xff]
    %v1313 = vld [vmem:[#allocation3 + $0xd0] sm:$0xff]
    %v1314 = vld [vmem:[#allocation3 + $0xd8] sm:$0xff]
    %v1315 = vld [vmem:[#allocation3 + $0xe0] sm:$0xff]
    %v1316 = vld [vmem:[#allocation3 + $0xe8] sm:$0xff]
    %v1317 = vld [vmem:[#allocation3 + $0xf0] sm:$0xff]
    %v1318 = vld [vmem:[#allocation3 + $0xf8] sm:$0xff]
    %v1319 = vld [vmem:[#allocation3 + $0x100] sm:$0xff]
    %v1320 = vld [vmem:[#allocation3 + $0x108] sm:$0xff]
    %v1321 = vld [vmem:[#allocation3 + $0x110] sm:$0xff]
    %v1322 = vld [vmem:[#allocation3 + $0x118] sm:$0xff]
    %v1323 = vld [vmem:[#allocation3 + $0x120] sm:$0xff]
    %v1324 = vld [vmem:[#allocation3 + $0x128] sm:$0xff]
    %v1325 = vld [vmem:[#allocation3 + $0x130] sm:$0xff]
    %v1326 = vld [vmem:[#allocation3 + $0x138] sm:$0xff]
    %v1327 = vld [vmem:[#allocation3 + $0x140] sm:$0xff]
    %v1328 = vld [vmem:[#allocation3 + $0x148] sm:$0xff]
    %v1329 = vld [vmem:[#allocation3 + $0x150] sm:$0xff]
    %v1330 = vld [vmem:[#allocation3 + $0x158] sm:$0xff]
    %v1331 = vld [vmem:[#allocation3 + $0x160] sm:$0xff]
    %v1332 = vld [vmem:[#allocation3 + $0x168] sm:$0xff]
    %v1333 = vld [vmem:[#allocation3 + $0x170] sm:$0xff]
    %v1334 = vld [vmem:[#allocation3 + $0x178] sm:$0xff]
    %v1335 = vld [vmem:[#allocation3 + $0x180] sm:$0xff]
    %v1336 = vld [vmem:[#allocation3 + $0x188] sm:$0xff]
    %v1337 = vld [vmem:[#allocation3 + $0x190] sm:$0xff]
    %v1338 = vld [vmem:[#allocation3 + $0x198] sm:$0xff]
    %v1339 = vld [vmem:[#allocation3 + $0x1a0] sm:$0xff]
    %v1340 = vld [vmem:[#allocation3 + $0x1a8] sm:$0xff]
    %v1341 = vld [vmem:[#allocation3 + $0x1b0] sm:$0xff]
    %v1342 = vld [vmem:[#allocation3 + $0x1b8] sm:$0xff]
    %v1343 = vld [vmem:[#allocation3 + $0x1c0] sm:$0xff]
    %v1344 = vld [vmem:[#allocation3 + $0x1c8] sm:$0xff]
    %v1345 = vld [vmem:[#allocation3 + $0x1d0] sm:$0xff]
    %v1346 = vld [vmem:[#allocation3 + $0x1d8] sm:$0xff]
    %v1347 = vld [vmem:[#allocation3 + $0x1e0] sm:$0xff]
    %v1348 = vld [vmem:[#allocation3 + $0x1e8] sm:$0xff]
    %v1349 = vld [vmem:[#allocation3 + $0x1f0] sm:$0xff]
    %v1350 = vld [vmem:[#allocation3 + $0x1f8] sm:$0xff]
    %v1351 = vld [vmem:[%s6] sm:$0x3]
    %v1353 = vlaneseq
    %v1354 = vshrl.u32 %v1353, 7
    %v1355 = vsub.s32 0, %v1354
    %v1356 = vrot.slane %v1351, %v1355
    %v1357 = vlaneseq
    %v1358 = vshrl.u32 %v1357, 7
    %v1359 = vsub.s32 1, %v1358
    %v1360 = vrot.slane %v1351, %v1359
    %v1427 = vunpack.c.l.b16 %v1287
    %v1428 = vunpack.c.h.b16 %v1287
    %v1429 = vunpack.c.l.b16 %v1288
    %v1430 = vunpack.c.h.b16 %v1288
    %v1431 = vunpack.c.l.b16 %v1289
    %v1432 = vunpack.c.h.b16 %v1289
    %v1433 = vunpack.c.l.b16 %v1290
    %v1434 = vunpack.c.h.b16 %v1290
    %v1435 = vunpack.c.l.b16 %v1291
    %v1436 = vunpack.c.h.b16 %v1291
    %v1437 = vunpack.c.l.b16 %v1292
    %v1438 = vunpack.c.h.b16 %v1292
    %v1439 = vunpack.c.l.b16 %v1293
    %v1440 = vunpack.c.h.b16 %v1293
    %v1441 = vunpack.c.l.b16 %v1294
    %v1442 = vunpack.c.h.b16 %v1294
    %v1443 = vunpack.c.l.b16 %v1295
    %v1444 = vunpack.c.h.b16 %v1295
    %v1445 = vunpack.c.l.b16 %v1296
    %v1446 = vunpack.c.h.b16 %v1296
    %v1447 = vunpack.c.l.b16 %v1297
    %v1448 = vunpack.c.h.b16 %v1297
    %v1449 = vunpack.c.l.b16 %v1298
    %v1450 = vunpack.c.h.b16 %v1298
    %v1451 = vunpack.c.l.b16 %v1299
    %v1452 = vunpack.c.h.b16 %v1299
    %v1453 = vunpack.c.l.b16 %v1300
    %v1454 = vunpack.c.h.b16 %v1300
    %v1455 = vunpack.c.l.b16 %v1301
    %v1456 = vunpack.c.h.b16 %v1301
    %v1457 = vunpack.c.l.b16 %v1302
    %v1458 = vunpack.c.h.b16 %v1302
    %v1459 = vunpack.c.l.b16 %v1303
    %v1460 = vunpack.c.h.b16 %v1303
    %v1461 = vunpack.c.l.b16 %v1304
    %v1462 = vunpack.c.h.b16 %v1304
    %v1463 = vunpack.c.l.b16 %v1305
    %v1464 = vunpack.c.h.b16 %v1305
    %v1465 = vunpack.c.l.b16 %v1306
    %v1466 = vunpack.c.h.b16 %v1306
    %v1467 = vunpack.c.l.b16 %v1307
    %v1468 = vunpack.c.h.b16 %v1307
    %v1469 = vunpack.c.l.b16 %v1308
    %v1470 = vunpack.c.h.b16 %v1308
    %v1471 = vunpack.c.l.b16 %v1309
    %v1472 = vunpack.c.h.b16 %v1309
    %v1473 = vunpack.c.l.b16 %v1310
    %v1474 = vunpack.c.h.b16 %v1310
    %v1475 = vunpack.c.l.b16 %v1311
    %v1476 = vunpack.c.h.b16 %v1311
    %v1477 = vunpack.c.l.b16 %v1312
    %v1478 = vunpack.c.h.b16 %v1312
    %v1479 = vunpack.c.l.b16 %v1313
    %v1480 = vunpack.c.h.b16 %v1313
    %v1481 = vunpack.c.l.b16 %v1314
    %v1482 = vunpack.c.h.b16 %v1314
    %v1483 = vunpack.c.l.b16 %v1315
    %v1484 = vunpack.c.h.b16 %v1315
    %v1485 = vunpack.c.l.b16 %v1316
    %v1486 = vunpack.c.h.b16 %v1316
    %v1487 = vunpack.c.l.b16 %v1317
    %v1488 = vunpack.c.h.b16 %v1317
    %v1489 = vunpack.c.l.b16 %v1318
    %v1490 = vunpack.c.h.b16 %v1318
    %v1491 = vunpack.c.l.b16 %v1319
    %v1492 = vunpack.c.h.b16 %v1319
    %v1493 = vunpack.c.l.b16 %v1320
    %v1494 = vunpack.c.h.b16 %v1320
    %v1495 = vunpack.c.l.b16 %v1321
    %v1496 = vunpack.c.h.b16 %v1321
    %v1497 = vunpack.c.l.b16 %v1322
    %v1498 = vunpack.c.h.b16 %v1322
    %v1499 = vunpack.c.l.b16 %v1323
    %v1500 = vunpack.c.h.b16 %v1323
    %v1501 = vunpack.c.l.b16 %v1324
    %v1502 = vunpack.c.h.b16 %v1324
    %v1503 = vunpack.c.l.b16 %v1325
    %v1504 = vunpack.c.h.b16 %v1325
    %v1505 = vunpack.c.l.b16 %v1326
    %v1506 = vunpack.c.h.b16 %v1326
    %v1507 = vunpack.c.l.b16 %v1327
    %v1508 = vunpack.c.h.b16 %v1327
    %v1509 = vunpack.c.l.b16 %v1328
    %v1510 = vunpack.c.h.b16 %v1328
    %v1511 = vunpack.c.l.b16 %v1329
    %v1512 = vunpack.c.h.b16 %v1329
    %v1513 = vunpack.c.l.b16 %v1330
    %v1514 = vunpack.c.h.b16 %v1330
    %v1515 = vunpack.c.l.b16 %v1331
    %v1516 = vunpack.c.h.b16 %v1331
    %v1517 = vunpack.c.l.b16 %v1332
    %v1518 = vunpack.c.h.b16 %v1332
    %v1519 = vunpack.c.l.b16 %v1333
    %v1520 = vunpack.c.h.b16 %v1333
    %v1521 = vunpack.c.l.b16 %v1334
    %v1522 = vunpack.c.h.b16 %v1334
    %v1523 = vunpack.c.l.b16 %v1335
    %v1524 = vunpack.c.h.b16 %v1335
    %v1525 = vunpack.c.l.b16 %v1336
    %v1526 = vunpack.c.h.b16 %v1336
    %v1527 = vunpack.c.l.b16 %v1337
    %v1528 = vunpack.c.h.b16 %v1337
    %v1529 = vunpack.c.l.b16 %v1338
    %v1530 = vunpack.c.h.b16 %v1338
    %v1531 = vunpack.c.l.b16 %v1339
    %v1532 = vunpack.c.h.b16 %v1339
    %v1533 = vunpack.c.l.b16 %v1340
    %v1534 = vunpack.c.h.b16 %v1340
    %v1535 = vunpack.c.l.b16 %v1341
    %v1536 = vunpack.c.h.b16 %v1341
    %v1537 = vunpack.c.l.b16 %v1342
    %v1538 = vunpack.c.h.b16 %v1342
    %v1539 = vunpack.c.l.b16 %v1343
    %v1540 = vunpack.c.h.b16 %v1343
    %v1541 = vunpack.c.l.b16 %v1344
    %v1542 = vunpack.c.h.b16 %v1344
    %v1543 = vunpack.c.l.b16 %v1345
    %v1544 = vunpack.c.h.b16 %v1345
    %v1545 = vunpack.c.l.b16 %v1346
    %v1546 = vunpack.c.h.b16 %v1346
    %v1547 = vunpack.c.l.b16 %v1347
    %v1548 = vunpack.c.h.b16 %v1347
    %v1549 = vunpack.c.l.b16 %v1348
    %v1550 = vunpack.c.h.b16 %v1348
    %v1551 = vunpack.c.l.b16 %v1349
    %v1552 = vunpack.c.h.b16 %v1349
    %v1553 = vunpack.c.l.b16 %v1350
    %v1554 = vunpack.c.h.b16 %v1350
    %v1555 = vpack.c.b16 %v1429, %v1427
    %v1556 = vpack.c.b16 %v1430, %v1428
    %v1557 = vpack.c.b16 %v1433, %v1431
    %v1558 = vpack.c.b16 %v1434, %v1432
    %v1559 = vpack.c.b16 %v1437, %v1435
    %v1560 = vpack.c.b16 %v1438, %v1436
    %v1561 = vpack.c.b16 %v1441, %v1439
    %v1562 = vpack.c.b16 %v1442, %v1440
    %v1563 = vpack.c.b16 %v1445, %v1443
    %v1564 = vpack.c.b16 %v1446, %v1444
    %v1565 = vpack.c.b16 %v1449, %v1447
    %v1566 = vpack.c.b16 %v1450, %v1448
    %v1567 = vpack.c.b16 %v1453, %v1451
    %v1568 = vpack.c.b16 %v1454, %v1452
    %v1569 = vpack.c.b16 %v1457, %v1455
    %v1570 = vpack.c.b16 %v1458, %v1456
    %v1571 = vpack.c.b16 %v1461, %v1459
    %v1572 = vpack.c.b16 %v1462, %v1460
    %v1573 = vpack.c.b16 %v1465, %v1463
    %v1574 = vpack.c.b16 %v1466, %v1464
    %v1575 = vpack.c.b16 %v1469, %v1467
    %v1576 = vpack.c.b16 %v1470, %v1468
    %v1577 = vpack.c.b16 %v1473, %v1471
    %v1578 = vpack.c.b16 %v1474, %v1472
    %v1579 = vpack.c.b16 %v1477, %v1475
    %v1580 = vpack.c.b16 %v1478, %v1476
    %v1581 = vpack.c.b16 %v1481, %v1479
    %v1582 = vpack.c.b16 %v1482, %v1480
    %v1583 = vpack.c.b16 %v1485, %v1483
    %v1584 = vpack.c.b16 %v1486, %v1484
    %v1585 = vpack.c.b16 %v1489, %v1487
    %v1586 = vpack.c.b16 %v1490, %v1488
    %v1587 = vpack.c.b16 %v1493, %v1491
    %v1588 = vpack.c.b16 %v1494, %v1492
    %v1589 = vpack.c.b16 %v1497, %v1495
    %v1590 = vpack.c.b16 %v1498, %v1496
    %v1591 = vpack.c.b16 %v1501, %v1499
    %v1592 = vpack.c.b16 %v1502, %v1500
    %v1593 = vpack.c.b16 %v1505, %v1503
    %v1594 = vpack.c.b16 %v1506, %v1504
    %v1595 = vpack.c.b16 %v1509, %v1507
    %v1596 = vpack.c.b16 %v1510, %v1508
    %v1597 = vpack.c.b16 %v1513, %v1511
    %v1598 = vpack.c.b16 %v1514, %v1512
    %v1599 = vpack.c.b16 %v1517, %v1515
    %v1600 = vpack.c.b16 %v1518, %v1516
    %v1601 = vpack.c.b16 %v1521, %v1519
    %v1602 = vpack.c.b16 %v1522, %v1520
    %v1603 = vpack.c.b16 %v1525, %v1523
    %v1604 = vpack.c.b16 %v1526, %v1524
    %v1605 = vpack.c.b16 %v1529, %v1527
    %v1606 = vpack.c.b16 %v1530, %v1528
    %v1607 = vpack.c.b16 %v1533, %v1531
    %v1608 = vpack.c.b16 %v1534, %v1532
    %v1609 = vpack.c.b16 %v1537, %v1535
    %v1610 = vpack.c.b16 %v1538, %v1536
    %v1611 = vpack.c.b16 %v1541, %v1539
    %v1612 = vpack.c.b16 %v1542, %v1540
    %v1613 = vpack.c.b16 %v1545, %v1543
    %v1614 = vpack.c.b16 %v1546, %v1544
    %v1615 = vpack.c.b16 %v1549, %v1547
    %v1616 = vpack.c.b16 %v1550, %v1548
    %v1617 = vpack.c.b16 %v1553, %v1551
    %v1618 = vpack.c.b16 %v1554, %v1552
    %1683 = vmatprep.subr.bf16.mxu0 %v1570
    %1684 = vmatpush1.bf16.msra.mxu0 %v1569
    %1685 = vmatprep.subr.bf16.mxu0 %v1568
    %1686 = vmatpush1.bf16.msra.mxu0 %v1567
    %1687 = vmatprep.subr.bf16.mxu0 %v1566
    %1688 = vmatpush1.bf16.msra.mxu0 %v1565
    %1689 = vmatprep.subr.bf16.mxu0 %v1564
    %1690 = vmatpush1.bf16.msra.mxu0 %v1563
    %1691 = vmatprep.subr.bf16.mxu0 %v1562
    %1692 = vmatpush1.bf16.msra.mxu0 %v1561
    %1693 = vmatprep.subr.bf16.mxu0 %v1560
    %1694 = vmatpush1.bf16.msra.mxu0 %v1559
    %1695 = vmatprep.subr.bf16.mxu0 %v1558
    %1696 = vmatpush1.bf16.msra.mxu0 %v1557
    %1697 = vmatprep.subr.bf16.mxu0 %v1556
    %1698 = vmatpush1.bf16.msra.mxu0 %v1555
    %1699 = vmatprep.subr.bf16.mxu0 %v1586
    %1700 = vmatpush2.bf16.msra.mxu0 %v1585
    %1701 = vmatprep.subr.bf16.mxu0 %v1584
    %1702 = vmatpush2.bf16.msra.mxu0 %v1583
    %1703 = vmatprep.subr.bf16.mxu0 %v1582
    %1704 = vmatpush2.bf16.msra.mxu0 %v1581
    %1705 = vmatprep.subr.bf16.mxu0 %v1580
    %1706 = vmatpush2.bf16.msra.mxu0 %v1579
    %1707 = vmatprep.subr.bf16.mxu0 %v1578
    %1708 = vmatpush2.bf16.msra.mxu0 %v1577
    %1709 = vmatprep.subr.bf16.mxu0 %v1576
    %1710 = vmatpush2.bf16.msra.mxu0 %v1575
    %1711 = vmatprep.subr.bf16.mxu0 %v1574
    %1712 = vmatpush2.bf16.msra.mxu0 %v1573
    %1713 = vmatprep.subr.bf16.mxu0 %v1572
    %1714 = vmatpush2.bf16.msra.mxu0 %v1571
    %1715 = vmatprep.mubr.bf16.mxu0 %v1256
    %1716 = vmatmul.mubr.bf16.gmra.mxu0 %v1255
    %v1717 = vpop.f32.mrf.mxu0
    %v1718 = vadd.f32 %v1356, %v1717
    %v1719 = vpop.f32.mrf.mxu0
    %v1720 = vadd.f32 %v1360, %v1719
    %v1721 = vpop.f32.mrf.mxu0
    %v1722 = vadd.f32 %v1356, %v1721
    %v1723 = vpop.f32.mrf.mxu0
    %v1724 = vadd.f32 %v1360, %v1723
    %1725 = vmatprep.mubr.bf16.mxu0 %v1260
    %1726 = vmatmul.mubr.bf16.gmra.mxu0 %v1259
    %v1727 = vpop.f32.mrf.mxu0
    %v1728 = vadd.f32 %v1356, %v1727
    %v1729 = vpop.f32.mrf.mxu0
    %v1730 = vadd.f32 %v1360, %v1729
    %v1731 = vpop.f32.mrf.mxu0
    %v1732 = vadd.f32 %v1356, %v1731
    %v1733 = vpop.f32.mrf.mxu0
    %v1734 = vadd.f32 %v1360, %v1733
    %1735 = vmatprep.mubr.bf16.mxu0 %v1264
    %1736 = vmatmul.mubr.bf16.gmra.mxu0 %v1263
    %v1737 = vpop.f32.mrf.mxu0
    %v1738 = vadd.f32 %v1356, %v1737
    %v1739 = vpop.f32.mrf.mxu0
    %v1740 = vadd.f32 %v1360, %v1739
    %v1741 = vpop.f32.mrf.mxu0
    %v1742 = vadd.f32 %v1356, %v1741
    %v1743 = vpop.f32.mrf.mxu0
    %v1744 = vadd.f32 %v1360, %v1743
    %1745 = vmatprep.mubr.bf16.mxu0 %v1268
    %1746 = vmatmul.mubr.bf16.gmra.mxu0 %v1267
    %v1747 = vpop.f32.mrf.mxu0
    %v1748 = vadd.f32 %v1356, %v1747
    %v1749 = vpop.f32.mrf.mxu0
    %v1750 = vadd.f32 %v1360, %v1749
    %v1751 = vpop.f32.mrf.mxu0
    %v1752 = vadd.f32 %v1356, %v1751
    %v1753 = vpop.f32.mrf.mxu0
    %v1754 = vadd.f32 %v1360, %v1753
    %1755 = vmatprep.mubr.bf16.mxu0 %v1272
    %1756 = vmatmul.mubr.bf16.gmra.mxu0 %v1271
    %v1757 = vpop.f32.mrf.mxu0
    %v1758 = vadd.f32 %v1356, %v1757
    %v1759 = vpop.f32.mrf.mxu0
    %v1760 = vadd.f32 %v1360, %v1759
    %v1761 = vpop.f32.mrf.mxu0
    %v1762 = vadd.f32 %v1356, %v1761
    %v1763 = vpop.f32.mrf.mxu0
    %v1764 = vadd.f32 %v1360, %v1763
    %1765 = vmatprep.mubr.bf16.mxu0 %v1276
    %1766 = vmatmul.mubr.bf16.gmra.mxu0 %v1275
    %v1767 = vpop.f32.mrf.mxu0
    %v1768 = vadd.f32 %v1356, %v1767
    %v1769 = vpop.f32.mrf.mxu0
    %v1770 = vadd.f32 %v1360, %v1769
    %v1771 = vpop.f32.mrf.mxu0
    %v1772 = vadd.f32 %v1356, %v1771
    %v1773 = vpop.f32.mrf.mxu0
    %v1774 = vadd.f32 %v1360, %v1773
    %1775 = vmatprep.mubr.bf16.mxu0 %v1280
    %1776 = vmatmul.mubr.bf16.gmra.mxu0 %v1279
    %v1777 = vpop.f32.mrf.mxu0
    %v1778 = vadd.f32 %v1356, %v1777
    %v1779 = vpop.f32.mrf.mxu0
    %v1780 = vadd.f32 %v1360, %v1779
    %v1781 = vpop.f32.mrf.mxu0
    %v1782 = vadd.f32 %v1356, %v1781
    %v1783 = vpop.f32.mrf.mxu0
    %v1784 = vadd.f32 %v1360, %v1783
    %1785 = vmatprep.mubr.bf16.mxu0 %v1284
    %1786 = vmatmul.mubr.bf16.gmra.mxu0 %v1283
    %v1787 = vpop.f32.mrf.mxu0
    %v1788 = vadd.f32 %v1356, %v1787
    %v1789 = vpop.f32.mrf.mxu0
    %v1790 = vadd.f32 %v1360, %v1789
    %v1791 = vpop.f32.mrf.mxu0
    %v1792 = vadd.f32 %v1356, %v1791
    %v1793 = vpop.f32.mrf.mxu0
    %v1794 = vadd.f32 %v1360, %v1793
    %1795 = vdwg.mxu0
    %1796 = vmatprep.subr.bf16.mxu0 %v1602
    %1797 = vmatpush1.bf16.msra.mxu0 %v1601
    %1798 = vmatprep.subr.bf16.mxu0 %v1600
    %1799 = vmatpush1.bf16.msra.mxu0 %v1599
    %1800 = vmatprep.subr.bf16.mxu0 %v1598
    %1801 = vmatpush1.bf16.msra.mxu0 %v1597
    %1802 = vmatprep.subr.bf16.mxu0 %v1596
    %1803 = vmatpush1.bf16.msra.mxu0 %v1595
    %1804 = vmatprep.subr.bf16.mxu0 %v1594
    %1805 = vmatpush1.bf16.msra.mxu0 %v1593
    %1806 = vmatprep.subr.bf16.mxu0 %v1592
    %1807 = vmatpush1.bf16.msra.mxu0 %v1591
    %1808 = vmatprep.subr.bf16.mxu0 %v1590
    %1809 = vmatpush1.bf16.msra.mxu0 %v1589
    %1810 = vmatprep.subr.bf16.mxu0 %v1588
    %1811 = vmatpush1.bf16.msra.mxu0 %v1587
    %1812 = vmatprep.subr.bf16.mxu0 %v1618
    %1813 = vmatpush2.bf16.msra.mxu0 %v1617
    %1814 = vmatprep.subr.bf16.mxu0 %v1616
    %1815 = vmatpush2.bf16.msra.mxu0 %v1615
    %1816 = vmatprep.subr.bf16.mxu0 %v1614
    %1817 = vmatpush2.bf16.msra.mxu0 %v1613
    %1818 = vmatprep.subr.bf16.mxu0 %v1612
    %1819 = vmatpush2.bf16.msra.mxu0 %v1611
    %1820 = vmatprep.subr.bf16.mxu0 %v1610
    %1821 = vmatpush2.bf16.msra.mxu0 %v1609
    %1822 = vmatprep.subr.bf16.mxu0 %v1608
    %1823 = vmatpush2.bf16.msra.mxu0 %v1607
    %1824 = vmatprep.subr.bf16.mxu0 %v1606
    %1825 = vmatpush2.bf16.msra.mxu0 %v1605
    %1826 = vmatprep.subr.bf16.mxu0 %v1604
    %1827 = vmatpush2.bf16.msra.mxu0 %v1603
    %1828 = vmatprep.mubr.bf16.mxu0 %v1258
    %1829 = vmatmul.mubr.bf16.gmra.mxu0 %v1257
    %v1830 = vpop.f32.mrf.mxu0
    %v1831 = vadd.f32 %v1718, %v1830
    %v1832 = vpop.f32.mrf.mxu0
    %v1833 = vadd.f32 %v1720, %v1832
    %v1834 = vpop.f32.mrf.mxu0
    %v1835 = vadd.f32 %v1722, %v1834
    %v1836 = vpop.f32.mrf.mxu0
    %v1837 = vadd.f32 %v1724, %v1836
    %1838 = vmatprep.mubr.bf16.mxu0 %v1262
    %1839 = vmatmul.mubr.bf16.gmra.mxu0 %v1261
    %v1840 = vpop.f32.mrf.mxu0
    %v1841 = vadd.f32 %v1728, %v1840
    %v1842 = vpop.f32.mrf.mxu0
    %v1843 = vadd.f32 %v1730, %v1842
    %v1844 = vpop.f32.mrf.mxu0
    %v1845 = vadd.f32 %v1732, %v1844
    %v1846 = vpop.f32.mrf.mxu0
    %v1847 = vadd.f32 %v1734, %v1846
    %1848 = vmatprep.mubr.bf16.mxu0 %v1266
    %1849 = vmatmul.mubr.bf16.gmra.mxu0 %v1265
    %v1850 = vpop.f32.mrf.mxu0
    %v1851 = vadd.f32 %v1738, %v1850
    %v1852 = vpop.f32.mrf.mxu0
    %v1853 = vadd.f32 %v1740, %v1852
    %v1854 = vpop.f32.mrf.mxu0
    %v1855 = vadd.f32 %v1742, %v1854
    %v1856 = vpop.f32.mrf.mxu0
    %v1857 = vadd.f32 %v1744, %v1856
    %1858 = vmatprep.mubr.bf16.mxu0 %v1270
    %1859 = vmatmul.mubr.bf16.gmra.mxu0 %v1269
    %v1860 = vpop.f32.mrf.mxu0
    %v1861 = vadd.f32 %v1748, %v1860
    %v1862 = vpop.f32.mrf.mxu0
    %v1863 = vadd.f32 %v1750, %v1862
    %v1864 = vpop.f32.mrf.mxu0
    %v1865 = vadd.f32 %v1752, %v1864
    %v1866 = vpop.f32.mrf.mxu0
    %v1867 = vadd.f32 %v1754, %v1866
    %1868 = vmatprep.mubr.bf16.mxu0 %v1274
    %1869 = vmatmul.mubr.bf16.gmra.mxu0 %v1273
    %v1870 = vpop.f32.mrf.mxu0
    %v1871 = vadd.f32 %v1758, %v1870
    %v1872 = vpop.f32.mrf.mxu0
    %v1873 = vadd.f32 %v1760, %v1872
    %v1874 = vpop.f32.mrf.mxu0
    %v1875 = vadd.f32 %v1762, %v1874
    %v1876 = vpop.f32.mrf.mxu0
    %v1877 = vadd.f32 %v1764, %v1876
    %1878 = vmatprep.mubr.bf16.mxu0 %v1278
    %1879 = vmatmul.mubr.bf16.gmra.mxu0 %v1277
    %v1880 = vpop.f32.mrf.mxu0
    %v1881 = vadd.f32 %v1768, %v1880
    %v1882 = vpop.f32.mrf.mxu0
    %v1883 = vadd.f32 %v1770, %v1882
    %v1884 = vpop.f32.mrf.mxu0
    %v1885 = vadd.f32 %v1772, %v1884
    %v1886 = vpop.f32.mrf.mxu0
    %v1887 = vadd.f32 %v1774, %v1886
    %1888 = vmatprep.mubr.bf16.mxu0 %v1282
    %1889 = vmatmul.mubr.bf16.gmra.mxu0 %v1281
    %v1890 = vpop.f32.mrf.mxu0
    %v1891 = vadd.f32 %v1778, %v1890
    %v1892 = vpop.f32.mrf.mxu0
    %v1893 = vadd.f32 %v1780, %v1892
    %v1894 = vpop.f32.mrf.mxu0
    %v1895 = vadd.f32 %v1782, %v1894
    %v1896 = vpop.f32.mrf.mxu0
    %v1897 = vadd.f32 %v1784, %v1896
    %1898 = vmatprep.mubr.bf16.mxu0 %v1286
    %1899 = vmatmul.mubr.bf16.gmra.mxu0 %v1285
    %v1900 = vpop.f32.mrf.mxu0
    %v1901 = vadd.f32 %v1788, %v1900
    %v1902 = vpop.f32.mrf.mxu0
    %v1903 = vadd.f32 %v1790, %v1902
    %v1904 = vpop.f32.mrf.mxu0
    %v1905 = vadd.f32 %v1792, %v1904
    %v1906 = vpop.f32.mrf.mxu0
    %v1907 = vadd.f32 %v1794, %v1906
    %1908 = vdwg.mxu0
    %v1909 = vld [vmem:[%s7] sm:$0x3]
    %v1910 = vld [vmem:[%s8] sm:$0x3]
    %v1911 = vadd.f32 %v1831, %v1833
    %1912 = vadd.xlane.f32.xlu0 %v1911
    %v1913 = vpop.xlane.xlu0 %1912
    %v1914 = vadd.f32 %v1835, %v1837
    %1915 = vadd.xlane.f32.xlu0 %v1914
    %v1916 = vpop.xlane.xlu0 %1915
    %v1917 = vadd.f32 %v1841, %v1843
    %1918 = vadd.xlane.f32.xlu0 %v1917
    %v1919 = vpop.xlane.xlu0 %1918
    %v1920 = vadd.f32 %v1845, %v1847
    %1921 = vadd.xlane.f32.xlu0 %v1920
    %v1922 = vpop.xlane.xlu0 %1921
    %v1923 = vadd.f32 %v1851, %v1853
    %1924 = vadd.xlane.f32.xlu0 %v1923
    %v1925 = vpop.xlane.xlu0 %1924
    %v1926 = vadd.f32 %v1855, %v1857
    %1927 = vadd.xlane.f32.xlu0 %v1926
    %v1928 = vpop.xlane.xlu0 %1927
    %v1929 = vadd.f32 %v1861, %v1863
    %1930 = vadd.xlane.f32.xlu0 %v1929
    %v1931 = vpop.xlane.xlu0 %1930
    %v1932 = vadd.f32 %v1865, %v1867
    %1933 = vadd.xlane.f32.xlu0 %v1932
    %v1934 = vpop.xlane.xlu0 %1933
    %v1935 = vadd.f32 %v1871, %v1873
    %1936 = vadd.xlane.f32.xlu0 %v1935
    %v1937 = vpop.xlane.xlu0 %1936
    %v1938 = vadd.f32 %v1875, %v1877
    %1939 = vadd.xlane.f32.xlu0 %v1938
    %v1940 = vpop.xlane.xlu0 %1939
    %v1941 = vadd.f32 %v1881, %v1883
    %1942 = vadd.xlane.f32.xlu0 %v1941
    %v1943 = vpop.xlane.xlu0 %1942
    %v1944 = vadd.f32 %v1885, %v1887
    %1945 = vadd.xlane.f32.xlu0 %v1944
    %v1946 = vpop.xlane.xlu0 %1945
    %v1947 = vadd.f32 %v1891, %v1893
    %1948 = vadd.xlane.f32.xlu0 %v1947
    %v1949 = vpop.xlane.xlu0 %1948
    %v1950 = vadd.f32 %v1895, %v1897
    %1951 = vadd.xlane.f32.xlu0 %v1950
    %v1952 = vpop.xlane.xlu0 %1951
    %v1953 = vadd.f32 %v1901, %v1903
    %1954 = vadd.xlane.f32.xlu0 %v1953
    %v1955 = vpop.xlane.xlu0 %1954
    %v1956 = vadd.f32 %v1905, %v1907
    %1957 = vadd.xlane.f32.xlu0 %v1956
    %v1958 = vpop.xlane.xlu0 %1957
    %v1959 = vmul.f32 %v1831, %v1831
    %v1960 = vmul.f32 %v1833, %v1833
    %v1961 = vmul.f32 %v1835, %v1835
    %v1962 = vmul.f32 %v1837, %v1837
    %v1963 = vmul.f32 %v1841, %v1841
    %v1964 = vmul.f32 %v1843, %v1843
    %v1965 = vmul.f32 %v1845, %v1845
    %v1966 = vmul.f32 %v1847, %v1847
    %v1967 = vmul.f32 %v1851, %v1851
    %v1968 = vmul.f32 %v1853, %v1853
    %v1969 = vmul.f32 %v1855, %v1855
    %v1970 = vmul.f32 %v1857, %v1857
    %v1971 = vmul.f32 %v1861, %v1861
    %v1972 = vmul.f32 %v1863, %v1863
    %v1973 = vmul.f32 %v1865, %v1865
    %v1974 = vmul.f32 %v1867, %v1867
    %v1975 = vmul.f32 %v1871, %v1871
    %v1976 = vmul.f32 %v1873, %v1873
    %v1977 = vmul.f32 %v1875, %v1875
    %v1978 = vmul.f32 %v1877, %v1877
    %v1979 = vmul.f32 %v1881, %v1881
    %v1980 = vmul.f32 %v1883, %v1883
    %v1981 = vmul.f32 %v1885, %v1885
    %v1982 = vmul.f32 %v1887, %v1887
    %v1983 = vmul.f32 %v1891, %v1891
    %v1984 = vmul.f32 %v1893, %v1893
    %v1985 = vmul.f32 %v1895, %v1895
    %v1986 = vmul.f32 %v1897, %v1897
    %v1987 = vmul.f32 %v1901, %v1901
    %v1988 = vmul.f32 %v1903, %v1903
    %v1989 = vmul.f32 %v1905, %v1905
    %v1990 = vmul.f32 %v1907, %v1907
    %v1991 = vadd.f32 %v1959, %v1960
    %1992 = vadd.xlane.f32.xlu0 %v1991
    %v1993 = vpop.xlane.xlu0 %1992
    %v1994 = vadd.f32 %v1961, %v1962
    %1995 = vadd.xlane.f32.xlu0 %v1994
    %v1996 = vpop.xlane.xlu0 %1995
    %v1997 = vadd.f32 %v1963, %v1964
    %1998 = vadd.xlane.f32.xlu0 %v1997
    %v1999 = vpop.xlane.xlu0 %1998
    %v2000 = vadd.f32 %v1965, %v1966
    %2001 = vadd.xlane.f32.xlu0 %v2000
    %v2002 = vpop.xlane.xlu0 %2001
    %v2003 = vadd.f32 %v1967, %v1968
    %2004 = vadd.xlane.f32.xlu0 %v2003
    %v2005 = vpop.xlane.xlu0 %2004
    %v2006 = vadd.f32 %v1969, %v1970
    %2007 = vadd.xlane.f32.xlu0 %v2006
    %v2008 = vpop.xlane.xlu0 %2007
    %v2009 = vadd.f32 %v1971, %v1972
    %2010 = vadd.xlane.f32.xlu0 %v2009
    %v2011 = vpop.xlane.xlu0 %2010
    %v2012 = vadd.f32 %v1973, %v1974
    %2013 = vadd.xlane.f32.xlu0 %v2012
    %v2014 = vpop.xlane.xlu0 %2013
    %v2015 = vadd.f32 %v1975, %v1976
    %2016 = vadd.xlane.f32.xlu0 %v2015
    %v2017 = vpop.xlane.xlu0 %2016
    %v2018 = vadd.f32 %v1977, %v1978
    %2019 = vadd.xlane.f32.xlu0 %v2018
    %v2020 = vpop.xlane.xlu0 %2019
    %v2021 = vadd.f32 %v1979, %v1980
    %2022 = vadd.xlane.f32.xlu0 %v2021
    %v2023 = vpop.xlane.xlu0 %2022
    %v2024 = vadd.f32 %v1981, %v1982
    %2025 = vadd.xlane.f32.xlu0 %v2024
    %v2026 = vpop.xlane.xlu0 %2025
    %v2027 = vadd.f32 %v1983, %v1984
    %2028 = vadd.xlane.f32.xlu0 %v2027
    %v2029 = vpop.xlane.xlu0 %2028
    %v2030 = vadd.f32 %v1985, %v1986
    %2031 = vadd.xlane.f32.xlu0 %v2030
    %v2032 = vpop.xlane.xlu0 %2031
    %v2033 = vadd.f32 %v1987, %v1988
    %2034 = vadd.xlane.f32.xlu0 %v2033
    %v2035 = vpop.xlane.xlu0 %2034
    %v2036 = vadd.f32 %v1989, %v1990
    %2037 = vadd.xlane.f32.xlu0 %v2036
    %v2038 = vpop.xlane.xlu0 %2037
    %v2039 = vmul.f32 %v1913, 0.00390625
    %v2040 = vmul.f32 %v1916, 0.00390625
    %v2041 = vmul.f32 %v1919, 0.00390625
    %v2042 = vmul.f32 %v1922, 0.00390625
    %v2043 = vmul.f32 %v1925, 0.00390625
    %v2044 = vmul.f32 %v1928, 0.00390625
    %v2045 = vmul.f32 %v1931, 0.00390625
    %v2046 = vmul.f32 %v1934, 0.00390625
    %v2047 = vmul.f32 %v1937, 0.00390625
    %v2048 = vmul.f32 %v1940, 0.00390625
    %v2049 = vmul.f32 %v1943, 0.00390625
    %v2050 = vmul.f32 %v1946, 0.00390625
    %v2051 = vmul.f32 %v1949, 0.00390625
    %v2052 = vmul.f32 %v1952, 0.00390625
    %v2053 = vmul.f32 %v1955, 0.00390625
    %v2054 = vmul.f32 %v1958, 0.00390625
    %v2055 = vmul.f32 %v1993, 0.00390625
    %v2056 = vmul.f32 %v1996, 0.00390625
    %v2057 = vmul.f32 %v1999, 0.00390625
    %v2058 = vmul.f32 %v2002, 0.00390625
    %v2059 = vmul.f32 %v2005, 0.00390625
    %v2060 = vmul.f32 %v2008, 0.00390625
    %v2061 = vmul.f32 %v2011, 0.00390625
    %v2062 = vmul.f32 %v2014, 0.00390625
    %v2063 = vmul.f32 %v2017, 0.00390625
    %v2064 = vmul.f32 %v2020, 0.00390625
    %v2065 = vmul.f32 %v2023, 0.00390625
    %v2066 = vmul.f32 %v2026, 0.00390625
    %v2067 = vmul.f32 %v2029, 0.00390625
    %v2068 = vmul.f32 %v2032, 0.00390625
    %v2069 = vmul.f32 %v2035, 0.00390625
    %v2070 = vmul.f32 %v2038, 0.00390625
    %v2071 = vmul.f32 %v2039, %v2039
    %v2072 = vmul.f32 %v2040, %v2040
    %v2073 = vmul.f32 %v2041, %v2041
    %v2074 = vmul.f32 %v2042, %v2042
    %v2075 = vmul.f32 %v2043, %v2043
    %v2076 = vmul.f32 %v2044, %v2044
    %v2077 = vmul.f32 %v2045, %v2045
    %v2078 = vmul.f32 %v2046, %v2046
    %v2079 = vmul.f32 %v2047, %v2047
    %v2080 = vmul.f32 %v2048, %v2048
    %v2081 = vmul.f32 %v2049, %v2049
    %v2082 = vmul.f32 %v2050, %v2050
    %v2083 = vmul.f32 %v2051, %v2051
    %v2084 = vmul.f32 %v2052, %v2052
    %v2085 = vmul.f32 %v2053, %v2053
    %v2086 = vmul.f32 %v2054, %v2054
    %v2087 = vsub.f32 %v2055, %v2071
    %v2088 = vsub.f32 %v2056, %v2072
    %v2089 = vsub.f32 %v2057, %v2073
    %v2090 = vsub.f32 %v2058, %v2074
    %v2091 = vsub.f32 %v2059, %v2075
    %v2092 = vsub.f32 %v2060, %v2076
    %v2093 = vsub.f32 %v2061, %v2077
    %v2094 = vsub.f32 %v2062, %v2078
    %v2095 = vsub.f32 %v2063, %v2079
    %v2096 = vsub.f32 %v2064, %v2080
    %v2097 = vsub.f32 %v2065, %v2081
    %v2098 = vsub.f32 %v2066, %v2082
    %v2099 = vsub.f32 %v2067, %v2083
    %v2100 = vsub.f32 %v2068, %v2084
    %v2101 = vsub.f32 %v2069, %v2085
    %v2102 = vsub.f32 %v2070, %v2086
    %v2103 = vmax.f32 %v2087, 0.0
    %v2104 = vmax.f32 %v2088, 0.0
    %v2105 = vmax.f32 %v2089, 0.0
    %v2106 = vmax.f32 %v2090, 0.0
    %v2107 = vmax.f32 %v2091, 0.0
    %v2108 = vmax.f32 %v2092, 0.0
    %v2109 = vmax.f32 %v2093, 0.0
    %v2110 = vmax.f32 %v2094, 0.0
    %v2111 = vmax.f32 %v2095, 0.0
    %v2112 = vmax.f32 %v2096, 0.0
    %v2113 = vmax.f32 %v2097, 0.0
    %v2114 = vmax.f32 %v2098, 0.0
    %v2115 = vmax.f32 %v2099, 0.0
    %v2116 = vmax.f32 %v2100, 0.0
    %v2117 = vmax.f32 %v2101, 0.0
    %v2118 = vmax.f32 %v2102, 0.0
    %v2119 = vsub.f32 %v1831, %v2039
    %v2120 = vsub.f32 %v1833, %v2039
    %v2121 = vsub.f32 %v1835, %v2040
    %v2122 = vsub.f32 %v1837, %v2040
    %v2123 = vsub.f32 %v1841, %v2041
    %v2124 = vsub.f32 %v1843, %v2041
    %v2125 = vsub.f32 %v1845, %v2042
    %v2126 = vsub.f32 %v1847, %v2042
    %v2127 = vsub.f32 %v1851, %v2043
    %v2128 = vsub.f32 %v1853, %v2043
    %v2129 = vsub.f32 %v1855, %v2044
    %v2130 = vsub.f32 %v1857, %v2044
    %v2131 = vsub.f32 %v1861, %v2045
    %v2132 = vsub.f32 %v1863, %v2045
    %v2133 = vsub.f32 %v1865, %v2046
    %v2134 = vsub.f32 %v1867, %v2046
    %v2135 = vsub.f32 %v1871, %v2047
    %v2136 = vsub.f32 %v1873, %v2047
    %v2137 = vsub.f32 %v1875, %v2048
    %v2138 = vsub.f32 %v1877, %v2048
    %v2139 = vsub.f32 %v1881, %v2049
    %v2140 = vsub.f32 %v1883, %v2049
    %v2141 = vsub.f32 %v1885, %v2050
    %v2142 = vsub.f32 %v1887, %v2050
    %v2143 = vsub.f32 %v1891, %v2051
    %v2144 = vsub.f32 %v1893, %v2051
    %v2145 = vsub.f32 %v1895, %v2052
    %v2146 = vsub.f32 %v1897, %v2052
    %v2147 = vsub.f32 %v1901, %v2053
    %v2148 = vsub.f32 %v1903, %v2053
    %v2149 = vsub.f32 %v1905, %v2054
    %v2150 = vsub.f32 %v1907, %v2054
    %v2151 = vadd.f32 %v2103, 1e-05
    %v2152 = vadd.f32 %v2104, 1e-05
    %v2153 = vadd.f32 %v2105, 1e-05
    %v2154 = vadd.f32 %v2106, 1e-05
    %v2155 = vadd.f32 %v2107, 1e-05
    %v2156 = vadd.f32 %v2108, 1e-05
    %v2157 = vadd.f32 %v2109, 1e-05
    %v2158 = vadd.f32 %v2110, 1e-05
    %v2159 = vadd.f32 %v2111, 1e-05
    %v2160 = vadd.f32 %v2112, 1e-05
    %v2161 = vadd.f32 %v2113, 1e-05
    %v2162 = vadd.f32 %v2114, 1e-05
    %v2163 = vadd.f32 %v2115, 1e-05
    %v2164 = vadd.f32 %v2116, 1e-05
    %v2165 = vadd.f32 %v2117, 1e-05
    %v2166 = vadd.f32 %v2118, 1e-05
    %v2167 = vrsqrt.pop %v2151
    %v2168 = vrsqrt.pop %v2152
    %v2169 = vrsqrt.pop %v2153
    %v2170 = vrsqrt.pop %v2154
    %v2171 = vrsqrt.pop %v2155
    %v2172 = vrsqrt.pop %v2156
    %v2173 = vrsqrt.pop %v2157
    %v2174 = vrsqrt.pop %v2158
    %v2175 = vrsqrt.pop %v2159
    %v2176 = vrsqrt.pop %v2160
    %v2177 = vrsqrt.pop %v2161
    %v2178 = vrsqrt.pop %v2162
    %v2179 = vrsqrt.pop %v2163
    %v2180 = vrsqrt.pop %v2164
    %v2181 = vrsqrt.pop %v2165
    %v2182 = vrsqrt.pop %v2166
    %v2183 = vmul.f32 %v2119, %v2167
    %v2184 = vmul.f32 %v2120, %v2167
    %v2185 = vmul.f32 %v2121, %v2168
    %v2186 = vmul.f32 %v2122, %v2168
    %v2187 = vmul.f32 %v2123, %v2169
    %v2188 = vmul.f32 %v2124, %v2169
    %v2189 = vmul.f32 %v2125, %v2170
    %v2190 = vmul.f32 %v2126, %v2170
    %v2191 = vmul.f32 %v2127, %v2171
    %v2192 = vmul.f32 %v2128, %v2171
    %v2193 = vmul.f32 %v2129, %v2172
    %v2194 = vmul.f32 %v2130, %v2172
    %v2195 = vmul.f32 %v2131, %v2173
    %v2196 = vmul.f32 %v2132, %v2173
    %v2197 = vmul.f32 %v2133, %v2174
    %v2198 = vmul.f32 %v2134, %v2174
    %v2199 = vmul.f32 %v2135, %v2175
    %v2200 = vmul.f32 %v2136, %v2175
    %v2201 = vmul.f32 %v2137, %v2176
    %v2202 = vmul.f32 %v2138, %v2176
    %v2203 = vmul.f32 %v2139, %v2177
    %v2204 = vmul.f32 %v2140, %v2177
    %v2205 = vmul.f32 %v2141, %v2178
    %v2206 = vmul.f32 %v2142, %v2178
    %v2207 = vmul.f32 %v2143, %v2179
    %v2208 = vmul.f32 %v2144, %v2179
    %v2209 = vmul.f32 %v2145, %v2180
    %v2210 = vmul.f32 %v2146, %v2180
    %v2211 = vmul.f32 %v2147, %v2181
    %v2212 = vmul.f32 %v2148, %v2181
    %v2213 = vmul.f32 %v2149, %v2182
    %v2214 = vmul.f32 %v2150, %v2182
    %v2216 = vlaneseq
    %v2217 = vshrl.u32 %v2216, 7
    %v2218 = vsub.s32 0, %v2217
    %v2219 = vrot.slane %v1909, %v2218
    %v2220 = vlaneseq
    %v2221 = vshrl.u32 %v2220, 7
    %v2222 = vsub.s32 1, %v2221
    %v2223 = vrot.slane %v1909, %v2222
    %v2226 = vmul.f32 %v2183, %v2219
    %v2227 = vmul.f32 %v2184, %v2223
    %v2228 = vmul.f32 %v2185, %v2219
    %v2229 = vmul.f32 %v2186, %v2223
    %v2230 = vmul.f32 %v2187, %v2219
    %v2231 = vmul.f32 %v2188, %v2223
    %v2232 = vmul.f32 %v2189, %v2219
    %v2233 = vmul.f32 %v2190, %v2223
    %v2234 = vmul.f32 %v2191, %v2219
    %v2235 = vmul.f32 %v2192, %v2223
    %v2236 = vmul.f32 %v2193, %v2219
    %v2237 = vmul.f32 %v2194, %v2223
    %v2238 = vmul.f32 %v2195, %v2219
    %v2239 = vmul.f32 %v2196, %v2223
    %v2240 = vmul.f32 %v2197, %v2219
    %v2241 = vmul.f32 %v2198, %v2223
    %v2242 = vmul.f32 %v2199, %v2219
    %v2243 = vmul.f32 %v2200, %v2223
    %v2244 = vmul.f32 %v2201, %v2219
    %v2245 = vmul.f32 %v2202, %v2223
    %v2246 = vmul.f32 %v2203, %v2219
    %v2247 = vmul.f32 %v2204, %v2223
    %v2248 = vmul.f32 %v2205, %v2219
    %v2249 = vmul.f32 %v2206, %v2223
    %v2250 = vmul.f32 %v2207, %v2219
    %v2251 = vmul.f32 %v2208, %v2223
    %v2252 = vmul.f32 %v2209, %v2219
    %v2253 = vmul.f32 %v2210, %v2223
    %v2254 = vmul.f32 %v2211, %v2219
    %v2255 = vmul.f32 %v2212, %v2223
    %v2256 = vmul.f32 %v2213, %v2219
    %v2257 = vmul.f32 %v2214, %v2223
    %v2259 = vlaneseq
    %v2260 = vshrl.u32 %v2259, 7
    %v2261 = vsub.s32 0, %v2260
    %v2262 = vrot.slane %v1910, %v2261
    %v2263 = vlaneseq
    %v2264 = vshrl.u32 %v2263, 7
    %v2265 = vsub.s32 1, %v2264
    %v2266 = vrot.slane %v1910, %v2265
    %v2269 = vadd.f32 %v2226, %v2262
    %v2270 = vadd.f32 %v2227, %v2266
    %v2271 = vadd.f32 %v2228, %v2262
    %v2272 = vadd.f32 %v2229, %v2266
    %v2273 = vadd.f32 %v2230, %v2262
    %v2274 = vadd.f32 %v2231, %v2266
    %v2275 = vadd.f32 %v2232, %v2262
    %v2276 = vadd.f32 %v2233, %v2266
    %v2277 = vadd.f32 %v2234, %v2262
    %v2278 = vadd.f32 %v2235, %v2266
    %v2279 = vadd.f32 %v2236, %v2262
    %v2280 = vadd.f32 %v2237, %v2266
    %v2281 = vadd.f32 %v2238, %v2262
    %v2282 = vadd.f32 %v2239, %v2266
    %v2283 = vadd.f32 %v2240, %v2262
    %v2284 = vadd.f32 %v2241, %v2266
    %v2285 = vadd.f32 %v2242, %v2262
    %v2286 = vadd.f32 %v2243, %v2266
    %v2287 = vadd.f32 %v2244, %v2262
    %v2288 = vadd.f32 %v2245, %v2266
    %v2289 = vadd.f32 %v2246, %v2262
    %v2290 = vadd.f32 %v2247, %v2266
    %v2291 = vadd.f32 %v2248, %v2262
    %v2292 = vadd.f32 %v2249, %v2266
    %v2293 = vadd.f32 %v2250, %v2262
    %v2294 = vadd.f32 %v2251, %v2266
    %v2295 = vadd.f32 %v2252, %v2262
    %v2296 = vadd.f32 %v2253, %v2266
    %v2297 = vadd.f32 %v2254, %v2262
    %v2298 = vadd.f32 %v2255, %v2266
    %v2299 = vadd.f32 %v2256, %v2262
    %v2300 = vadd.f32 %v2257, %v2266
    %vm2301 = vcmp.gt.f32.partialorder %v2269, 0.0
    %vm2302 = vcmp.gt.f32.partialorder %v2270, 0.0
    %vm2303 = vcmp.gt.f32.partialorder %v2271, 0.0
    %vm2304 = vcmp.gt.f32.partialorder %v2272, 0.0
    %vm2305 = vcmp.gt.f32.partialorder %v2273, 0.0
    %vm2306 = vcmp.gt.f32.partialorder %v2274, 0.0
    %vm2307 = vcmp.gt.f32.partialorder %v2275, 0.0
    %vm2308 = vcmp.gt.f32.partialorder %v2276, 0.0
    %vm2309 = vcmp.gt.f32.partialorder %v2277, 0.0
    %vm2310 = vcmp.gt.f32.partialorder %v2278, 0.0
    %vm2311 = vcmp.gt.f32.partialorder %v2279, 0.0
    %vm2312 = vcmp.gt.f32.partialorder %v2280, 0.0
    %vm2313 = vcmp.gt.f32.partialorder %v2281, 0.0
    %vm2314 = vcmp.gt.f32.partialorder %v2282, 0.0
    %vm2315 = vcmp.gt.f32.partialorder %v2283, 0.0
    %vm2316 = vcmp.gt.f32.partialorder %v2284, 0.0
    %vm2317 = vcmp.gt.f32.partialorder %v2285, 0.0
    %vm2318 = vcmp.gt.f32.partialorder %v2286, 0.0
    %vm2319 = vcmp.gt.f32.partialorder %v2287, 0.0
    %vm2320 = vcmp.gt.f32.partialorder %v2288, 0.0
    %vm2321 = vcmp.gt.f32.partialorder %v2289, 0.0
    %vm2322 = vcmp.gt.f32.partialorder %v2290, 0.0
    %vm2323 = vcmp.gt.f32.partialorder %v2291, 0.0
    %vm2324 = vcmp.gt.f32.partialorder %v2292, 0.0
    %vm2325 = vcmp.gt.f32.partialorder %v2293, 0.0
    %vm2326 = vcmp.gt.f32.partialorder %v2294, 0.0
    %vm2327 = vcmp.gt.f32.partialorder %v2295, 0.0
    %vm2328 = vcmp.gt.f32.partialorder %v2296, 0.0
    %vm2329 = vcmp.gt.f32.partialorder %v2297, 0.0
    %vm2330 = vcmp.gt.f32.partialorder %v2298, 0.0
    %vm2331 = vcmp.gt.f32.partialorder %v2299, 0.0
    %vm2332 = vcmp.gt.f32.partialorder %v2300, 0.0
    %v2333 = vmul.f32 %v2269, 0.2
    %v2334 = vmul.f32 %v2270, 0.2
    %v2335 = vmul.f32 %v2271, 0.2
    %v2336 = vmul.f32 %v2272, 0.2
    %v2337 = vmul.f32 %v2273, 0.2
    %v2338 = vmul.f32 %v2274, 0.2
    %v2339 = vmul.f32 %v2275, 0.2
    %v2340 = vmul.f32 %v2276, 0.2
    %v2341 = vmul.f32 %v2277, 0.2
    %v2342 = vmul.f32 %v2278, 0.2
    %v2343 = vmul.f32 %v2279, 0.2
    %v2344 = vmul.f32 %v2280, 0.2
    %v2345 = vmul.f32 %v2281, 0.2
    %v2346 = vmul.f32 %v2282, 0.2
    %v2347 = vmul.f32 %v2283, 0.2
    %v2348 = vmul.f32 %v2284, 0.2
    %v2349 = vmul.f32 %v2285, 0.2
    %v2350 = vmul.f32 %v2286, 0.2
    %v2351 = vmul.f32 %v2287, 0.2
    %v2352 = vmul.f32 %v2288, 0.2
    %v2353 = vmul.f32 %v2289, 0.2
    %v2354 = vmul.f32 %v2290, 0.2
    %v2355 = vmul.f32 %v2291, 0.2
    %v2356 = vmul.f32 %v2292, 0.2
    %v2357 = vmul.f32 %v2293, 0.2
    %v2358 = vmul.f32 %v2294, 0.2
    %v2359 = vmul.f32 %v2295, 0.2
    %v2360 = vmul.f32 %v2296, 0.2
    %v2361 = vmul.f32 %v2297, 0.2
    %v2362 = vmul.f32 %v2298, 0.2
    %v2363 = vmul.f32 %v2299, 0.2
    %v2364 = vmul.f32 %v2300, 0.2
    %v2365 = vsel %vm2301, %v2269, %v2333
    %v2366 = vsel %vm2302, %v2270, %v2334
    %v2367 = vsel %vm2303, %v2271, %v2335
    %v2368 = vsel %vm2304, %v2272, %v2336
    %v2369 = vsel %vm2305, %v2273, %v2337
    %v2370 = vsel %vm2306, %v2274, %v2338
    %v2371 = vsel %vm2307, %v2275, %v2339
    %v2372 = vsel %vm2308, %v2276, %v2340
    %v2373 = vsel %vm2309, %v2277, %v2341
    %v2374 = vsel %vm2310, %v2278, %v2342
    %v2375 = vsel %vm2311, %v2279, %v2343
    %v2376 = vsel %vm2312, %v2280, %v2344
    %v2377 = vsel %vm2313, %v2281, %v2345
    %v2378 = vsel %vm2314, %v2282, %v2346
    %v2379 = vsel %vm2315, %v2283, %v2347
    %v2380 = vsel %vm2316, %v2284, %v2348
    %v2381 = vsel %vm2317, %v2285, %v2349
    %v2382 = vsel %vm2318, %v2286, %v2350
    %v2383 = vsel %vm2319, %v2287, %v2351
    %v2384 = vsel %vm2320, %v2288, %v2352
    %v2385 = vsel %vm2321, %v2289, %v2353
    %v2386 = vsel %vm2322, %v2290, %v2354
    %v2387 = vsel %vm2323, %v2291, %v2355
    %v2388 = vsel %vm2324, %v2292, %v2356
    %v2389 = vsel %vm2325, %v2293, %v2357
    %v2390 = vsel %vm2326, %v2294, %v2358
    %v2391 = vsel %vm2327, %v2295, %v2359
    %v2392 = vsel %vm2328, %v2296, %v2360
    %v2393 = vsel %vm2329, %v2297, %v2361
    %v2394 = vsel %vm2330, %v2298, %v2362
    %v2395 = vsel %vm2331, %v2299, %v2363
    %v2396 = vsel %vm2332, %v2300, %v2364
    %v2397 = vpack.c.bf16 %v2367, %v2365
    %v2398 = vpack.c.bf16 %v2368, %v2366
    %v2399 = vpack.c.bf16 %v2371, %v2369
    %v2400 = vpack.c.bf16 %v2372, %v2370
    %v2401 = vpack.c.bf16 %v2375, %v2373
    %v2402 = vpack.c.bf16 %v2376, %v2374
    %v2403 = vpack.c.bf16 %v2379, %v2377
    %v2404 = vpack.c.bf16 %v2380, %v2378
    %v2405 = vpack.c.bf16 %v2383, %v2381
    %v2406 = vpack.c.bf16 %v2384, %v2382
    %v2407 = vpack.c.bf16 %v2387, %v2385
    %v2408 = vpack.c.bf16 %v2388, %v2386
    %v2409 = vpack.c.bf16 %v2391, %v2389
    %v2410 = vpack.c.bf16 %v2392, %v2390
    %v2411 = vpack.c.bf16 %v2395, %v2393
    %v2412 = vpack.c.bf16 %v2396, %v2394
    %v2413 = vld [vmem:[%s9] sm:$0xf]
    %v2414 = vld [vmem:[%s9 + $0x4] sm:$0xf]
    %v2415 = vld [vmem:[%s9 + $0x8] sm:$0xf]
    %v2416 = vld [vmem:[%s9 + $0xc] sm:$0xf]
    %v2417 = vld [vmem:[%s9 + $0x10] sm:$0xf]
    %v2418 = vld [vmem:[%s9 + $0x14] sm:$0xf]
    %v2419 = vld [vmem:[%s9 + $0x18] sm:$0xf]
    %v2420 = vld [vmem:[%s9 + $0x1c] sm:$0xf]
    %v2421 = vld [vmem:[%s9 + $0x20] sm:$0xf]
    %v2422 = vld [vmem:[%s9 + $0x24] sm:$0xf]
    %v2423 = vld [vmem:[%s9 + $0x28] sm:$0xf]
    %v2424 = vld [vmem:[%s9 + $0x2c] sm:$0xf]
    %v2425 = vld [vmem:[%s9 + $0x30] sm:$0xf]
    %v2426 = vld [vmem:[%s9 + $0x34] sm:$0xf]
    %v2427 = vld [vmem:[%s9 + $0x38] sm:$0xf]
    %v2428 = vld [vmem:[%s9 + $0x3c] sm:$0xf]
    %v2429 = vld [vmem:[%s9 + $0x40] sm:$0xf]
    %v2430 = vld [vmem:[%s9 + $0x44] sm:$0xf]
    %v2431 = vld [vmem:[%s9 + $0x48] sm:$0xf]
    %v2432 = vld [vmem:[%s9 + $0x4c] sm:$0xf]
    %v2433 = vld [vmem:[%s9 + $0x50] sm:$0xf]
    %v2434 = vld [vmem:[%s9 + $0x54] sm:$0xf]
    %v2435 = vld [vmem:[%s9 + $0x58] sm:$0xf]
    %v2436 = vld [vmem:[%s9 + $0x5c] sm:$0xf]
    %v2437 = vld [vmem:[%s9 + $0x60] sm:$0xf]
    %v2438 = vld [vmem:[%s9 + $0x64] sm:$0xf]
    %v2439 = vld [vmem:[%s9 + $0x68] sm:$0xf]
    %v2440 = vld [vmem:[%s9 + $0x6c] sm:$0xf]
    %v2441 = vld [vmem:[%s9 + $0x70] sm:$0xf]
    %v2442 = vld [vmem:[%s9 + $0x74] sm:$0xf]
    %v2443 = vld [vmem:[%s9 + $0x78] sm:$0xf]
    %v2444 = vld [vmem:[%s9 + $0x7c] sm:$0xf]
    %v2445 = vld [vmem:[%s10] sm:$0x1]
    %v2447 = vlaneseq
    %v2448 = vshrl.u32 %v2447, 7
    %v2449 = vsub.s32 0, %v2448
    %v2450 = vrot.slane %v2445, %v2449
    %v2484 = vunpack.c.l.b16 %v2413
    %v2485 = vunpack.c.l.b16 %v2414
    %v2486 = vunpack.c.l.b16 %v2415
    %v2487 = vunpack.c.l.b16 %v2416
    %v2488 = vunpack.c.l.b16 %v2417
    %v2489 = vunpack.c.l.b16 %v2418
    %v2490 = vunpack.c.l.b16 %v2419
    %v2491 = vunpack.c.l.b16 %v2420
    %v2492 = vunpack.c.l.b16 %v2421
    %v2493 = vunpack.c.l.b16 %v2422
    %v2494 = vunpack.c.l.b16 %v2423
    %v2495 = vunpack.c.l.b16 %v2424
    %v2496 = vunpack.c.l.b16 %v2425
    %v2497 = vunpack.c.l.b16 %v2426
    %v2498 = vunpack.c.l.b16 %v2427
    %v2499 = vunpack.c.l.b16 %v2428
    %v2500 = vunpack.c.l.b16 %v2429
    %v2501 = vunpack.c.l.b16 %v2430
    %v2502 = vunpack.c.l.b16 %v2431
    %v2503 = vunpack.c.l.b16 %v2432
    %v2504 = vunpack.c.l.b16 %v2433
    %v2505 = vunpack.c.l.b16 %v2434
    %v2506 = vunpack.c.l.b16 %v2435
    %v2507 = vunpack.c.l.b16 %v2436
    %v2508 = vunpack.c.l.b16 %v2437
    %v2509 = vunpack.c.l.b16 %v2438
    %v2510 = vunpack.c.l.b16 %v2439
    %v2511 = vunpack.c.l.b16 %v2440
    %v2512 = vunpack.c.l.b16 %v2441
    %v2513 = vunpack.c.l.b16 %v2442
    %v2514 = vunpack.c.l.b16 %v2443
    %v2515 = vunpack.c.l.b16 %v2444
    %v2516 = vpack.c.b16 %v2485, %v2484
    %v2517 = vpack.c.b16 %v2487, %v2486
    %v2518 = vpack.c.b16 %v2489, %v2488
    %v2519 = vpack.c.b16 %v2491, %v2490
    %v2520 = vpack.c.b16 %v2493, %v2492
    %v2521 = vpack.c.b16 %v2495, %v2494
    %v2522 = vpack.c.b16 %v2497, %v2496
    %v2523 = vpack.c.b16 %v2499, %v2498
    %v2524 = vpack.c.b16 %v2501, %v2500
    %v2525 = vpack.c.b16 %v2503, %v2502
    %v2526 = vpack.c.b16 %v2505, %v2504
    %v2527 = vpack.c.b16 %v2507, %v2506
    %v2528 = vpack.c.b16 %v2509, %v2508
    %v2529 = vpack.c.b16 %v2511, %v2510
    %v2530 = vpack.c.b16 %v2513, %v2512
    %v2531 = vpack.c.b16 %v2515, %v2514
    %2548 = vmatprep.subr.bf16.mxu0 0
    %2549 = vmatpush1.bf16.msra.mxu0 %v2523
    %2550 = vmatprep.subr.bf16.mxu0 0
    %2551 = vmatpush1.bf16.msra.mxu0 %v2522
    %2552 = vmatprep.subr.bf16.mxu0 0
    %2553 = vmatpush1.bf16.msra.mxu0 %v2521
    %2554 = vmatprep.subr.bf16.mxu0 0
    %2555 = vmatpush1.bf16.msra.mxu0 %v2520
    %2556 = vmatprep.subr.bf16.mxu0 0
    %2557 = vmatpush1.bf16.msra.mxu0 %v2519
    %2558 = vmatprep.subr.bf16.mxu0 0
    %2559 = vmatpush1.bf16.msra.mxu0 %v2518
    %2560 = vmatprep.subr.bf16.mxu0 0
    %2561 = vmatpush1.bf16.msra.mxu0 %v2517
    %2562 = vmatprep.subr.bf16.mxu0 0
    %2563 = vmatpush1.bf16.msra.mxu0 %v2516
    %2564 = vmatprep.subr.bf16.mxu0 0
    %2565 = vmatpush2.bf16.msra.mxu0 %v2531
    %2566 = vmatprep.subr.bf16.mxu0 0
    %2567 = vmatpush2.bf16.msra.mxu0 %v2530
    %2568 = vmatprep.subr.bf16.mxu0 0
    %2569 = vmatpush2.bf16.msra.mxu0 %v2529
    %2570 = vmatprep.subr.bf16.mxu0 0
    %2571 = vmatpush2.bf16.msra.mxu0 %v2528
    %2572 = vmatprep.subr.bf16.mxu0 0
    %2573 = vmatpush2.bf16.msra.mxu0 %v2527
    %2574 = vmatprep.subr.bf16.mxu0 0
    %2575 = vmatpush2.bf16.msra.mxu0 %v2526
    %2576 = vmatprep.subr.bf16.mxu0 0
    %2577 = vmatpush2.bf16.msra.mxu0 %v2525
    %2578 = vmatprep.subr.bf16.mxu0 0
    %2579 = vmatpush2.bf16.msra.mxu0 %v2524
    %2580 = vmatprep.mubr.bf16.mxu0 %v2398
    %2581 = vmatmul.mubr.bf16.gmra.mxu0 %v2397
    %v2582 = vpop.f32.mrf.mxu0
    %v2583 = vadd.f32 %v2450, %v2582
    %v2584 = vpop.f32.mrf.mxu0
    %v2585 = vpop.f32.mrf.mxu0
    %v2586 = vadd.f32 %v2450, %v2585
    %v2587 = vpop.f32.mrf.mxu0
    %2588 = vmatprep.mubr.bf16.mxu0 %v2400
    %2589 = vmatmul.mubr.bf16.gmra.mxu0 %v2399
    %v2590 = vpop.f32.mrf.mxu0
    %v2591 = vadd.f32 %v2450, %v2590
    %v2592 = vpop.f32.mrf.mxu0
    %v2593 = vpop.f32.mrf.mxu0
    %v2594 = vadd.f32 %v2450, %v2593
    %v2595 = vpop.f32.mrf.mxu0
    %2596 = vmatprep.mubr.bf16.mxu0 %v2402
    %2597 = vmatmul.mubr.bf16.gmra.mxu0 %v2401
    %v2598 = vpop.f32.mrf.mxu0
    %v2599 = vadd.f32 %v2450, %v2598
    %v2600 = vpop.f32.mrf.mxu0
    %v2601 = vpop.f32.mrf.mxu0
    %v2602 = vadd.f32 %v2450, %v2601
    %v2603 = vpop.f32.mrf.mxu0
    %2604 = vmatprep.mubr.bf16.mxu0 %v2404
    %2605 = vmatmul.mubr.bf16.gmra.mxu0 %v2403
    %v2606 = vpop.f32.mrf.mxu0
    %v2607 = vadd.f32 %v2450, %v2606
    %v2608 = vpop.f32.mrf.mxu0
    %v2609 = vpop.f32.mrf.mxu0
    %v2610 = vadd.f32 %v2450, %v2609
    %v2611 = vpop.f32.mrf.mxu0
    %2612 = vmatprep.mubr.bf16.mxu0 %v2406
    %2613 = vmatmul.mubr.bf16.gmra.mxu0 %v2405
    %v2614 = vpop.f32.mrf.mxu0
    %v2615 = vadd.f32 %v2450, %v2614
    %v2616 = vpop.f32.mrf.mxu0
    %v2617 = vpop.f32.mrf.mxu0
    %v2618 = vadd.f32 %v2450, %v2617
    %v2619 = vpop.f32.mrf.mxu0
    %2620 = vmatprep.mubr.bf16.mxu0 %v2408
    %2621 = vmatmul.mubr.bf16.gmra.mxu0 %v2407
    %v2622 = vpop.f32.mrf.mxu0
    %v2623 = vadd.f32 %v2450, %v2622
    %v2624 = vpop.f32.mrf.mxu0
    %v2625 = vpop.f32.mrf.mxu0
    %v2626 = vadd.f32 %v2450, %v2625
    %v2627 = vpop.f32.mrf.mxu0
    %2628 = vmatprep.mubr.bf16.mxu0 %v2410
    %2629 = vmatmul.mubr.bf16.gmra.mxu0 %v2409
    %v2630 = vpop.f32.mrf.mxu0
    %v2631 = vadd.f32 %v2450, %v2630
    %v2632 = vpop.f32.mrf.mxu0
    %v2633 = vpop.f32.mrf.mxu0
    %v2634 = vadd.f32 %v2450, %v2633
    %v2635 = vpop.f32.mrf.mxu0
    %2636 = vmatprep.mubr.bf16.mxu0 %v2412
    %2637 = vmatmul.mubr.bf16.gmra.mxu0 %v2411
    %v2638 = vpop.f32.mrf.mxu0
    %v2639 = vadd.f32 %v2450, %v2638
    %v2640 = vpop.f32.mrf.mxu0
    %v2641 = vpop.f32.mrf.mxu0
    %v2642 = vadd.f32 %v2450, %v2641
    %v2643 = vpop.f32.mrf.mxu0
    %2644 = vdwg.mxu0
    %v2645 = vld [vmem:[%s11] sm:$0x1]
    %v2646 = vld [vmem:[%s12] sm:$0x1]
    %2647 = vadd.xlane.f32.xlu0 %v2583
    %v2648 = vpop.xlane.xlu0 %2647
    %2649 = vadd.xlane.f32.xlu0 %v2586
    %v2650 = vpop.xlane.xlu0 %2649
    %2651 = vadd.xlane.f32.xlu0 %v2591
    %v2652 = vpop.xlane.xlu0 %2651
    %2653 = vadd.xlane.f32.xlu0 %v2594
    %v2654 = vpop.xlane.xlu0 %2653
    %2655 = vadd.xlane.f32.xlu0 %v2599
    %v2656 = vpop.xlane.xlu0 %2655
    %2657 = vadd.xlane.f32.xlu0 %v2602
    %v2658 = vpop.xlane.xlu0 %2657
    %2659 = vadd.xlane.f32.xlu0 %v2607
    %v2660 = vpop.xlane.xlu0 %2659
    %2661 = vadd.xlane.f32.xlu0 %v2610
    %v2662 = vpop.xlane.xlu0 %2661
    %2663 = vadd.xlane.f32.xlu0 %v2615
    %v2664 = vpop.xlane.xlu0 %2663
    %2665 = vadd.xlane.f32.xlu0 %v2618
    %v2666 = vpop.xlane.xlu0 %2665
    %2667 = vadd.xlane.f32.xlu0 %v2623
    %v2668 = vpop.xlane.xlu0 %2667
    %2669 = vadd.xlane.f32.xlu0 %v2626
    %v2670 = vpop.xlane.xlu0 %2669
    %2671 = vadd.xlane.f32.xlu0 %v2631
    %v2672 = vpop.xlane.xlu0 %2671
    %2673 = vadd.xlane.f32.xlu0 %v2634
    %v2674 = vpop.xlane.xlu0 %2673
    %2675 = vadd.xlane.f32.xlu0 %v2639
    %v2676 = vpop.xlane.xlu0 %2675
    %2677 = vadd.xlane.f32.xlu0 %v2642
    %v2678 = vpop.xlane.xlu0 %2677
    %v2679 = vmul.f32 %v2583, %v2583
    %v2680 = vmul.f32 %v2586, %v2586
    %v2681 = vmul.f32 %v2591, %v2591
    %v2682 = vmul.f32 %v2594, %v2594
    %v2683 = vmul.f32 %v2599, %v2599
    %v2684 = vmul.f32 %v2602, %v2602
    %v2685 = vmul.f32 %v2607, %v2607
    %v2686 = vmul.f32 %v2610, %v2610
    %v2687 = vmul.f32 %v2615, %v2615
    %v2688 = vmul.f32 %v2618, %v2618
    %v2689 = vmul.f32 %v2623, %v2623
    %v2690 = vmul.f32 %v2626, %v2626
    %v2691 = vmul.f32 %v2631, %v2631
    %v2692 = vmul.f32 %v2634, %v2634
    %v2693 = vmul.f32 %v2639, %v2639
    %v2694 = vmul.f32 %v2642, %v2642
    %2695 = vadd.xlane.f32.xlu0 %v2679
    %v2696 = vpop.xlane.xlu0 %2695
    %2697 = vadd.xlane.f32.xlu0 %v2680
    %v2698 = vpop.xlane.xlu0 %2697
    %2699 = vadd.xlane.f32.xlu0 %v2681
    %v2700 = vpop.xlane.xlu0 %2699
    %2701 = vadd.xlane.f32.xlu0 %v2682
    %v2702 = vpop.xlane.xlu0 %2701
    %2703 = vadd.xlane.f32.xlu0 %v2683
    %v2704 = vpop.xlane.xlu0 %2703
    %2705 = vadd.xlane.f32.xlu0 %v2684
    %v2706 = vpop.xlane.xlu0 %2705
    %2707 = vadd.xlane.f32.xlu0 %v2685
    %v2708 = vpop.xlane.xlu0 %2707
    %2709 = vadd.xlane.f32.xlu0 %v2686
    %v2710 = vpop.xlane.xlu0 %2709
    %2711 = vadd.xlane.f32.xlu0 %v2687
    %v2712 = vpop.xlane.xlu0 %2711
    %2713 = vadd.xlane.f32.xlu0 %v2688
    %v2714 = vpop.xlane.xlu0 %2713
    %2715 = vadd.xlane.f32.xlu0 %v2689
    %v2716 = vpop.xlane.xlu0 %2715
    %2717 = vadd.xlane.f32.xlu0 %v2690
    %v2718 = vpop.xlane.xlu0 %2717
    %2719 = vadd.xlane.f32.xlu0 %v2691
    %v2720 = vpop.xlane.xlu0 %2719
    %2721 = vadd.xlane.f32.xlu0 %v2692
    %v2722 = vpop.xlane.xlu0 %2721
    %2723 = vadd.xlane.f32.xlu0 %v2693
    %v2724 = vpop.xlane.xlu0 %2723
    %2725 = vadd.xlane.f32.xlu0 %v2694
    %v2726 = vpop.xlane.xlu0 %2725
    %v2727 = vmul.f32 %v2648, 0.0078125
    %v2728 = vmul.f32 %v2650, 0.0078125
    %v2729 = vmul.f32 %v2652, 0.0078125
    %v2730 = vmul.f32 %v2654, 0.0078125
    %v2731 = vmul.f32 %v2656, 0.0078125
    %v2732 = vmul.f32 %v2658, 0.0078125
    %v2733 = vmul.f32 %v2660, 0.0078125
    %v2734 = vmul.f32 %v2662, 0.0078125
    %v2735 = vmul.f32 %v2664, 0.0078125
    %v2736 = vmul.f32 %v2666, 0.0078125
    %v2737 = vmul.f32 %v2668, 0.0078125
    %v2738 = vmul.f32 %v2670, 0.0078125
    %v2739 = vmul.f32 %v2672, 0.0078125
    %v2740 = vmul.f32 %v2674, 0.0078125
    %v2741 = vmul.f32 %v2676, 0.0078125
    %v2742 = vmul.f32 %v2678, 0.0078125
    %v2743 = vmul.f32 %v2696, 0.0078125
    %v2744 = vmul.f32 %v2698, 0.0078125
    %v2745 = vmul.f32 %v2700, 0.0078125
    %v2746 = vmul.f32 %v2702, 0.0078125
    %v2747 = vmul.f32 %v2704, 0.0078125
    %v2748 = vmul.f32 %v2706, 0.0078125
    %v2749 = vmul.f32 %v2708, 0.0078125
    %v2750 = vmul.f32 %v2710, 0.0078125
    %v2751 = vmul.f32 %v2712, 0.0078125
    %v2752 = vmul.f32 %v2714, 0.0078125
    %v2753 = vmul.f32 %v2716, 0.0078125
    %v2754 = vmul.f32 %v2718, 0.0078125
    %v2755 = vmul.f32 %v2720, 0.0078125
    %v2756 = vmul.f32 %v2722, 0.0078125
    %v2757 = vmul.f32 %v2724, 0.0078125
    %v2758 = vmul.f32 %v2726, 0.0078125
    %v2759 = vmul.f32 %v2727, %v2727
    %v2760 = vmul.f32 %v2728, %v2728
    %v2761 = vmul.f32 %v2729, %v2729
    %v2762 = vmul.f32 %v2730, %v2730
    %v2763 = vmul.f32 %v2731, %v2731
    %v2764 = vmul.f32 %v2732, %v2732
    %v2765 = vmul.f32 %v2733, %v2733
    %v2766 = vmul.f32 %v2734, %v2734
    %v2767 = vmul.f32 %v2735, %v2735
    %v2768 = vmul.f32 %v2736, %v2736
    %v2769 = vmul.f32 %v2737, %v2737
    %v2770 = vmul.f32 %v2738, %v2738
    %v2771 = vmul.f32 %v2739, %v2739
    %v2772 = vmul.f32 %v2740, %v2740
    %v2773 = vmul.f32 %v2741, %v2741
    %v2774 = vmul.f32 %v2742, %v2742
    %v2775 = vsub.f32 %v2743, %v2759
    %v2776 = vsub.f32 %v2744, %v2760
    %v2777 = vsub.f32 %v2745, %v2761
    %v2778 = vsub.f32 %v2746, %v2762
    %v2779 = vsub.f32 %v2747, %v2763
    %v2780 = vsub.f32 %v2748, %v2764
    %v2781 = vsub.f32 %v2749, %v2765
    %v2782 = vsub.f32 %v2750, %v2766
    %v2783 = vsub.f32 %v2751, %v2767
    %v2784 = vsub.f32 %v2752, %v2768
    %v2785 = vsub.f32 %v2753, %v2769
    %v2786 = vsub.f32 %v2754, %v2770
    %v2787 = vsub.f32 %v2755, %v2771
    %v2788 = vsub.f32 %v2756, %v2772
    %v2789 = vsub.f32 %v2757, %v2773
    %v2790 = vsub.f32 %v2758, %v2774
    %v2791 = vmax.f32 %v2775, 0.0
    %v2792 = vmax.f32 %v2776, 0.0
    %v2793 = vmax.f32 %v2777, 0.0
    %v2794 = vmax.f32 %v2778, 0.0
    %v2795 = vmax.f32 %v2779, 0.0
    %v2796 = vmax.f32 %v2780, 0.0
    %v2797 = vmax.f32 %v2781, 0.0
    %v2798 = vmax.f32 %v2782, 0.0
    %v2799 = vmax.f32 %v2783, 0.0
    %v2800 = vmax.f32 %v2784, 0.0
    %v2801 = vmax.f32 %v2785, 0.0
    %v2802 = vmax.f32 %v2786, 0.0
    %v2803 = vmax.f32 %v2787, 0.0
    %v2804 = vmax.f32 %v2788, 0.0
    %v2805 = vmax.f32 %v2789, 0.0
    %v2806 = vmax.f32 %v2790, 0.0
    %v2807 = vsub.f32 %v2583, %v2727
    %v2808 = vsub.f32 %v2586, %v2728
    %v2809 = vsub.f32 %v2591, %v2729
    %v2810 = vsub.f32 %v2594, %v2730
    %v2811 = vsub.f32 %v2599, %v2731
    %v2812 = vsub.f32 %v2602, %v2732
    %v2813 = vsub.f32 %v2607, %v2733
    %v2814 = vsub.f32 %v2610, %v2734
    %v2815 = vsub.f32 %v2615, %v2735
    %v2816 = vsub.f32 %v2618, %v2736
    %v2817 = vsub.f32 %v2623, %v2737
    %v2818 = vsub.f32 %v2626, %v2738
    %v2819 = vsub.f32 %v2631, %v2739
    %v2820 = vsub.f32 %v2634, %v2740
    %v2821 = vsub.f32 %v2639, %v2741
    %v2822 = vsub.f32 %v2642, %v2742
    %v2823 = vadd.f32 %v2791, 1e-05
    %v2824 = vadd.f32 %v2792, 1e-05
    %v2825 = vadd.f32 %v2793, 1e-05
    %v2826 = vadd.f32 %v2794, 1e-05
    %v2827 = vadd.f32 %v2795, 1e-05
    %v2828 = vadd.f32 %v2796, 1e-05
    %v2829 = vadd.f32 %v2797, 1e-05
    %v2830 = vadd.f32 %v2798, 1e-05
    %v2831 = vadd.f32 %v2799, 1e-05
    %v2832 = vadd.f32 %v2800, 1e-05
    %v2833 = vadd.f32 %v2801, 1e-05
    %v2834 = vadd.f32 %v2802, 1e-05
    %v2835 = vadd.f32 %v2803, 1e-05
    %v2836 = vadd.f32 %v2804, 1e-05
    %v2837 = vadd.f32 %v2805, 1e-05
    %v2838 = vadd.f32 %v2806, 1e-05
    %v2839 = vrsqrt.pop %v2823
    %v2840 = vrsqrt.pop %v2824
    %v2841 = vrsqrt.pop %v2825
    %v2842 = vrsqrt.pop %v2826
    %v2843 = vrsqrt.pop %v2827
    %v2844 = vrsqrt.pop %v2828
    %v2845 = vrsqrt.pop %v2829
    %v2846 = vrsqrt.pop %v2830
    %v2847 = vrsqrt.pop %v2831
    %v2848 = vrsqrt.pop %v2832
    %v2849 = vrsqrt.pop %v2833
    %v2850 = vrsqrt.pop %v2834
    %v2851 = vrsqrt.pop %v2835
    %v2852 = vrsqrt.pop %v2836
    %v2853 = vrsqrt.pop %v2837
    %v2854 = vrsqrt.pop %v2838
    %v2855 = vmul.f32 %v2807, %v2839
    %v2856 = vmul.f32 %v2808, %v2840
    %v2857 = vmul.f32 %v2809, %v2841
    %v2858 = vmul.f32 %v2810, %v2842
    %v2859 = vmul.f32 %v2811, %v2843
    %v2860 = vmul.f32 %v2812, %v2844
    %v2861 = vmul.f32 %v2813, %v2845
    %v2862 = vmul.f32 %v2814, %v2846
    %v2863 = vmul.f32 %v2815, %v2847
    %v2864 = vmul.f32 %v2816, %v2848
    %v2865 = vmul.f32 %v2817, %v2849
    %v2866 = vmul.f32 %v2818, %v2850
    %v2867 = vmul.f32 %v2819, %v2851
    %v2868 = vmul.f32 %v2820, %v2852
    %v2869 = vmul.f32 %v2821, %v2853
    %v2870 = vmul.f32 %v2822, %v2854
    %v2872 = vlaneseq
    %v2873 = vshrl.u32 %v2872, 7
    %v2874 = vsub.s32 0, %v2873
    %v2875 = vrot.slane %v2645, %v2874
    %v2877 = vmul.f32 %v2855, %v2875
    %v2878 = vmul.f32 %v2856, %v2875
    %v2879 = vmul.f32 %v2857, %v2875
    %v2880 = vmul.f32 %v2858, %v2875
    %v2881 = vmul.f32 %v2859, %v2875
    %v2882 = vmul.f32 %v2860, %v2875
    %v2883 = vmul.f32 %v2861, %v2875
    %v2884 = vmul.f32 %v2862, %v2875
    %v2885 = vmul.f32 %v2863, %v2875
    %v2886 = vmul.f32 %v2864, %v2875
    %v2887 = vmul.f32 %v2865, %v2875
    %v2888 = vmul.f32 %v2866, %v2875
    %v2889 = vmul.f32 %v2867, %v2875
    %v2890 = vmul.f32 %v2868, %v2875
    %v2891 = vmul.f32 %v2869, %v2875
    %v2892 = vmul.f32 %v2870, %v2875
    %v2894 = vlaneseq
    %v2895 = vshrl.u32 %v2894, 7
    %v2896 = vsub.s32 0, %v2895
    %v2897 = vrot.slane %v2646, %v2896
    %v2899 = vadd.f32 %v2877, %v2897
    %v2900 = vadd.f32 %v2878, %v2897
    %v2901 = vadd.f32 %v2879, %v2897
    %v2902 = vadd.f32 %v2880, %v2897
    %v2903 = vadd.f32 %v2881, %v2897
    %v2904 = vadd.f32 %v2882, %v2897
    %v2905 = vadd.f32 %v2883, %v2897
    %v2906 = vadd.f32 %v2884, %v2897
    %v2907 = vadd.f32 %v2885, %v2897
    %v2908 = vadd.f32 %v2886, %v2897
    %v2909 = vadd.f32 %v2887, %v2897
    %v2910 = vadd.f32 %v2888, %v2897
    %v2911 = vadd.f32 %v2889, %v2897
    %v2912 = vadd.f32 %v2890, %v2897
    %v2913 = vadd.f32 %v2891, %v2897
    %v2914 = vadd.f32 %v2892, %v2897
    %vm2915 = vcmp.gt.f32.partialorder %v2899, 0.0
    %vm2916 = vcmp.gt.f32.partialorder %v2900, 0.0
    %vm2917 = vcmp.gt.f32.partialorder %v2901, 0.0
    %vm2918 = vcmp.gt.f32.partialorder %v2902, 0.0
    %vm2919 = vcmp.gt.f32.partialorder %v2903, 0.0
    %vm2920 = vcmp.gt.f32.partialorder %v2904, 0.0
    %vm2921 = vcmp.gt.f32.partialorder %v2905, 0.0
    %vm2922 = vcmp.gt.f32.partialorder %v2906, 0.0
    %vm2923 = vcmp.gt.f32.partialorder %v2907, 0.0
    %vm2924 = vcmp.gt.f32.partialorder %v2908, 0.0
    %vm2925 = vcmp.gt.f32.partialorder %v2909, 0.0
    %vm2926 = vcmp.gt.f32.partialorder %v2910, 0.0
    %vm2927 = vcmp.gt.f32.partialorder %v2911, 0.0
    %vm2928 = vcmp.gt.f32.partialorder %v2912, 0.0
    %vm2929 = vcmp.gt.f32.partialorder %v2913, 0.0
    %vm2930 = vcmp.gt.f32.partialorder %v2914, 0.0
    %v2931 = vmul.f32 %v2899, 0.2
    %v2932 = vmul.f32 %v2900, 0.2
    %v2933 = vmul.f32 %v2901, 0.2
    %v2934 = vmul.f32 %v2902, 0.2
    %v2935 = vmul.f32 %v2903, 0.2
    %v2936 = vmul.f32 %v2904, 0.2
    %v2937 = vmul.f32 %v2905, 0.2
    %v2938 = vmul.f32 %v2906, 0.2
    %v2939 = vmul.f32 %v2907, 0.2
    %v2940 = vmul.f32 %v2908, 0.2
    %v2941 = vmul.f32 %v2909, 0.2
    %v2942 = vmul.f32 %v2910, 0.2
    %v2943 = vmul.f32 %v2911, 0.2
    %v2944 = vmul.f32 %v2912, 0.2
    %v2945 = vmul.f32 %v2913, 0.2
    %v2946 = vmul.f32 %v2914, 0.2
    %v2947 = vsel %vm2915, %v2899, %v2931
    %v2948 = vsel %vm2916, %v2900, %v2932
    %v2949 = vsel %vm2917, %v2901, %v2933
    %v2950 = vsel %vm2918, %v2902, %v2934
    %v2951 = vsel %vm2919, %v2903, %v2935
    %v2952 = vsel %vm2920, %v2904, %v2936
    %v2953 = vsel %vm2921, %v2905, %v2937
    %v2954 = vsel %vm2922, %v2906, %v2938
    %v2955 = vsel %vm2923, %v2907, %v2939
    %v2956 = vsel %vm2924, %v2908, %v2940
    %v2957 = vsel %vm2925, %v2909, %v2941
    %v2958 = vsel %vm2926, %v2910, %v2942
    %v2959 = vsel %vm2927, %v2911, %v2943
    %v2960 = vsel %vm2928, %v2912, %v2944
    %v2961 = vsel %vm2929, %v2913, %v2945
    %v2962 = vsel %vm2930, %v2914, %v2946
    %2963 = vst [vmem:[#allocation6] sm:$0xff] %v2947
    %2964 = vst [vmem:[#allocation6 + $0x8] sm:$0xff] %v2948
    %2965 = vst [vmem:[#allocation6 + $0x10] sm:$0xff] %v2949
    %2966 = vst [vmem:[#allocation6 + $0x18] sm:$0xff] %v2950
    %2967 = vst [vmem:[#allocation6 + $0x20] sm:$0xff] %v2951
    %2968 = vst [vmem:[#allocation6 + $0x28] sm:$0xff] %v2952
    %2969 = vst [vmem:[#allocation6 + $0x30] sm:$0xff] %v2953
    %2970 = vst [vmem:[#allocation6 + $0x38] sm:$0xff] %v2954
    %2971 = vst [vmem:[#allocation6 + $0x40] sm:$0xff] %v2955
    %2972 = vst [vmem:[#allocation6 + $0x48] sm:$0xff] %v2956
    %2973 = vst [vmem:[#allocation6 + $0x50] sm:$0xff] %v2957
    %2974 = vst [vmem:[#allocation6 + $0x58] sm:$0xff] %v2958
    %2975 = vst [vmem:[#allocation6 + $0x60] sm:$0xff] %v2959
    %2976 = vst [vmem:[#allocation6 + $0x68] sm:$0xff] %v2960
    %2977 = vst [vmem:[#allocation6 + $0x70] sm:$0xff] %v2961
    %2978 = vst [vmem:[#allocation6 + $0x78] sm:$0xff] %v2962
    %v2979 = vpack.c.bf16 %v2948, %v2947
    %v2980 = vpack.c.bf16 %v2950, %v2949
    %v2981 = vpack.c.bf16 %v2952, %v2951
    %v2982 = vpack.c.bf16 %v2954, %v2953
    %v2983 = vpack.c.bf16 %v2956, %v2955
    %v2984 = vpack.c.bf16 %v2958, %v2957
    %v2985 = vpack.c.bf16 %v2960, %v2959
    %v2986 = vpack.c.bf16 %v2962, %v2961
    %v2987 = vld [vmem:[%s13] sm:$0xf]
    %v2988 = vld [vmem:[%s13 + $0x4] sm:$0xf]
    %v2989 = vld [vmem:[%s13 + $0x8] sm:$0xf]
    %v2990 = vld [vmem:[%s13 + $0xc] sm:$0xf]
    %v2991 = vld [vmem:[%s13 + $0x10] sm:$0xf]
    %v2992 = vld [vmem:[%s13 + $0x14] sm:$0xf]
    %v2993 = vld [vmem:[%s13 + $0x18] sm:$0xf]
    %v2994 = vld [vmem:[%s13 + $0x1c] sm:$0xf]
    %v2995 = vld [vmem:[%s13 + $0x20] sm:$0xf]
    %v2996 = vld [vmem:[%s13 + $0x24] sm:$0xf]
    %v2997 = vld [vmem:[%s13 + $0x28] sm:$0xf]
    %v2998 = vld [vmem:[%s13 + $0x2c] sm:$0xf]
    %v2999 = vld [vmem:[%s13 + $0x30] sm:$0xf]
    %v3000 = vld [vmem:[%s13 + $0x34] sm:$0xf]
    %v3001 = vld [vmem:[%s13 + $0x38] sm:$0xf]
    %v3002 = vld [vmem:[%s13 + $0x3c] sm:$0xf]
    %v3003 = vld [vmem:[%s14] sm:$0x1]
    %v3005 = vlaneseq
    %v3006 = vshrl.u32 %v3005, 7
    %v3007 = vsub.s32 0, %v3006
    %v3008 = vrot.slane %v3003, %v3007
    %v3026 = vunpack.c.l.b16 %v2987
    %v3027 = vunpack.c.l.b16 %v2988
    %v3028 = vunpack.c.l.b16 %v2989
    %v3029 = vunpack.c.l.b16 %v2990
    %v3030 = vunpack.c.l.b16 %v2991
    %v3031 = vunpack.c.l.b16 %v2992
    %v3032 = vunpack.c.l.b16 %v2993
    %v3033 = vunpack.c.l.b16 %v2994
    %v3034 = vunpack.c.l.b16 %v2995
    %v3035 = vunpack.c.l.b16 %v2996
    %v3036 = vunpack.c.l.b16 %v2997
    %v3037 = vunpack.c.l.b16 %v2998
    %v3038 = vunpack.c.l.b16 %v2999
    %v3039 = vunpack.c.l.b16 %v3000
    %v3040 = vunpack.c.l.b16 %v3001
    %v3041 = vunpack.c.l.b16 %v3002
    %v3042 = vpack.c.b16 %v3027, %v3026
    %v3043 = vpack.c.b16 %v3029, %v3028
    %v3044 = vpack.c.b16 %v3031, %v3030
    %v3045 = vpack.c.b16 %v3033, %v3032
    %v3046 = vpack.c.b16 %v3035, %v3034
    %v3047 = vpack.c.b16 %v3037, %v3036
    %v3048 = vpack.c.b16 %v3039, %v3038
    %v3049 = vpack.c.b16 %v3041, %v3040
    %3058 = vmatprep.subr.bf16.mxu0 0
    %3059 = vmatpush1.bf16.msra.mxu0 %v3049
    %3060 = vmatprep.subr.bf16.mxu0 0
    %3061 = vmatpush1.bf16.msra.mxu0 %v3048
    %3062 = vmatprep.subr.bf16.mxu0 0
    %3063 = vmatpush1.bf16.msra.mxu0 %v3047
    %3064 = vmatprep.subr.bf16.mxu0 0
    %3065 = vmatpush1.bf16.msra.mxu0 %v3046
    %3066 = vmatprep.subr.bf16.mxu0 0
    %3067 = vmatpush1.bf16.msra.mxu0 %v3045
    %3068 = vmatprep.subr.bf16.mxu0 0
    %3069 = vmatpush1.bf16.msra.mxu0 %v3044
    %3070 = vmatprep.subr.bf16.mxu0 0
    %3071 = vmatpush1.bf16.msra.mxu0 %v3043
    %3072 = vmatprep.subr.bf16.mxu0 0
    %3073 = vmatpush1.bf16.msra.mxu0 %v3042
    %3074 = vmatprep.subr.bf16.mxu0 0
    %3075 = vmatpush2.bf16.msra.mxu0 0
    %3076 = vmatprep.subr.bf16.mxu0 0
    %3077 = vmatpush2.bf16.msra.mxu0 0
    %3078 = vmatprep.subr.bf16.mxu0 0
    %3079 = vmatpush2.bf16.msra.mxu0 0
    %3080 = vmatprep.subr.bf16.mxu0 0
    %3081 = vmatpush2.bf16.msra.mxu0 0
    %3082 = vmatprep.subr.bf16.mxu0 0
    %3083 = vmatpush2.bf16.msra.mxu0 0
    %3084 = vmatprep.subr.bf16.mxu0 0
    %3085 = vmatpush2.bf16.msra.mxu0 0
    %3086 = vmatprep.subr.bf16.mxu0 0
    %3087 = vmatpush2.bf16.msra.mxu0 0
    %3088 = vmatprep.subr.bf16.mxu0 0
    %3089 = vmatpush2.bf16.msra.mxu0 0
    %3090 = vmatprep.mubr.bf16.mxu0 0
    %3091 = vmatmul.mubr.bf16.gmra.mxu0 %v2979
    %v3092 = vpop.f32.mrf.mxu0
    %v3093 = vadd.f32 %v3008, %v3092
    %v3094 = vpop.f32.mrf.mxu0
    %v3095 = vpop.f32.mrf.mxu0
    %v3096 = vadd.f32 %v3008, %v3095
    %v3097 = vpop.f32.mrf.mxu0
    %3098 = vmatprep.mubr.bf16.mxu0 0
    %3099 = vmatmul.mubr.bf16.gmra.mxu0 %v2980
    %v3100 = vpop.f32.mrf.mxu0
    %v3101 = vadd.f32 %v3008, %v3100
    %v3102 = vpop.f32.mrf.mxu0
    %v3103 = vpop.f32.mrf.mxu0
    %v3104 = vadd.f32 %v3008, %v3103
    %v3105 = vpop.f32.mrf.mxu0
    %3106 = vmatprep.mubr.bf16.mxu0 0
    %3107 = vmatmul.mubr.bf16.gmra.mxu0 %v2981
    %v3108 = vpop.f32.mrf.mxu0
    %v3109 = vadd.f32 %v3008, %v3108
    %v3110 = vpop.f32.mrf.mxu0
    %v3111 = vpop.f32.mrf.mxu0
    %v3112 = vadd.f32 %v3008, %v3111
    %v3113 = vpop.f32.mrf.mxu0
    %3114 = vmatprep.mubr.bf16.mxu0 0
    %3115 = vmatmul.mubr.bf16.gmra.mxu0 %v2982
    %v3116 = vpop.f32.mrf.mxu0
    %v3117 = vadd.f32 %v3008, %v3116
    %v3118 = vpop.f32.mrf.mxu0
    %v3119 = vpop.f32.mrf.mxu0
    %v3120 = vadd.f32 %v3008, %v3119
    %v3121 = vpop.f32.mrf.mxu0
    %3122 = vmatprep.mubr.bf16.mxu0 0
    %3123 = vmatmul.mubr.bf16.gmra.mxu0 %v2983
    %v3124 = vpop.f32.mrf.mxu0
    %v3125 = vadd.f32 %v3008, %v3124
    %v3126 = vpop.f32.mrf.mxu0
    %v3127 = vpop.f32.mrf.mxu0
    %v3128 = vadd.f32 %v3008, %v3127
    %v3129 = vpop.f32.mrf.mxu0
    %3130 = vmatprep.mubr.bf16.mxu0 0
    %3131 = vmatmul.mubr.bf16.gmra.mxu0 %v2984
    %v3132 = vpop.f32.mrf.mxu0
    %v3133 = vadd.f32 %v3008, %v3132
    %v3134 = vpop.f32.mrf.mxu0
    %v3135 = vpop.f32.mrf.mxu0
    %v3136 = vadd.f32 %v3008, %v3135
    %v3137 = vpop.f32.mrf.mxu0
    %3138 = vmatprep.mubr.bf16.mxu0 0
    %3139 = vmatmul.mubr.bf16.gmra.mxu0 %v2985
    %v3140 = vpop.f32.mrf.mxu0
    %v3141 = vadd.f32 %v3008, %v3140
    %v3142 = vpop.f32.mrf.mxu0
    %v3143 = vpop.f32.mrf.mxu0
    %v3144 = vadd.f32 %v3008, %v3143
    %v3145 = vpop.f32.mrf.mxu0
    %3146 = vmatprep.mubr.bf16.mxu0 0
    %3147 = vmatmul.mubr.bf16.gmra.mxu0 %v2986
    %v3148 = vpop.f32.mrf.mxu0
    %v3149 = vadd.f32 %v3008, %v3148
    %v3150 = vpop.f32.mrf.mxu0
    %v3151 = vpop.f32.mrf.mxu0
    %v3152 = vadd.f32 %v3008, %v3151
    %v3153 = vpop.f32.mrf.mxu0
    %3154 = vdwg.mxu0
    %v3155 = vld [vmem:[%s15] sm:$0x1]
    %v3156 = vld [vmem:[%s16] sm:$0x1]
    %vm3157 = vcmask 523264
    %v3158 = vsel %vm3157, %v3093, 0.0
    %3159 = vadd.xlane.f32.xlu0 %v3158
    %v3160 = vpop.xlane.xlu0 %3159
    %v3161 = vsel %vm3157, %v3096, 0.0
    %3162 = vadd.xlane.f32.xlu0 %v3161
    %v3163 = vpop.xlane.xlu0 %3162
    %v3164 = vsel %vm3157, %v3101, 0.0
    %3165 = vadd.xlane.f32.xlu0 %v3164
    %v3166 = vpop.xlane.xlu0 %3165
    %v3167 = vsel %vm3157, %v3104, 0.0
    %3168 = vadd.xlane.f32.xlu0 %v3167
    %v3169 = vpop.xlane.xlu0 %3168
    %v3170 = vsel %vm3157, %v3109, 0.0
    %3171 = vadd.xlane.f32.xlu0 %v3170
    %v3172 = vpop.xlane.xlu0 %3171
    %v3173 = vsel %vm3157, %v3112, 0.0
    %3174 = vadd.xlane.f32.xlu0 %v3173
    %v3175 = vpop.xlane.xlu0 %3174
    %v3176 = vsel %vm3157, %v3117, 0.0
    %3177 = vadd.xlane.f32.xlu0 %v3176
    %v3178 = vpop.xlane.xlu0 %3177
    %v3179 = vsel %vm3157, %v3120, 0.0
    %3180 = vadd.xlane.f32.xlu0 %v3179
    %v3181 = vpop.xlane.xlu0 %3180
    %v3182 = vsel %vm3157, %v3125, 0.0
    %3183 = vadd.xlane.f32.xlu0 %v3182
    %v3184 = vpop.xlane.xlu0 %3183
    %v3185 = vsel %vm3157, %v3128, 0.0
    %3186 = vadd.xlane.f32.xlu0 %v3185
    %v3187 = vpop.xlane.xlu0 %3186
    %v3188 = vsel %vm3157, %v3133, 0.0
    %3189 = vadd.xlane.f32.xlu0 %v3188
    %v3190 = vpop.xlane.xlu0 %3189
    %v3191 = vsel %vm3157, %v3136, 0.0
    %3192 = vadd.xlane.f32.xlu0 %v3191
    %v3193 = vpop.xlane.xlu0 %3192
    %v3194 = vsel %vm3157, %v3141, 0.0
    %3195 = vadd.xlane.f32.xlu0 %v3194
    %v3196 = vpop.xlane.xlu0 %3195
    %v3197 = vsel %vm3157, %v3144, 0.0
    %3198 = vadd.xlane.f32.xlu0 %v3197
    %v3199 = vpop.xlane.xlu0 %3198
    %v3200 = vsel %vm3157, %v3149, 0.0
    %3201 = vadd.xlane.f32.xlu0 %v3200
    %v3202 = vpop.xlane.xlu0 %3201
    %v3203 = vsel %vm3157, %v3152, 0.0
    %3204 = vadd.xlane.f32.xlu0 %v3203
    %v3205 = vpop.xlane.xlu0 %3204
    %v3206 = vmul.f32 %v3093, %v3093
    %v3207 = vmul.f32 %v3096, %v3096
    %v3208 = vmul.f32 %v3101, %v3101
    %v3209 = vmul.f32 %v3104, %v3104
    %v3210 = vmul.f32 %v3109, %v3109
    %v3211 = vmul.f32 %v3112, %v3112
    %v3212 = vmul.f32 %v3117, %v3117
    %v3213 = vmul.f32 %v3120, %v3120
    %v3214 = vmul.f32 %v3125, %v3125
    %v3215 = vmul.f32 %v3128, %v3128
    %v3216 = vmul.f32 %v3133, %v3133
    %v3217 = vmul.f32 %v3136, %v3136
    %v3218 = vmul.f32 %v3141, %v3141
    %v3219 = vmul.f32 %v3144, %v3144
    %v3220 = vmul.f32 %v3149, %v3149
    %v3221 = vmul.f32 %v3152, %v3152
    %v3222 = vsel %vm3157, %v3206, 0.0
    %3223 = vadd.xlane.f32.xlu0 %v3222
    %v3224 = vpop.xlane.xlu0 %3223
    %v3225 = vsel %vm3157, %v3207, 0.0
    %3226 = vadd.xlane.f32.xlu0 %v3225
    %v3227 = vpop.xlane.xlu0 %3226
    %v3228 = vsel %vm3157, %v3208, 0.0
    %3229 = vadd.xlane.f32.xlu0 %v3228
    %v3230 = vpop.xlane.xlu0 %3229
    %v3231 = vsel %vm3157, %v3209, 0.0
    %3232 = vadd.xlane.f32.xlu0 %v3231
    %v3233 = vpop.xlane.xlu0 %3232
    %v3234 = vsel %vm3157, %v3210, 0.0
    %3235 = vadd.xlane.f32.xlu0 %v3234
    %v3236 = vpop.xlane.xlu0 %3235
    %v3237 = vsel %vm3157, %v3211, 0.0
    %3238 = vadd.xlane.f32.xlu0 %v3237
    %v3239 = vpop.xlane.xlu0 %3238
    %v3240 = vsel %vm3157, %v3212, 0.0
    %3241 = vadd.xlane.f32.xlu0 %v3240
    %v3242 = vpop.xlane.xlu0 %3241
    %v3243 = vsel %vm3157, %v3213, 0.0
    %3244 = vadd.xlane.f32.xlu0 %v3243
    %v3245 = vpop.xlane.xlu0 %3244
    %v3246 = vsel %vm3157, %v3214, 0.0
    %3247 = vadd.xlane.f32.xlu0 %v3246
    %v3248 = vpop.xlane.xlu0 %3247
    %v3249 = vsel %vm3157, %v3215, 0.0
    %3250 = vadd.xlane.f32.xlu0 %v3249
    %v3251 = vpop.xlane.xlu0 %3250
    %v3252 = vsel %vm3157, %v3216, 0.0
    %3253 = vadd.xlane.f32.xlu0 %v3252
    %v3254 = vpop.xlane.xlu0 %3253
    %v3255 = vsel %vm3157, %v3217, 0.0
    %3256 = vadd.xlane.f32.xlu0 %v3255
    %v3257 = vpop.xlane.xlu0 %3256
    %v3258 = vsel %vm3157, %v3218, 0.0
    %3259 = vadd.xlane.f32.xlu0 %v3258
    %v3260 = vpop.xlane.xlu0 %3259
    %v3261 = vsel %vm3157, %v3219, 0.0
    %3262 = vadd.xlane.f32.xlu0 %v3261
    %v3263 = vpop.xlane.xlu0 %3262
    %v3264 = vsel %vm3157, %v3220, 0.0
    %3265 = vadd.xlane.f32.xlu0 %v3264
    %v3266 = vpop.xlane.xlu0 %3265
    %v3267 = vsel %vm3157, %v3221, 0.0
    %3268 = vadd.xlane.f32.xlu0 %v3267
    %v3269 = vpop.xlane.xlu0 %3268
    %v3270 = vmul.f32 %v3160, 0.015625
    %v3271 = vmul.f32 %v3163, 0.015625
    %v3272 = vmul.f32 %v3166, 0.015625
    %v3273 = vmul.f32 %v3169, 0.015625
    %v3274 = vmul.f32 %v3172, 0.015625
    %v3275 = vmul.f32 %v3175, 0.015625
    %v3276 = vmul.f32 %v3178, 0.015625
    %v3277 = vmul.f32 %v3181, 0.015625
    %v3278 = vmul.f32 %v3184, 0.015625
    %v3279 = vmul.f32 %v3187, 0.015625
    %v3280 = vmul.f32 %v3190, 0.015625
    %v3281 = vmul.f32 %v3193, 0.015625
    %v3282 = vmul.f32 %v3196, 0.015625
    %v3283 = vmul.f32 %v3199, 0.015625
    %v3284 = vmul.f32 %v3202, 0.015625
    %v3285 = vmul.f32 %v3205, 0.015625
    %v3286 = vmul.f32 %v3224, 0.015625
    %v3287 = vmul.f32 %v3227, 0.015625
    %v3288 = vmul.f32 %v3230, 0.015625
    %v3289 = vmul.f32 %v3233, 0.015625
    %v3290 = vmul.f32 %v3236, 0.015625
    %v3291 = vmul.f32 %v3239, 0.015625
    %v3292 = vmul.f32 %v3242, 0.015625
    %v3293 = vmul.f32 %v3245, 0.015625
    %v3294 = vmul.f32 %v3248, 0.015625
    %v3295 = vmul.f32 %v3251, 0.015625
    %v3296 = vmul.f32 %v3254, 0.015625
    %v3297 = vmul.f32 %v3257, 0.015625
    %v3298 = vmul.f32 %v3260, 0.015625
    %v3299 = vmul.f32 %v3263, 0.015625
    %v3300 = vmul.f32 %v3266, 0.015625
    %v3301 = vmul.f32 %v3269, 0.015625
    %v3302 = vmul.f32 %v3270, %v3270
    %v3303 = vmul.f32 %v3271, %v3271
    %v3304 = vmul.f32 %v3272, %v3272
    %v3305 = vmul.f32 %v3273, %v3273
    %v3306 = vmul.f32 %v3274, %v3274
    %v3307 = vmul.f32 %v3275, %v3275
    %v3308 = vmul.f32 %v3276, %v3276
    %v3309 = vmul.f32 %v3277, %v3277
    %v3310 = vmul.f32 %v3278, %v3278
    %v3311 = vmul.f32 %v3279, %v3279
    %v3312 = vmul.f32 %v3280, %v3280
    %v3313 = vmul.f32 %v3281, %v3281
    %v3314 = vmul.f32 %v3282, %v3282
    %v3315 = vmul.f32 %v3283, %v3283
    %v3316 = vmul.f32 %v3284, %v3284
    %v3317 = vmul.f32 %v3285, %v3285
    %v3318 = vsub.f32 %v3286, %v3302
    %v3319 = vsub.f32 %v3287, %v3303
    %v3320 = vsub.f32 %v3288, %v3304
    %v3321 = vsub.f32 %v3289, %v3305
    %v3322 = vsub.f32 %v3290, %v3306
    %v3323 = vsub.f32 %v3291, %v3307
    %v3324 = vsub.f32 %v3292, %v3308
    %v3325 = vsub.f32 %v3293, %v3309
    %v3326 = vsub.f32 %v3294, %v3310
    %v3327 = vsub.f32 %v3295, %v3311
    %v3328 = vsub.f32 %v3296, %v3312
    %v3329 = vsub.f32 %v3297, %v3313
    %v3330 = vsub.f32 %v3298, %v3314
    %v3331 = vsub.f32 %v3299, %v3315
    %v3332 = vsub.f32 %v3300, %v3316
    %v3333 = vsub.f32 %v3301, %v3317
    %v3334 = vmax.f32 %v3318, 0.0
    %v3335 = vmax.f32 %v3319, 0.0
    %v3336 = vmax.f32 %v3320, 0.0
    %v3337 = vmax.f32 %v3321, 0.0
    %v3338 = vmax.f32 %v3322, 0.0
    %v3339 = vmax.f32 %v3323, 0.0
    %v3340 = vmax.f32 %v3324, 0.0
    %v3341 = vmax.f32 %v3325, 0.0
    %v3342 = vmax.f32 %v3326, 0.0
    %v3343 = vmax.f32 %v3327, 0.0
    %v3344 = vmax.f32 %v3328, 0.0
    %v3345 = vmax.f32 %v3329, 0.0
    %v3346 = vmax.f32 %v3330, 0.0
    %v3347 = vmax.f32 %v3331, 0.0
    %v3348 = vmax.f32 %v3332, 0.0
    %v3349 = vmax.f32 %v3333, 0.0
    %v3350 = vsub.f32 %v3093, %v3270
    %v3351 = vsub.f32 %v3096, %v3271
    %v3352 = vsub.f32 %v3101, %v3272
    %v3353 = vsub.f32 %v3104, %v3273
    %v3354 = vsub.f32 %v3109, %v3274
    %v3355 = vsub.f32 %v3112, %v3275
    %v3356 = vsub.f32 %v3117, %v3276
    %v3357 = vsub.f32 %v3120, %v3277
    %v3358 = vsub.f32 %v3125, %v3278
    %v3359 = vsub.f32 %v3128, %v3279
    %v3360 = vsub.f32 %v3133, %v3280
    %v3361 = vsub.f32 %v3136, %v3281
    %v3362 = vsub.f32 %v3141, %v3282
    %v3363 = vsub.f32 %v3144, %v3283
    %v3364 = vsub.f32 %v3149, %v3284
    %v3365 = vsub.f32 %v3152, %v3285
    %v3366 = vadd.f32 %v3334, 1e-05
    %v3367 = vadd.f32 %v3335, 1e-05
    %v3368 = vadd.f32 %v3336, 1e-05
    %v3369 = vadd.f32 %v3337, 1e-05
    %v3370 = vadd.f32 %v3338, 1e-05
    %v3371 = vadd.f32 %v3339, 1e-05
    %v3372 = vadd.f32 %v3340, 1e-05
    %v3373 = vadd.f32 %v3341, 1e-05
    %v3374 = vadd.f32 %v3342, 1e-05
    %v3375 = vadd.f32 %v3343, 1e-05
    %v3376 = vadd.f32 %v3344, 1e-05
    %v3377 = vadd.f32 %v3345, 1e-05
    %v3378 = vadd.f32 %v3346, 1e-05
    %v3379 = vadd.f32 %v3347, 1e-05
    %v3380 = vadd.f32 %v3348, 1e-05
    %v3381 = vadd.f32 %v3349, 1e-05
    %v3382 = vrsqrt.pop %v3366
    %v3383 = vrsqrt.pop %v3367
    %v3384 = vrsqrt.pop %v3368
    %v3385 = vrsqrt.pop %v3369
    %v3386 = vrsqrt.pop %v3370
    %v3387 = vrsqrt.pop %v3371
    %v3388 = vrsqrt.pop %v3372
    %v3389 = vrsqrt.pop %v3373
    %v3390 = vrsqrt.pop %v3374
    %v3391 = vrsqrt.pop %v3375
    %v3392 = vrsqrt.pop %v3376
    %v3393 = vrsqrt.pop %v3377
    %v3394 = vrsqrt.pop %v3378
    %v3395 = vrsqrt.pop %v3379
    %v3396 = vrsqrt.pop %v3380
    %v3397 = vrsqrt.pop %v3381
    %v3398 = vmul.f32 %v3350, %v3382
    %v3399 = vmul.f32 %v3351, %v3383
    %v3400 = vmul.f32 %v3352, %v3384
    %v3401 = vmul.f32 %v3353, %v3385
    %v3402 = vmul.f32 %v3354, %v3386
    %v3403 = vmul.f32 %v3355, %v3387
    %v3404 = vmul.f32 %v3356, %v3388
    %v3405 = vmul.f32 %v3357, %v3389
    %v3406 = vmul.f32 %v3358, %v3390
    %v3407 = vmul.f32 %v3359, %v3391
    %v3408 = vmul.f32 %v3360, %v3392
    %v3409 = vmul.f32 %v3361, %v3393
    %v3410 = vmul.f32 %v3362, %v3394
    %v3411 = vmul.f32 %v3363, %v3395
    %v3412 = vmul.f32 %v3364, %v3396
    %v3413 = vmul.f32 %v3365, %v3397
    %v3415 = vlaneseq
    %v3416 = vshrl.u32 %v3415, 7
    %v3417 = vsub.s32 0, %v3416
    %v3418 = vrot.slane %v3155, %v3417
    %v3420 = vmul.f32 %v3398, %v3418
    %v3421 = vmul.f32 %v3399, %v3418
    %v3422 = vmul.f32 %v3400, %v3418
    %v3423 = vmul.f32 %v3401, %v3418
    %v3424 = vmul.f32 %v3402, %v3418
    %v3425 = vmul.f32 %v3403, %v3418
    %v3426 = vmul.f32 %v3404, %v3418
    %v3427 = vmul.f32 %v3405, %v3418
    %v3428 = vmul.f32 %v3406, %v3418
    %v3429 = vmul.f32 %v3407, %v3418
    %v3430 = vmul.f32 %v3408, %v3418
    %v3431 = vmul.f32 %v3409, %v3418
    %v3432 = vmul.f32 %v3410, %v3418
    %v3433 = vmul.f32 %v3411, %v3418
    %v3434 = vmul.f32 %v3412, %v3418
    %v3435 = vmul.f32 %v3413, %v3418
    %v3437 = vlaneseq
    %v3438 = vshrl.u32 %v3437, 7
    %v3439 = vsub.s32 0, %v3438
    %v3440 = vrot.slane %v3156, %v3439
    %v3442 = vadd.f32 %v3420, %v3440
    %v3443 = vadd.f32 %v3421, %v3440
    %v3444 = vadd.f32 %v3422, %v3440
    %v3445 = vadd.f32 %v3423, %v3440
    %v3446 = vadd.f32 %v3424, %v3440
    %v3447 = vadd.f32 %v3425, %v3440
    %v3448 = vadd.f32 %v3426, %v3440
    %v3449 = vadd.f32 %v3427, %v3440
    %v3450 = vadd.f32 %v3428, %v3440
    %v3451 = vadd.f32 %v3429, %v3440
    %v3452 = vadd.f32 %v3430, %v3440
    %v3453 = vadd.f32 %v3431, %v3440
    %v3454 = vadd.f32 %v3432, %v3440
    %v3455 = vadd.f32 %v3433, %v3440
    %v3456 = vadd.f32 %v3434, %v3440
    %v3457 = vadd.f32 %v3435, %v3440
    %vm3458 = vcmp.gt.f32.partialorder %v3442, 0.0
    %vm3459 = vcmp.gt.f32.partialorder %v3443, 0.0
    %vm3460 = vcmp.gt.f32.partialorder %v3444, 0.0
    %vm3461 = vcmp.gt.f32.partialorder %v3445, 0.0
    %vm3462 = vcmp.gt.f32.partialorder %v3446, 0.0
    %vm3463 = vcmp.gt.f32.partialorder %v3447, 0.0
    %vm3464 = vcmp.gt.f32.partialorder %v3448, 0.0
    %vm3465 = vcmp.gt.f32.partialorder %v3449, 0.0
    %vm3466 = vcmp.gt.f32.partialorder %v3450, 0.0
    %vm3467 = vcmp.gt.f32.partialorder %v3451, 0.0
    %vm3468 = vcmp.gt.f32.partialorder %v3452, 0.0
    %vm3469 = vcmp.gt.f32.partialorder %v3453, 0.0
    %vm3470 = vcmp.gt.f32.partialorder %v3454, 0.0
    %vm3471 = vcmp.gt.f32.partialorder %v3455, 0.0
    %vm3472 = vcmp.gt.f32.partialorder %v3456, 0.0
    %vm3473 = vcmp.gt.f32.partialorder %v3457, 0.0
    %v3474 = vmul.f32 %v3442, 0.2
    %v3475 = vmul.f32 %v3443, 0.2
    %v3476 = vmul.f32 %v3444, 0.2
    %v3477 = vmul.f32 %v3445, 0.2
    %v3478 = vmul.f32 %v3446, 0.2
    %v3479 = vmul.f32 %v3447, 0.2
    %v3480 = vmul.f32 %v3448, 0.2
    %v3481 = vmul.f32 %v3449, 0.2
    %v3482 = vmul.f32 %v3450, 0.2
    %v3483 = vmul.f32 %v3451, 0.2
    %v3484 = vmul.f32 %v3452, 0.2
    %v3485 = vmul.f32 %v3453, 0.2
    %v3486 = vmul.f32 %v3454, 0.2
    %v3487 = vmul.f32 %v3455, 0.2
    %v3488 = vmul.f32 %v3456, 0.2
    %v3489 = vmul.f32 %v3457, 0.2
    %v3490 = vsel %vm3458, %v3442, %v3474
    %v3491 = vsel %vm3459, %v3443, %v3475
    %v3492 = vsel %vm3460, %v3444, %v3476
    %v3493 = vsel %vm3461, %v3445, %v3477
    %v3494 = vsel %vm3462, %v3446, %v3478
    %v3495 = vsel %vm3463, %v3447, %v3479
    %v3496 = vsel %vm3464, %v3448, %v3480
    %v3497 = vsel %vm3465, %v3449, %v3481
    %v3498 = vsel %vm3466, %v3450, %v3482
    %v3499 = vsel %vm3467, %v3451, %v3483
    %v3500 = vsel %vm3468, %v3452, %v3484
    %v3501 = vsel %vm3469, %v3453, %v3485
    %v3502 = vsel %vm3470, %v3454, %v3486
    %v3503 = vsel %vm3471, %v3455, %v3487
    %v3504 = vsel %vm3472, %v3456, %v3488
    %v3505 = vsel %vm3473, %v3457, %v3489
    %v3506 = vld [vmem:[%s17] sm:$0x1]
    %v3508 = vlaneseq
    %v3509 = vshrl.u32 %v3508, 7
    %v3510 = vsub.s32 0, %v3509
    %v3511 = vrot.slane %v3506, %v3510
    %v3513 = vmul.f32 %v3490, %v3511
    %v3514 = vmul.f32 %v3491, %v3511
    %v3515 = vmul.f32 %v3492, %v3511
    %v3516 = vmul.f32 %v3493, %v3511
    %v3517 = vmul.f32 %v3494, %v3511
    %v3518 = vmul.f32 %v3495, %v3511
    %v3519 = vmul.f32 %v3496, %v3511
    %v3520 = vmul.f32 %v3497, %v3511
    %v3521 = vmul.f32 %v3498, %v3511
    %v3522 = vmul.f32 %v3499, %v3511
    %v3523 = vmul.f32 %v3500, %v3511
    %v3524 = vmul.f32 %v3501, %v3511
    %v3525 = vmul.f32 %v3502, %v3511
    %v3526 = vmul.f32 %v3503, %v3511
    %v3527 = vmul.f32 %v3504, %v3511
    %v3528 = vmul.f32 %v3505, %v3511
    %v3529 = vsel %vm3157, %v3513, 0.0
    %3530 = vadd.xlane.f32.xlu0 %v3529
    %v3531 = vpop.xlane.xlu0 %3530
    %v3532 = vsel %vm3157, %v3514, 0.0
    %3533 = vadd.xlane.f32.xlu0 %v3532
    %v3534 = vpop.xlane.xlu0 %3533
    %v3535 = vsel %vm3157, %v3515, 0.0
    %3536 = vadd.xlane.f32.xlu0 %v3535
    %v3537 = vpop.xlane.xlu0 %3536
    %v3538 = vsel %vm3157, %v3516, 0.0
    %3539 = vadd.xlane.f32.xlu0 %v3538
    %v3540 = vpop.xlane.xlu0 %3539
    %v3541 = vsel %vm3157, %v3517, 0.0
    %3542 = vadd.xlane.f32.xlu0 %v3541
    %v3543 = vpop.xlane.xlu0 %3542
    %v3544 = vsel %vm3157, %v3518, 0.0
    %3545 = vadd.xlane.f32.xlu0 %v3544
    %v3546 = vpop.xlane.xlu0 %3545
    %v3547 = vsel %vm3157, %v3519, 0.0
    %3548 = vadd.xlane.f32.xlu0 %v3547
    %v3549 = vpop.xlane.xlu0 %3548
    %v3550 = vsel %vm3157, %v3520, 0.0
    %3551 = vadd.xlane.f32.xlu0 %v3550
    %v3552 = vpop.xlane.xlu0 %3551
    %v3553 = vsel %vm3157, %v3521, 0.0
    %3554 = vadd.xlane.f32.xlu0 %v3553
    %v3555 = vpop.xlane.xlu0 %3554
    %v3556 = vsel %vm3157, %v3522, 0.0
    %3557 = vadd.xlane.f32.xlu0 %v3556
    %v3558 = vpop.xlane.xlu0 %3557
    %v3559 = vsel %vm3157, %v3523, 0.0
    %3560 = vadd.xlane.f32.xlu0 %v3559
    %v3561 = vpop.xlane.xlu0 %3560
    %v3562 = vsel %vm3157, %v3524, 0.0
    %3563 = vadd.xlane.f32.xlu0 %v3562
    %v3564 = vpop.xlane.xlu0 %3563
    %v3565 = vsel %vm3157, %v3525, 0.0
    %3566 = vadd.xlane.f32.xlu0 %v3565
    %v3567 = vpop.xlane.xlu0 %3566
    %v3568 = vsel %vm3157, %v3526, 0.0
    %3569 = vadd.xlane.f32.xlu0 %v3568
    %v3570 = vpop.xlane.xlu0 %3569
    %v3571 = vsel %vm3157, %v3527, 0.0
    %3572 = vadd.xlane.f32.xlu0 %v3571
    %v3573 = vpop.xlane.xlu0 %3572
    %v3574 = vsel %vm3157, %v3528, 0.0
    %3575 = vadd.xlane.f32.xlu0 %v3574
    %v3576 = vpop.xlane.xlu0 %3575
    %v3577 = vld [vmem:[#allocation2] sm:$0x1]
    %v3579 = vlaneseq
    %v3580 = vshrl.u32 %v3579, 7
    %v3581 = vsub.s32 0, %v3580
    %v3582 = vrot.slane %v3577, %v3581
    %v3584 = vadd.f32 %v3531, %v3582
    %v3585 = vadd.f32 %v3534, %v3582
    %v3586 = vadd.f32 %v3537, %v3582
    %v3587 = vadd.f32 %v3540, %v3582
    %v3588 = vadd.f32 %v3543, %v3582
    %v3589 = vadd.f32 %v3546, %v3582
    %v3590 = vadd.f32 %v3549, %v3582
    %v3591 = vadd.f32 %v3552, %v3582
    %v3592 = vadd.f32 %v3555, %v3582
    %v3593 = vadd.f32 %v3558, %v3582
    %v3594 = vadd.f32 %v3561, %v3582
    %v3595 = vadd.f32 %v3564, %v3582
    %v3596 = vadd.f32 %v3567, %v3582
    %v3597 = vadd.f32 %v3570, %v3582
    %v3598 = vadd.f32 %v3573, %v3582
    %v3599 = vadd.f32 %v3576, %v3582
    %v3600 = vand.u32 2147483647, %v3584
    %v3601 = vand.u32 2147483647, %v3585
    %v3602 = vand.u32 2147483647, %v3586
    %v3603 = vand.u32 2147483647, %v3587
    %v3604 = vand.u32 2147483647, %v3588
    %v3605 = vand.u32 2147483647, %v3589
    %v3606 = vand.u32 2147483647, %v3590
    %v3607 = vand.u32 2147483647, %v3591
    %v3608 = vand.u32 2147483647, %v3592
    %v3609 = vand.u32 2147483647, %v3593
    %v3610 = vand.u32 2147483647, %v3594
    %v3611 = vand.u32 2147483647, %v3595
    %v3612 = vand.u32 2147483647, %v3596
    %v3613 = vand.u32 2147483647, %v3597
    %v3614 = vand.u32 2147483647, %v3598
    %v3615 = vand.u32 2147483647, %v3599
    %v3616 = vsub.f32 0.0, %v3600
    %v3617 = vsub.f32 0.0, %v3601
    %v3618 = vsub.f32 0.0, %v3602
    %v3619 = vsub.f32 0.0, %v3603
    %v3620 = vsub.f32 0.0, %v3604
    %v3621 = vsub.f32 0.0, %v3605
    %v3622 = vsub.f32 0.0, %v3606
    %v3623 = vsub.f32 0.0, %v3607
    %v3624 = vsub.f32 0.0, %v3608
    %v3625 = vsub.f32 0.0, %v3609
    %v3626 = vsub.f32 0.0, %v3610
    %v3627 = vsub.f32 0.0, %v3611
    %v3628 = vsub.f32 0.0, %v3612
    %v3629 = vsub.f32 0.0, %v3613
    %v3630 = vsub.f32 0.0, %v3614
    %v3631 = vsub.f32 0.0, %v3615
    %v3632 = vmul.f32 %v3616, 1.442695
    %v3633 = vpow.pop %v3632
    %v3634 = vmul.f32 %v3617, 1.442695
    %v3635 = vpow.pop %v3634
    %v3636 = vmul.f32 %v3618, 1.442695
    %v3637 = vpow.pop %v3636
    %v3638 = vmul.f32 %v3619, 1.442695
    %v3639 = vpow.pop %v3638
    %v3640 = vmul.f32 %v3620, 1.442695
    %v3641 = vpow.pop %v3640
    %v3642 = vmul.f32 %v3621, 1.442695
    %v3643 = vpow.pop %v3642
    %v3644 = vmul.f32 %v3622, 1.442695
    %v3645 = vpow.pop %v3644
    %v3646 = vmul.f32 %v3623, 1.442695
    %v3647 = vpow.pop %v3646
    %v3648 = vmul.f32 %v3624, 1.442695
    %v3649 = vpow.pop %v3648
    %v3650 = vmul.f32 %v3625, 1.442695
    %v3651 = vpow.pop %v3650
    %v3652 = vmul.f32 %v3626, 1.442695
    %v3653 = vpow.pop %v3652
    %v3654 = vmul.f32 %v3627, 1.442695
    %v3655 = vpow.pop %v3654
    %v3656 = vmul.f32 %v3628, 1.442695
    %v3657 = vpow.pop %v3656
    %v3658 = vmul.f32 %v3629, 1.442695
    %v3659 = vpow.pop %v3658
    %v3660 = vmul.f32 %v3630, 1.442695
    %v3661 = vpow.pop %v3660
    %v3662 = vmul.f32 %v3631, 1.442695
    %v3663 = vpow.pop %v3662
    %v3664 = vadd.f32 %v3633, 1.0
    %v3665 = vadd.f32 %v3635, 1.0
    %v3666 = vadd.f32 %v3637, 1.0
    %v3667 = vadd.f32 %v3639, 1.0
    %v3668 = vadd.f32 %v3641, 1.0
    %v3669 = vadd.f32 %v3643, 1.0
    %v3670 = vadd.f32 %v3645, 1.0
    %v3671 = vadd.f32 %v3647, 1.0
    %v3672 = vadd.f32 %v3649, 1.0
    %v3673 = vadd.f32 %v3651, 1.0
    %v3674 = vadd.f32 %v3653, 1.0
    %v3675 = vadd.f32 %v3655, 1.0
    %v3676 = vadd.f32 %v3657, 1.0
    %v3677 = vadd.f32 %v3659, 1.0
    %v3678 = vadd.f32 %v3661, 1.0
    %v3679 = vadd.f32 %v3663, 1.0
    %v3680 = vrcp.pop %v3664
    %v3681 = vrcp.pop %v3665
    %v3682 = vrcp.pop %v3666
    %v3683 = vrcp.pop %v3667
    %v3684 = vrcp.pop %v3668
    %v3685 = vrcp.pop %v3669
    %v3686 = vrcp.pop %v3670
    %v3687 = vrcp.pop %v3671
    %v3688 = vrcp.pop %v3672
    %v3689 = vrcp.pop %v3673
    %v3690 = vrcp.pop %v3674
    %v3691 = vrcp.pop %v3675
    %v3692 = vrcp.pop %v3676
    %v3693 = vrcp.pop %v3677
    %v3694 = vrcp.pop %v3678
    %v3695 = vrcp.pop %v3679
    %vm3696 = vcmp.ge.f32.partialorder %v3584, 0.0
    %vm3697 = vcmp.ge.f32.partialorder %v3585, 0.0
    %vm3698 = vcmp.ge.f32.partialorder %v3586, 0.0
    %vm3699 = vcmp.ge.f32.partialorder %v3587, 0.0
    %vm3700 = vcmp.ge.f32.partialorder %v3588, 0.0
    %vm3701 = vcmp.ge.f32.partialorder %v3589, 0.0
    %vm3702 = vcmp.ge.f32.partialorder %v3590, 0.0
    %vm3703 = vcmp.ge.f32.partialorder %v3591, 0.0
    %vm3704 = vcmp.ge.f32.partialorder %v3592, 0.0
    %vm3705 = vcmp.ge.f32.partialorder %v3593, 0.0
    %vm3706 = vcmp.ge.f32.partialorder %v3594, 0.0
    %vm3707 = vcmp.ge.f32.partialorder %v3595, 0.0
    %vm3708 = vcmp.ge.f32.partialorder %v3596, 0.0
    %vm3709 = vcmp.ge.f32.partialorder %v3597, 0.0
    %vm3710 = vcmp.ge.f32.partialorder %v3598, 0.0
    %vm3711 = vcmp.ge.f32.partialorder %v3599, 0.0
    %v3712 = vmul.f32 %v3633, %v3680
    %v3713 = vmul.f32 %v3635, %v3681
    %v3714 = vmul.f32 %v3637, %v3682
    %v3715 = vmul.f32 %v3639, %v3683
    %v3716 = vmul.f32 %v3641, %v3684
    %v3717 = vmul.f32 %v3643, %v3685
    %v3718 = vmul.f32 %v3645, %v3686
    %v3719 = vmul.f32 %v3647, %v3687
    %v3720 = vmul.f32 %v3649, %v3688
    %v3721 = vmul.f32 %v3651, %v3689
    %v3722 = vmul.f32 %v3653, %v3690
    %v3723 = vmul.f32 %v3655, %v3691
    %v3724 = vmul.f32 %v3657, %v3692
    %v3725 = vmul.f32 %v3659, %v3693
    %v3726 = vmul.f32 %v3661, %v3694
    %v3727 = vmul.f32 %v3663, %v3695
    %v3728 = vsel %vm3696, %v3680, %v3712
    %v3729 = vsel %vm3697, %v3681, %v3713
    %v3730 = vsel %vm3698, %v3682, %v3714
    %v3731 = vsel %vm3699, %v3683, %v3715
    %v3732 = vsel %vm3700, %v3684, %v3716
    %v3733 = vsel %vm3701, %v3685, %v3717
    %v3734 = vsel %vm3702, %v3686, %v3718
    %v3735 = vsel %vm3703, %v3687, %v3719
    %v3736 = vsel %vm3704, %v3688, %v3720
    %v3737 = vsel %vm3705, %v3689, %v3721
    %v3738 = vsel %vm3706, %v3690, %v3722
    %v3739 = vsel %vm3707, %v3691, %v3723
    %v3740 = vsel %vm3708, %v3692, %v3724
    %v3741 = vsel %vm3709, %v3693, %v3725
    %v3742 = vsel %vm3710, %v3694, %v3726
    %v3743 = vsel %vm3711, %v3695, %v3727
    %vm3744 = vcmask 7168
    %3745 = vst.msk [vmem:[%s19] sm:$0xff] %vm3744, %v3728
    %3746 = vst.msk [vmem:[%s19 + $0x8] sm:$0xff] %vm3744, %v3729
    %3747 = vst.msk [vmem:[%s19 + $0x10] sm:$0xff] %vm3744, %v3730
    %3748 = vst.msk [vmem:[%s19 + $0x18] sm:$0xff] %vm3744, %v3731
    %3749 = vst.msk [vmem:[%s19 + $0x20] sm:$0xff] %vm3744, %v3732
    %3750 = vst.msk [vmem:[%s19 + $0x28] sm:$0xff] %vm3744, %v3733
    %3751 = vst.msk [vmem:[%s19 + $0x30] sm:$0xff] %vm3744, %v3734
    %3752 = vst.msk [vmem:[%s19 + $0x38] sm:$0xff] %vm3744, %v3735
    %3753 = vst.msk [vmem:[%s19 + $0x40] sm:$0xff] %vm3744, %v3736
    %3754 = vst.msk [vmem:[%s19 + $0x48] sm:$0xff] %vm3744, %v3737
    %3755 = vst.msk [vmem:[%s19 + $0x50] sm:$0xff] %vm3744, %v3738
    %3756 = vst.msk [vmem:[%s19 + $0x58] sm:$0xff] %vm3744, %v3739
    %3757 = vst.msk [vmem:[%s19 + $0x60] sm:$0xff] %vm3744, %v3740
    %3758 = vst.msk [vmem:[%s19 + $0x68] sm:$0xff] %vm3744, %v3741
    %3759 = vst.msk [vmem:[%s19 + $0x70] sm:$0xff] %vm3744, %v3742
    %3760 = vst.msk [vmem:[%s19 + $0x78] sm:$0xff] %vm3744, %v3743
    // Predicated region
    $region82: #{tpu_custom_call.1} parent=1 // pred_check
      _
    $region83: #{tpu_custom_call.1} parent=1 // pred_check_branch
      %3762 = sbr.rel (0) target = $region85
    $region84: #{tpu_custom_call.1} parent=1 // pred_region
      _
    $region85: #{tpu_custom_call.1} parent=1 // pred_fallthru
      _
    // Predicated region
    $region86: #{tpu_custom_call.1} parent=1 // pred_check
      _
    $region87: #{tpu_custom_call.1} parent=1 // pred_check_branch
      %3764 = sbr.rel (0) target = $region89
    $region88: #{tpu_custom_call.1} parent=1 // pred_region
      %s3766 = ssub.s32 2048, 2048
      %3767 = vsyncadd [#allocation5], %s3766
      %s3768 = sshll.u32 [#allocation6], 4
      %s3769 = int_to_ptr.vmem [resolvable:$true] %s3768
      %3774 = dma.vmem_to_hbm [thread:$0]  %s3769, 2048, %s20, [#allocation5], 128, 128, 8
    $region89: #{tpu_custom_call.1} parent=1 // pred_fallthru
      _
    // Predicated region
    $region90: #{tpu_custom_call.1} parent=1 // pred_check
      _
    $region91: #{tpu_custom_call.1} parent=1 // pred_check_branch
      %3776 = sbr.rel (0) target = $region93
    $region92: #{tpu_custom_call.1} parent=1 // pred_region
      _
    $region93: #{tpu_custom_call.1} parent=1 // pred_fallthru
      _
    // Predicated region
    $region94: #{tpu_custom_call.1} parent=1 // pred_check
      _
    $region95: #{tpu_custom_call.1} parent=1 // pred_check_branch
      %3778 = sbr.rel (0) target = $region97
    $region96: #{tpu_custom_call.1} parent=1 // pred_region
      %3779 = dma.done [#allocation5], 2048
    $region97: #{tpu_custom_call.1} parent=1 // pred_fallthru
      _
    %3780 = vsyncpa [#allocation4], 1
    %3781 = vsyncpa [#allocation5], 1

</llo_original>
